<compile_context>
chip_gen: v5e
topology: v5e:2x2
jax: 0.10.0
libtpu: 0.0.40
codegen_flags: <defaults>
</compile_context>

<pallas_src>
import jax
import jax.numpy as jnp
from jax.experimental import pallas as pl
from jax.experimental.pallas import tpu as pltpu


def _charcnn_fused_kernel(a1_ref, w1_ref, b1_ref, w2_ref, b2_ref, o_ref):
    """Fused conv1->relu->pool1->conv2->relu->pool2 for a block of Bt batch items.

    a1_ref: (Bt, Lout1, K*Cin)  conv1 im2col rows, bf16
    w1_ref: (K*Cin, Cout)       conv1 weight as a single matmul operand, bf16
    b1_ref: (1, Cout)           conv1 bias, f32
    w2_ref: (K, Cout, Cout)     conv2 weight per tap ([k, cin, cout]), bf16
    b2_ref: (1, Cout)           conv2 bias, f32
    o_ref : (Bt, Cout, P2)      final output, NCL layout (matches PyTorch)
    """
    Bt, Lout1, _ = a1_ref.shape
    Cout = w1_ref.shape[1]
    K = w2_ref.shape[0]
    P1 = (Lout1 - 3) // 3 + 1          # MaxPool1d(3,3), floor mode
    Lout2 = P1 - K + 1                 # conv2 valid length
    P2 = (Lout2 - 3) // 3 + 1

    # ---- conv1: one im2col matmul per item (contraction 56) + bias + ReLU + pool
    p1 = []
    for i in range(Bt):
        h = jnp.dot(a1_ref[i], w1_ref[...],
                    preferred_element_type=jnp.float32)            # (Lout1, Cout) f32
        h = jnp.maximum(h + b1_ref[...], 0.0)
        p1.append(jnp.max(h[:3 * P1].reshape(P1, 3, Cout), axis=1))  # (P1, Cout) f32

    # ---- conv2: K shifted-tap matmuls; rows stacked across the batch block so
    #      the MXU sees M = Bt*Lout2.  (Per-item slices keep conv windows from
    #      crossing batch boundaries; row offsets Lout2 are 8-aligned for f32.)
    def tap_rows(k):
        if Bt == 1:
            return p1[0][k:k + Lout2]
        return jnp.concatenate([p[k:k + Lout2] for p in p1], axis=0)

    acc = jnp.zeros((Bt * Lout2, Cout), jnp.float32)
    for k in range(K):                                               # K = 7, static
        acc = acc + jnp.dot(tap_rows(k).astype(jnp.bfloat16), w2_ref[k],
                            preferred_element_type=jnp.float32)
    h2 = jnp.maximum(acc + b2_ref[...], 0.0)                         # (Bt*Lout2, Cout)

    # ---- pool2 + NLC -> NCL transpose, written straight to the output block
    for i in range(Bt):
        hi = h2[i * Lout2: i * Lout2 + 3 * P2]                       # (3*P2, Cout)
        pooled = jnp.max(hi.reshape(P2, 3, Cout), axis=1)            # (P2, Cout)
        o_ref[i] = pooled.T.astype(o_ref.dtype)                      # (Cout, P2)


def _pick_block_batch(n, max_bt=8):
    """Largest divisor of n that still leaves >= 2 grid steps (v7x: 2 TCs/chip)."""
    cap = max(1, min(max_bt, n // 2))
    for bt in range(cap, 0, -1):
        if n % bt == 0:
            return bt
    return 1


def _im2col_1d(x_nlc, K):
    """(N, L, Cin) -> (N, L-K+1, K*Cin); column order (k, c)."""
    N, L, Cin = x_nlc.shape
    Lout = L - K + 1
    return jnp.concatenate([x_nlc[:, k:k + Lout, :] for k in range(K)], axis=2)


def char_cnn_forward(x_ncl, w1, b1, w2, b2, *, block_batch=None):
    """ClientModelCharCNN forward.  x_ncl: (N, num_features, L) -> (N, 256, P2)."""
    N, Cin, L = x_ncl.shape
    Cout, _, K = w1.shape
    Lout1 = L - K + 1
    P1 = (Lout1 - 3) // 3 + 1
    Lout2 = P1 - K + 1
    P2 = (Lout2 - 3) // 3 + 1
    assert Lout1 >= 3 and Lout2 >= 3, "sequence too short for this conv/pool stack"

    Bt = _pick_block_batch(N) if block_batch is None else block_batch
    assert N % Bt == 0, "block_batch must divide the batch size"

    # Wrapper-side prep (tiny, fuses into one XLA gather/convert):
    #   NCL -> NLC, conv1 im2col, and bf16 cast of all MXU operands.
    x_nlc = jnp.transpose(x_ncl, (0, 2, 1))                          # (N, L, Cin)
    a1 = _im2col_1d(x_nlc, K).astype(jnp.bfloat16)                   # (N, Lout1, K*Cin)
    w1_mat = jnp.transpose(w1, (2, 1, 0)).reshape(K * Cin, Cout).astype(jnp.bfloat16)
    w2_t = jnp.transpose(w2, (2, 1, 0)).astype(jnp.bfloat16)         # (K, Cin2, Cout)
    b1_r = b1.reshape(1, Cout).astype(jnp.float32)
    b2_r = b2.reshape(1, Cout).astype(jnp.float32)

    return pl.pallas_call(
        _charcnn_fused_kernel,
        out_shape=jax.ShapeDtypeStruct((N, Cout, P2), x_ncl.dtype),
        grid=(N // Bt,),
        in_specs=[
            pl.BlockSpec((Bt, Lout1, K * Cin), lambda n: (n, 0, 0)),
            pl.BlockSpec((K * Cin, Cout), lambda n: (0, 0)),
            pl.BlockSpec((1, Cout), lambda n: (0, 0)),
            pl.BlockSpec((K, Cout, Cout), lambda n: (0, 0, 0)),
            pl.BlockSpec((1, Cout), lambda n: (0, 0)),
        ],
        out_specs=pl.BlockSpec((Bt, Cout, P2), lambda n: (n, 0, 0)),
        compiler_params=pltpu.CompilerParams(
            dimension_semantics=("parallel",),
            vmem_limit_bytes=32 * 1024 * 1024),
    )(a1, w1_mat, b1_r, w2_t, b2_r)


# ----- pure-JAX reference (correctness check only) ---------------------------
def _ref_block(x_ncl, w_oik, b):
    # Mirror the kernel's bf16 MXU inputs (f32 accumulate) for a tight comparison.
    xq = x_ncl.astype(jnp.bfloat16).astype(jnp.float32)
    wq = w_oik.astype(jnp.bfloat16).astype(jnp.float32)
    y = jax.lax.conv_general_dilated(
        xq, wq, window_strides=(1,), padding="VALID",
        dimension_numbers=("NCH", "OIH", "NCH"))
    y = jnp.maximum(y + b[None, :, None], 0.0)
    y = jax.lax.reduce_window(y, -jnp.inf, jax.lax.max,
                              (1, 1, 3), (1, 1, 3), "VALID")
    return y


if __name__ == "__main__":
    key = jax.random.PRNGKey(0)
    N, NUM_FEATURES, L = 2, 8, 96        # L=96 -> conv1 90 -> pool 30 -> conv2 24 -> pool 8
    COUT, K = 256, 7

    k_x, k_w1, k_b1, k_w2, k_b2 = jax.random.split(key, 5)
    x = jax.random.normal(k_x, (N, NUM_FEATURES, L), jnp.float32)
    # PyTorch Conv1d weight layout: (Cout, Cin, K)
    w1 = jax.random.normal(k_w1, (COUT, NUM_FEATURES, K), jnp.float32) / jnp.sqrt(NUM_FEATURES * K)
    b1 = jax.random.normal(k_b1, (COUT,), jnp.float32) * 0.1
    w2 = jax.random.normal(k_w2, (COUT, COUT, K), jnp.float32) / jnp.sqrt(COUT * K)
    b2 = jax.random.normal(k_b2, (COUT,), jnp.float32) * 0.1

    out = jax.jit(char_cnn_forward)(x, w1, b1, w2, b2)
    out = jax.block_until_ready(out)

    ref = _ref_block(_ref_block(x, w1, b1), w2, b2)
    assert out.shape == ref.shape, (out.shape, ref.shape)
    max_err = float(jnp.max(jnp.abs(out - ref)))
    assert jnp.allclose(out, ref, atol=2e-2, rtol=2e-2), max_err

    print("KERNEL_OK")
</pallas_src>

<mosaic_0001>
module attributes {stable_mosaic.version = 11 : i64} {
  func.func @_charcnn_fused_kernel(%arg0: i32, %arg1: memref<1x90x56xbf16, #tpu.memory_space<vmem>>, %arg2: memref<56x256xbf16, #tpu.memory_space<vmem>>, %arg3: memref<1x256xf32, #tpu.memory_space<vmem>>, %arg4: memref<7x256x256xbf16, #tpu.memory_space<vmem>>, %arg5: memref<1x256xf32, #tpu.memory_space<vmem>>, %arg6: memref<1x256x8xf32, #tpu.memory_space<vmem>>) attributes {dimension_semantics = [#tpu.dimension_semantics<parallel>], iteration_bounds = array<i64: 2>, scalar_prefetch = 0 : i64, scratch_operands = 0 : i64, tpu.core_type = #tpu.core_type<tc>, window_params = [{transform_indices = @transform_0, window_bounds = array<i64: 1, 90, 56>}, {pipeline_mode = #tpu.pipeline_mode<synchronous>, transform_indices = @transform_1, window_bounds = array<i64: 56, 256>}, {pipeline_mode = #tpu.pipeline_mode<synchronous>, transform_indices = @transform_2, window_bounds = array<i64: 1, 256>}, {pipeline_mode = #tpu.pipeline_mode<synchronous>, transform_indices = @transform_3, window_bounds = array<i64: 7, 256, 256>}, {pipeline_mode = #tpu.pipeline_mode<synchronous>, transform_indices = @transform_4, window_bounds = array<i64: 1, 256>}, {transform_indices = @transform_5, window_bounds = array<i64: 1, 256, 8>}]} {
    %c0 = arith.constant 0 : index
    %c0_0 = arith.constant 0 : index
    %c0_1 = arith.constant 0 : index
    %0 = vector.load %arg1[%c0, %c0_0, %c0_1] : memref<1x90x56xbf16, #tpu.memory_space<vmem>>, vector<1x90x56xbf16>
    %1 = vector.shape_cast %0 : vector<1x90x56xbf16> to vector<90x56xbf16>
    %c0_2 = arith.constant 0 : index
    %c0_3 = arith.constant 0 : index
    %2 = vector.load %arg2[%c0_2, %c0_3] : memref<56x256xbf16, #tpu.memory_space<vmem>>, vector<56x256xbf16>
    %cst = arith.constant dense<0.000000e+00> : vector<90x256xf32>
    %3 = tpu.matmul %1, %2, %cst {dimension_numbers = #tpu.dot_dimension_numbers<[1], [0], [0], [1], [0, 0, 1, 1], [], []>} : vector<90x56xbf16>, vector<56x256xbf16>, vector<90x256xf32> -> vector<90x256xf32>
    %c0_4 = arith.constant 0 : index
    %c0_5 = arith.constant 0 : index
    %4 = vector.load %arg3[%c0_4, %c0_5] : memref<1x256xf32, #tpu.memory_space<vmem>>, vector<1x256xf32>
    %5 = vector.broadcast %4 : vector<1x256xf32> to vector<90x256xf32>
    %6 = arith.addf %3, %5 : vector<90x256xf32>
    %cst_6 = arith.constant 0.000000e+00 : f32
    %7 = vector.broadcast %cst_6 : f32 to vector<90x256xf32>
    %8 = arith.maximumf %6, %7 : vector<90x256xf32>
    %9 = vector.shape_cast %8 : vector<90x256xf32> to vector<30x3x256xf32>
    %cst_7 = arith.constant dense<0xFF800000> : vector<30x256xf32>
    %10 = vector.multi_reduction <maximumf>, %9, %cst_7 [1] : vector<30x3x256xf32> to vector<30x256xf32>
    %cst_8 = arith.constant 0.000000e+00 : f32
    %11 = vector.broadcast %cst_8 : f32 to vector<24x256xf32>
    %12 = vector.extract_strided_slice %10 {offsets = [0, 0], sizes = [24, 256], strides = [1, 1]} : vector<30x256xf32> to vector<24x256xf32>
    %13 = arith.truncf %12 : vector<24x256xf32> to vector<24x256xbf16>
    %c0_9 = arith.constant 0 : index
    %c0_10 = arith.constant 0 : index
    %c0_11 = arith.constant 0 : index
    %14 = vector.load %arg4[%c0_9, %c0_10, %c0_11] : memref<7x256x256xbf16, #tpu.memory_space<vmem>>, vector<1x256x256xbf16>
    %15 = vector.shape_cast %14 : vector<1x256x256xbf16> to vector<256x256xbf16>
    %cst_12 = arith.constant dense<0.000000e+00> : vector<24x256xf32>
    %16 = tpu.matmul %13, %15, %cst_12 {dimension_numbers = #tpu.dot_dimension_numbers<[1], [0], [0], [1], [0, 0, 1, 1], [], []>} : vector<24x256xbf16>, vector<256x256xbf16>, vector<24x256xf32> -> vector<24x256xf32>
    %17 = arith.addf %11, %16 : vector<24x256xf32>
    %18 = vector.extract_strided_slice %10 {offsets = [1, 0], sizes = [24, 256], strides = [1, 1]} : vector<30x256xf32> to vector<24x256xf32>
    %19 = arith.truncf %18 : vector<24x256xf32> to vector<24x256xbf16>
    %c1 = arith.constant 1 : index
    %c0_13 = arith.constant 0 : index
    %c0_14 = arith.constant 0 : index
    %20 = vector.load %arg4[%c1, %c0_13, %c0_14] : memref<7x256x256xbf16, #tpu.memory_space<vmem>>, vector<1x256x256xbf16>
    %21 = vector.shape_cast %20 : vector<1x256x256xbf16> to vector<256x256xbf16>
    %cst_15 = arith.constant dense<0.000000e+00> : vector<24x256xf32>
    %22 = tpu.matmul %19, %21, %cst_15 {dimension_numbers = #tpu.dot_dimension_numbers<[1], [0], [0], [1], [0, 0, 1, 1], [], []>} : vector<24x256xbf16>, vector<256x256xbf16>, vector<24x256xf32> -> vector<24x256xf32>
    %23 = arith.addf %17, %22 : vector<24x256xf32>
    %24 = vector.extract_strided_slice %10 {offsets = [2, 0], sizes = [24, 256], strides = [1, 1]} : vector<30x256xf32> to vector<24x256xf32>
    %25 = arith.truncf %24 : vector<24x256xf32> to vector<24x256xbf16>
    %c2 = arith.constant 2 : index
    %c0_16 = arith.constant 0 : index
    %c0_17 = arith.constant 0 : index
    %26 = vector.load %arg4[%c2, %c0_16, %c0_17] : memref<7x256x256xbf16, #tpu.memory_space<vmem>>, vector<1x256x256xbf16>
    %27 = vector.shape_cast %26 : vector<1x256x256xbf16> to vector<256x256xbf16>
    %cst_18 = arith.constant dense<0.000000e+00> : vector<24x256xf32>
    %28 = tpu.matmul %25, %27, %cst_18 {dimension_numbers = #tpu.dot_dimension_numbers<[1], [0], [0], [1], [0, 0, 1, 1], [], []>} : vector<24x256xbf16>, vector<256x256xbf16>, vector<24x256xf32> -> vector<24x256xf32>
    %29 = arith.addf %23, %28 : vector<24x256xf32>
    %30 = vector.extract_strided_slice %10 {offsets = [3, 0], sizes = [24, 256], strides = [1, 1]} : vector<30x256xf32> to vector<24x256xf32>
    %31 = arith.truncf %30 : vector<24x256xf32> to vector<24x256xbf16>
    %c3 = arith.constant 3 : index
    %c0_19 = arith.constant 0 : index
    %c0_20 = arith.constant 0 : index
    %32 = vector.load %arg4[%c3, %c0_19, %c0_20] : memref<7x256x256xbf16, #tpu.memory_space<vmem>>, vector<1x256x256xbf16>
    %33 = vector.shape_cast %32 : vector<1x256x256xbf16> to vector<256x256xbf16>
    %cst_21 = arith.constant dense<0.000000e+00> : vector<24x256xf32>
    %34 = tpu.matmul %31, %33, %cst_21 {dimension_numbers = #tpu.dot_dimension_numbers<[1], [0], [0], [1], [0, 0, 1, 1], [], []>} : vector<24x256xbf16>, vector<256x256xbf16>, vector<24x256xf32> -> vector<24x256xf32>
    %35 = arith.addf %29, %34 : vector<24x256xf32>
    %36 = vector.extract_strided_slice %10 {offsets = [4, 0], sizes = [24, 256], strides = [1, 1]} : vector<30x256xf32> to vector<24x256xf32>
    %37 = arith.truncf %36 : vector<24x256xf32> to vector<24x256xbf16>
    %c4 = arith.constant 4 : index
    %c0_22 = arith.constant 0 : index
    %c0_23 = arith.constant 0 : index
    %38 = vector.load %arg4[%c4, %c0_22, %c0_23] : memref<7x256x256xbf16, #tpu.memory_space<vmem>>, vector<1x256x256xbf16>
    %39 = vector.shape_cast %38 : vector<1x256x256xbf16> to vector<256x256xbf16>
    %cst_24 = arith.constant dense<0.000000e+00> : vector<24x256xf32>
    %40 = tpu.matmul %37, %39, %cst_24 {dimension_numbers = #tpu.dot_dimension_numbers<[1], [0], [0], [1], [0, 0, 1, 1], [], []>} : vector<24x256xbf16>, vector<256x256xbf16>, vector<24x256xf32> -> vector<24x256xf32>
    %41 = arith.addf %35, %40 : vector<24x256xf32>
    %42 = vector.extract_strided_slice %10 {offsets = [5, 0], sizes = [24, 256], strides = [1, 1]} : vector<30x256xf32> to vector<24x256xf32>
    %43 = arith.truncf %42 : vector<24x256xf32> to vector<24x256xbf16>
    %c5 = arith.constant 5 : index
    %c0_25 = arith.constant 0 : index
    %c0_26 = arith.constant 0 : index
    %44 = vector.load %arg4[%c5, %c0_25, %c0_26] : memref<7x256x256xbf16, #tpu.memory_space<vmem>>, vector<1x256x256xbf16>
    %45 = vector.shape_cast %44 : vector<1x256x256xbf16> to vector<256x256xbf16>
    %cst_27 = arith.constant dense<0.000000e+00> : vector<24x256xf32>
    %46 = tpu.matmul %43, %45, %cst_27 {dimension_numbers = #tpu.dot_dimension_numbers<[1], [0], [0], [1], [0, 0, 1, 1], [], []>} : vector<24x256xbf16>, vector<256x256xbf16>, vector<24x256xf32> -> vector<24x256xf32>
    %47 = arith.addf %41, %46 : vector<24x256xf32>
    %48 = vector.extract_strided_slice %10 {offsets = [6, 0], sizes = [24, 256], strides = [1, 1]} : vector<30x256xf32> to vector<24x256xf32>
    %49 = arith.truncf %48 : vector<24x256xf32> to vector<24x256xbf16>
    %c6 = arith.constant 6 : index
    %c0_28 = arith.constant 0 : index
    %c0_29 = arith.constant 0 : index
    %50 = vector.load %arg4[%c6, %c0_28, %c0_29] : memref<7x256x256xbf16, #tpu.memory_space<vmem>>, vector<1x256x256xbf16>
    %51 = vector.shape_cast %50 : vector<1x256x256xbf16> to vector<256x256xbf16>
    %cst_30 = arith.constant dense<0.000000e+00> : vector<24x256xf32>
    %52 = tpu.matmul %49, %51, %cst_30 {dimension_numbers = #tpu.dot_dimension_numbers<[1], [0], [0], [1], [0, 0, 1, 1], [], []>} : vector<24x256xbf16>, vector<256x256xbf16>, vector<24x256xf32> -> vector<24x256xf32>
    %53 = arith.addf %47, %52 : vector<24x256xf32>
    %c0_31 = arith.constant 0 : index
    %c0_32 = arith.constant 0 : index
    %54 = vector.load %arg5[%c0_31, %c0_32] : memref<1x256xf32, #tpu.memory_space<vmem>>, vector<1x256xf32>
    %55 = vector.broadcast %54 : vector<1x256xf32> to vector<24x256xf32>
    %56 = arith.addf %53, %55 : vector<24x256xf32>
    %cst_33 = arith.constant 0.000000e+00 : f32
    %57 = vector.broadcast %cst_33 : f32 to vector<24x256xf32>
    %58 = arith.maximumf %56, %57 : vector<24x256xf32>
    %59 = vector.shape_cast %58 : vector<24x256xf32> to vector<8x3x256xf32>
    %cst_34 = arith.constant dense<0xFF800000> : vector<8x256xf32>
    %60 = vector.multi_reduction <maximumf>, %59, %cst_34 [1] : vector<8x3x256xf32> to vector<8x256xf32>
    %61 = tpu.transpose %60, [1, 0] : vector<8x256xf32> -> vector<256x8xf32>
    %c0_35 = arith.constant 0 : index
    %c0_36 = arith.constant 0 : index
    %c0_37 = arith.constant 0 : index
    %62 = vector.load %arg6[%c0_35, %c0_36, %c0_37] : memref<1x256x8xf32, #tpu.memory_space<vmem>>, vector<1x256x8xf32>
    %63 = vector.shape_cast %62 : vector<1x256x8xf32> to vector<256x8xf32>
    %64 = vector.shape_cast %61 : vector<256x8xf32> to vector<1x256x8xf32>
    tpu.vector_store %arg6[%c0_35, %c0_36, %c0_37], %64 {strides = array<i32>} : memref<1x256x8xf32, #tpu.memory_space<vmem>>, vector<1x256x8xf32>,
    return
  }
  func.func @transform_0(%arg0: i32) -> (i32, i32, i32) {
    %c0_i32 = arith.constant 0 : i32
    %c0_i32_0 = arith.constant 0 : i32
    %c0_i32_1 = arith.constant 0 : i32
    return %arg0, %c0_i32, %c0_i32_0 : i32, i32, i32
  }
  func.func @transform_1(%arg0: i32) -> (i32, i32) {
    %c0_i32 = arith.constant 0 : i32
    %c0_i32_0 = arith.constant 0 : i32
    %c0_i32_1 = arith.constant 0 : i32
    return %c0_i32, %c0_i32_0 : i32, i32
  }
  func.func @transform_2(%arg0: i32) -> (i32, i32) {
    %c0_i32 = arith.constant 0 : i32
    %c0_i32_0 = arith.constant 0 : i32
    %c0_i32_1 = arith.constant 0 : i32
    return %c0_i32, %c0_i32_0 : i32, i32
  }
  func.func @transform_3(%arg0: i32) -> (i32, i32, i32) {
    %c0_i32 = arith.constant 0 : i32
    %c0_i32_0 = arith.constant 0 : i32
    %c0_i32_1 = arith.constant 0 : i32
    %c0_i32_2 = arith.constant 0 : i32
    return %c0_i32, %c0_i32_0, %c0_i32_1 : i32, i32, i32
  }
  func.func @transform_4(%arg0: i32) -> (i32, i32) {
    %c0_i32 = arith.constant 0 : i32
    %c0_i32_0 = arith.constant 0 : i32
    %c0_i32_1 = arith.constant 0 : i32
    return %c0_i32, %c0_i32_0 : i32, i32
  }
  func.func @transform_5(%arg0: i32) -> (i32, i32, i32) {
    %c0_i32 = arith.constant 0 : i32
    %c0_i32_0 = arith.constant 0 : i32
    %c0_i32_1 = arith.constant 0 : i32
    return %arg0, %c0_i32, %c0_i32_0 : i32, i32, i32
  }
}

</mosaic_0001>

<llo_original>
// kernel: char_cnn_forward.1
$region0: #{char_cnn_forward.1}
  #allocation0 [shape = 'u32[]', space=smem, size = 0x4, offset = 0x4, fixed_abs, tag = 'smem constant byte address 0x4 - core index']
  #allocation1 [shape = 'u32[72,128]{1,0:T(1,128)}', space=vmem, size = 0x9000, scoped, tag = 'internal scratch']
  %s0 = inlined_call_operand.vmem [shape: bf16[2,90,56], index: 0, kind: input, shape index: {}]
  %s1 = inlined_call_operand.vmem [shape: bf16[56,256], index: 1, kind: input, shape index: {}]
  %s2 = inlined_call_operand.vmem [shape: f32[1,256], index: 2, kind: input, shape index: {}]
  %s3 = inlined_call_operand.vmem [shape: bf16[7,256,256], index: 3, kind: input, shape index: {}]
  %s4 = inlined_call_operand.vmem [shape: f32[1,256], index: 4, kind: input, shape index: {}]
  %s5 = inlined_call_operand.vmem [shape: f32[2,256,8], index: 5, kind: output, shape index: {}]
  %s6 = sld [smem:[#allocation0]]
  $region53: #{char_cnn_forward.1} parent=0
    _
  %s8 = ssub.s32 1, %s6
  %s9 = scalar_select 0, %s8, %s6
  loop: start=0, step=1, limit=4
  $region2: #{char_cnn_forward.1} parent=0 // loop_pre_header
    _
  $region3: #{char_cnn_forward.1} parent=0 // loop_header
    %s11 = sphi 0, %s15
    %p12 = scmp.ge.s32.totalorder %s11, 4
    %s21 = sphi 0, %s23
    %s24 = sphi 0, %s21
    %s25 = sphi 0, %s24
    %s41 = sphi 0, %s25
    %s45 = sphi 0, %s45
    %s47 = sphi 0, %s45
    %s48 = sphi 0, %s47
    %s62 = sphi 0, %s48
    %s66 = sphi 0, %s66
    %s68 = sphi 0, %s66
    %s69 = sphi 0, %s68
    %s83 = sphi 0, %s69
    %s87 = sphi 0, %s87
    %s89 = sphi 0, %s87
    %s90 = sphi 0, %s89
    %s104 = sphi 0, %s90
    %s108 = sphi 0, %s108
    %s110 = sphi 0, %s108
    %s111 = sphi 0, %s110
    %s125 = sphi 0, %s111
    %s131 = sphi 0, %s133
    %s134 = sphi 0, %s131
    %s135 = sphi 0, %s134
    %s151 = sphi 0, %s135
  $region4: #{char_cnn_forward.1} parent=0 // loop_header_branch
    %14 = sbr.rel (%p12) target = $region8
  $region5: #{char_cnn_forward.1} parent=0 // loop_body
    %s16 = ssub.s32 %s11, 1
    %s17 = ssub.s32 %s11, 2
    %s18 = sadd.s32 %s11, 1
    %s19 = ssub.s32 %s11, %s18
    %p20 = scmp.eq.s32.totalorder %s19, 0
    %s22 = sadd.s32 %s21, 1
    %s23 = scalar_select %p20, %s21, %s22
    %p26 = pneg %p20
    %p27 = scmp.eq.s32.totalorder %s11, 1
    %p28 = por %p26, %p27
    %p29 = scmp.ne.s32.totalorder %s21, %s24
    %p30 = scmp.eq.s32.totalorder %s11, 0
    %p31 = por %p29, %p30
    %p32 = scmp.ne.s32.totalorder %s21, %s24
    %p33 = scmp.eq.s32.totalorder %s16, 1
    %p34 = por %p32, %p33
    %p35 = scmp.ne.s32.totalorder %s24, %s25
    %p36 = scmp.eq.s32.totalorder %s16, 0
    %p37 = por %p35, %p36
    %p38 = scmp.ne.s32.totalorder %s24, %s25
    %p39 = scmp.eq.s32.totalorder %s17, 1
    %p40 = por %p38, %p39
    %p42 = scmp.ne.s32.totalorder %s25, %s41
    %p43 = scmp.eq.s32.totalorder %s17, 0
    %p44 = por %p42, %p43
    %s46 = sadd.s32 %s45, 1
    %p49 = scmp.eq.s32.totalorder %s11, 1
    %p50 = scmp.ne.s32.totalorder %s45, %s47
    %p51 = scmp.eq.s32.totalorder %s11, 0
    %p52 = por %p50, %p51
    %p53 = scmp.ne.s32.totalorder %s45, %s47
    %p54 = scmp.eq.s32.totalorder %s16, 1
    %p55 = por %p53, %p54
    %p56 = scmp.ne.s32.totalorder %s47, %s48
    %p57 = scmp.eq.s32.totalorder %s16, 0
    %p58 = por %p56, %p57
    %p59 = scmp.ne.s32.totalorder %s47, %s48
    %p60 = scmp.eq.s32.totalorder %s17, 1
    %p61 = por %p59, %p60
    %p63 = scmp.ne.s32.totalorder %s48, %s62
    %p64 = scmp.eq.s32.totalorder %s17, 0
    %p65 = por %p63, %p64
    %s67 = sadd.s32 %s66, 1
    %p70 = scmp.eq.s32.totalorder %s11, 1
    %p71 = scmp.ne.s32.totalorder %s66, %s68
    %p72 = scmp.eq.s32.totalorder %s11, 0
    %p73 = por %p71, %p72
    %p74 = scmp.ne.s32.totalorder %s66, %s68
    %p75 = scmp.eq.s32.totalorder %s16, 1
    %p76 = por %p74, %p75
    %p77 = scmp.ne.s32.totalorder %s68, %s69
    %p78 = scmp.eq.s32.totalorder %s16, 0
    %p79 = por %p77, %p78
    %p80 = scmp.ne.s32.totalorder %s68, %s69
    %p81 = scmp.eq.s32.totalorder %s17, 1
    %p82 = por %p80, %p81
    %p84 = scmp.ne.s32.totalorder %s69, %s83
    %p85 = scmp.eq.s32.totalorder %s17, 0
    %p86 = por %p84, %p85
    %s88 = sadd.s32 %s87, 1
    %p91 = scmp.eq.s32.totalorder %s11, 1
    %p92 = scmp.ne.s32.totalorder %s87, %s89
    %p93 = scmp.eq.s32.totalorder %s11, 0
    %p94 = por %p92, %p93
    %p95 = scmp.ne.s32.totalorder %s87, %s89
    %p96 = scmp.eq.s32.totalorder %s16, 1
    %p97 = por %p95, %p96
    %p98 = scmp.ne.s32.totalorder %s89, %s90
    %p99 = scmp.eq.s32.totalorder %s16, 0
    %p100 = por %p98, %p99
    %p101 = scmp.ne.s32.totalorder %s89, %s90
    %p102 = scmp.eq.s32.totalorder %s17, 1
    %p103 = por %p101, %p102
    %p105 = scmp.ne.s32.totalorder %s90, %s104
    %p106 = scmp.eq.s32.totalorder %s17, 0
    %p107 = por %p105, %p106
    %s109 = sadd.s32 %s108, 1
    %p112 = scmp.eq.s32.totalorder %s11, 1
    %p113 = scmp.ne.s32.totalorder %s108, %s110
    %p114 = scmp.eq.s32.totalorder %s11, 0
    %p115 = por %p113, %p114
    %p116 = scmp.ne.s32.totalorder %s108, %s110
    %p117 = scmp.eq.s32.totalorder %s16, 1
    %p118 = por %p116, %p117
    %p119 = scmp.ne.s32.totalorder %s110, %s111
    %p120 = scmp.eq.s32.totalorder %s16, 0
    %p121 = por %p119, %p120
    %p122 = scmp.ne.s32.totalorder %s110, %s111
    %p123 = scmp.eq.s32.totalorder %s17, 1
    %p124 = por %p122, %p123
    %p126 = scmp.ne.s32.totalorder %s111, %s125
    %p127 = scmp.eq.s32.totalorder %s17, 0
    %p128 = por %p126, %p127
    %s129 = ssub.s32 %s11, %s18
    %p130 = scmp.eq.s32.totalorder %s129, 0
    %s132 = sadd.s32 %s131, 1
    %s133 = scalar_select %p130, %s131, %s132
    %p136 = pneg %p130
    %p137 = scmp.eq.s32.totalorder %s11, 1
    %p138 = por %p136, %p137
    %p139 = scmp.ne.s32.totalorder %s131, %s134
    %p140 = scmp.eq.s32.totalorder %s11, 0
    %p141 = por %p139, %p140
    %p142 = scmp.ne.s32.totalorder %s131, %s134
    %p143 = scmp.eq.s32.totalorder %s16, 1
    %p144 = por %p142, %p143
    %p145 = scmp.ne.s32.totalorder %s134, %s135
    %p146 = scmp.eq.s32.totalorder %s16, 0
    %p147 = por %p145, %p146
    %p148 = scmp.ne.s32.totalorder %s134, %s135
    %p149 = scmp.eq.s32.totalorder %s17, 1
    %p150 = por %p148, %p149
    %p152 = scmp.ne.s32.totalorder %s135, %s151
    %p153 = scmp.eq.s32.totalorder %s17, 0
    %p154 = por %p152, %p153
    %p155 = scmp.le.s32.totalorder 1, %s11
    %p156 = scmp.lt.s32.totalorder %s11, 3
    %p157 = pnand %p155, %p156
    %p158 = pneg %p157
    // Predicated region
    $region9: #{char_cnn_forward.1} parent=5 // pred_check
      _
    $region10: #{char_cnn_forward.1} parent=5 // pred_check_branch
      %160 = sbr.rel (%p157) target = $region12
    $region11: #{char_cnn_forward.1} parent=5 // pred_region
      %s161 = ssub.s32 %s11, 1
      // Predicated region
      $region13: #{char_cnn_forward.1} parent=11 // pred_check
        %p162 = pneg %p58
      $region14: #{char_cnn_forward.1} parent=11 // pred_check_branch
        %164 = sbr.rel (%p162) target = $region16
      $region15: #{char_cnn_forward.1} parent=11 // pred_region
        _
      $region16: #{char_cnn_forward.1} parent=11 // pred_fallthru
        _
      // Predicated region
      $region17: #{char_cnn_forward.1} parent=11 // pred_check
        %p165 = pneg %p79
      $region18: #{char_cnn_forward.1} parent=11 // pred_check_branch
        %167 = sbr.rel (%p165) target = $region20
      $region19: #{char_cnn_forward.1} parent=11 // pred_region
        _
      $region20: #{char_cnn_forward.1} parent=11 // pred_fallthru
        _
      // Predicated region
      $region21: #{char_cnn_forward.1} parent=11 // pred_check
        %p168 = pneg %p100
      $region22: #{char_cnn_forward.1} parent=11 // pred_check_branch
        %170 = sbr.rel (%p168) target = $region24
      $region23: #{char_cnn_forward.1} parent=11 // pred_region
        _
      $region24: #{char_cnn_forward.1} parent=11 // pred_fallthru
        _
      // Predicated region
      $region25: #{char_cnn_forward.1} parent=11 // pred_check
        %p171 = pneg %p121
      $region26: #{char_cnn_forward.1} parent=11 // pred_check_branch
        %173 = sbr.rel (%p171) target = $region28
      $region27: #{char_cnn_forward.1} parent=11 // pred_region
        _
      $region28: #{char_cnn_forward.1} parent=11 // pred_fallthru
        _
    $region12: #{char_cnn_forward.1} parent=5 // pred_fallthru
      _
    %p174 = scmp.lt.s32.totalorder %s11, 2
    // Predicated region
    $region29: #{char_cnn_forward.1} parent=5 // pred_check
      %p175 = pneg %p174
    $region30: #{char_cnn_forward.1} parent=5 // pred_check_branch
      %177 = sbr.rel (%p175) target = $region32
    $region31: #{char_cnn_forward.1} parent=5 // pred_region
      // Predicated region
      $region33: #{char_cnn_forward.1} parent=31 // pred_check
        %p178 = pneg %p31
      $region34: #{char_cnn_forward.1} parent=31 // pred_check_branch
        %180 = sbr.rel (%p178) target = $region36
      $region35: #{char_cnn_forward.1} parent=31 // pred_region
        %p181 = scmp.lt.s32.totalorder %s11, 1
        %s182 = scalar_select %p181, %s11, 1
        %s183 = smul.addr %s182, 12
        %s184 = smul.addr %s183, 4
        %s185 = scalar_lea.vmem %s0, %s184
      $region36: #{char_cnn_forward.1} parent=31 // pred_fallthru
        _
    $region32: #{char_cnn_forward.1} parent=5 // pred_fallthru
      _
    %p186 = scmp.le.s32.totalorder 1, %s11
    %p187 = scmp.lt.s32.totalorder %s11, 3
    %p188 = pnand %p186, %p187
    %p189 = pneg %p188
    // Predicated region
    $region37: #{char_cnn_forward.1} parent=5 // pred_check
      _
    $region38: #{char_cnn_forward.1} parent=5 // pred_check_branch
      %191 = sbr.rel (%p188) target = $region40
    $region39: #{char_cnn_forward.1} parent=5 // pred_region
      %s192 = ssub.s32 %s11, 1
      %p193 = scmp.lt.s32.totalorder %s16, 1
      %s194 = scalar_select %p193, %s16, 1
      %s195 = smul.addr %s194, 12
      %s196 = smul.addr %s195, 4
      %s197 = scalar_lea.vmem %s0, %s196
      %p198 = pneg %p37
      %p199 = pneg %p34
      %p200 = pneg %p58
      %p201 = pneg %p55
      %p202 = pneg %p79
      %p203 = pneg %p76
      %p204 = pneg %p100
      %p205 = pneg %p97
      %p206 = pneg %p121
      %p207 = pneg %p118
      %p208 = pneg %p147
      %p209 = pneg %p144
      %p210 = scmp.lt.s32.totalorder %s16, 1
      %s211 = scalar_select %p210, %s16, 1
      %s212 = smul.addr %s211, 32
      %s213 = smul.addr %s212, 8
      %s214 = scalar_lea.vmem %s5, %s213
      %p215 = scmp.lt.s32.totalorder %s16, 1
      %s216 = scalar_select %p215, %s16, 1
      %s217 = smul.addr %s216, 12
      %s218 = smul.addr %s217, 4
      %s219 = scalar_lea.vmem %s0, %s218
      %p220 = scmp.lt.s32.totalorder %s16, 1
      %s221 = scalar_select %p220, %s16, 1
      %s222 = smul.addr %s221, 32
      %s223 = smul.addr %s222, 8
      %s224 = scalar_lea.vmem %s5, %s223
      %v226 = vld [vmem:[%s219] sm:$0xf]
      %v227 = vld [vmem:[%s219 + $0x4] sm:$0xf]
      %v228 = vld [vmem:[%s219 + $0x8] sm:$0xf]
      %v229 = vld [vmem:[%s219 + $0xc] sm:$0xf]
      %v230 = vld [vmem:[%s219 + $0x10] sm:$0xf]
      %v231 = vld [vmem:[%s219 + $0x14] sm:$0xf]
      %v232 = vld [vmem:[%s219 + $0x18] sm:$0xf]
      %v233 = vld [vmem:[%s219 + $0x1c] sm:$0xf]
      %v234 = vld [vmem:[%s219 + $0x20] sm:$0xf]
      %v235 = vld [vmem:[%s219 + $0x24] sm:$0xf]
      %v236 = vld [vmem:[%s219 + $0x28] sm:$0xf]
      %v237 = vld [vmem:[%s219 + $0x2c] sm:$0x1]
      %v238 = vld [vmem:[%s1] sm:$0xff]
      %v239 = vld [vmem:[%s1 + $0x8] sm:$0xff]
      %v240 = vld [vmem:[%s1 + $0x10] sm:$0xff]
      %v241 = vld [vmem:[%s1 + $0x18] sm:$0xff]
      %v242 = vld [vmem:[%s1 + $0x20] sm:$0xff]
      %v243 = vld [vmem:[%s1 + $0x28] sm:$0xff]
      %v244 = vld [vmem:[%s1 + $0x30] sm:$0xff]
      %v245 = vld [vmem:[%s2] sm:$0x3]
      %v247 = vperm.slane %v245, 0
      %v248 = vperm.slane %v245, 1
      %v263 = vunpack.c.l.b16 %v226
      %v264 = vunpack.c.l.b16 %v227
      %v265 = vunpack.c.l.b16 %v228
      %v266 = vunpack.c.l.b16 %v229
      %v267 = vunpack.c.l.b16 %v230
      %v268 = vunpack.c.l.b16 %v231
      %v269 = vunpack.c.l.b16 %v232
      %v270 = vunpack.c.l.b16 %v233
      %v271 = vunpack.c.l.b16 %v234
      %v272 = vunpack.c.l.b16 %v235
      %v273 = vunpack.c.l.b16 %v236
      %v274 = vunpack.c.l.b16 %v237
      %v275 = vpack.c.b16 %v264, %v263
      %v276 = vpack.c.b16 %v266, %v265
      %v277 = vpack.c.b16 %v268, %v267
      %v278 = vpack.c.b16 %v270, %v269
      %v279 = vpack.c.b16 %v272, %v271
      %v280 = vpack.c.b16 %v274, %v273
      %v288 = vunpack.c.l.b16 %v238
      %v289 = vunpack.c.h.b16 %v238
      %v290 = vunpack.c.l.b16 %v239
      %v291 = vunpack.c.h.b16 %v239
      %v292 = vunpack.c.l.b16 %v240
      %v293 = vunpack.c.h.b16 %v240
      %v294 = vunpack.c.l.b16 %v241
      %v295 = vunpack.c.h.b16 %v241
      %v296 = vunpack.c.l.b16 %v242
      %v297 = vunpack.c.h.b16 %v242
      %v298 = vunpack.c.l.b16 %v243
      %v299 = vunpack.c.h.b16 %v243
      %v300 = vunpack.c.l.b16 %v244
      %v301 = vunpack.c.h.b16 %v244
      %v302 = vpack.c.b16 %v290, %v288
      %v303 = vpack.c.b16 %v291, %v289
      %v304 = vpack.c.b16 %v294, %v292
      %v305 = vpack.c.b16 %v295, %v293
      %v306 = vpack.c.b16 %v298, %v296
      %v307 = vpack.c.b16 %v299, %v297
      %v308 = vpack.c.b16 %v300, %v300
      %v309 = vpack.c.b16 %v301, %v301
      %vm316 = vcmask 457728
      %v318 = vsel %vm316, %v275, 0
      %v321 = vsel %vm316, %v276, 0
      %v324 = vsel %vm316, %v277, 0
      %v327 = vsel %vm316, %v278, 0
      %v330 = vsel %vm316, %v279, 0
      %v333 = vsel %vm316, %v280, 0
      %vm335 = vcmask 1043456
      %v337 = vsel %vm335, %v308, 0
      %v340 = vsel %vm335, %v309, 0
      %342 = vmatpush.bf16.msra.mxu0 0
      %343 = vmatpush.bf16.msra.mxu0 0
      %344 = vmatpush.bf16.msra.mxu0 0
      %345 = vmatpush.bf16.msra.mxu0 0
      %346 = vmatpush.bf16.msra.mxu0 %v337
      %347 = vmatpush.bf16.msra.mxu0 %v306
      %348 = vmatpush.bf16.msra.mxu0 %v304
      %349 = vmatpush.bf16.msra.mxu0 %v302
      %350 = vmatmul.bf16.gmra.mxu0 %v318
      %v351 = vpop.f32.mrf.mxu0
      %v352 = vadd.f32 %v247, %v351
      %v353 = vpop.f32.mrf.mxu0
      %v354 = vadd.f32 %v247, %v353
      %355 = vmatmul.bf16.gmra.mxu0 %v321
      %v356 = vpop.f32.mrf.mxu0
      %v357 = vadd.f32 %v247, %v356
      %v358 = vpop.f32.mrf.mxu0
      %v359 = vadd.f32 %v247, %v358
      %360 = vmatmul.bf16.gmra.mxu0 %v324
      %v361 = vpop.f32.mrf.mxu0
      %v362 = vadd.f32 %v247, %v361
      %v363 = vpop.f32.mrf.mxu0
      %v364 = vadd.f32 %v247, %v363
      %365 = vmatmul.bf16.gmra.mxu0 %v327
      %v366 = vpop.f32.mrf.mxu0
      %v367 = vadd.f32 %v247, %v366
      %v368 = vpop.f32.mrf.mxu0
      %v369 = vadd.f32 %v247, %v368
      %370 = vmatmul.bf16.gmra.mxu0 %v330
      %v371 = vpop.f32.mrf.mxu0
      %v372 = vadd.f32 %v247, %v371
      %v373 = vpop.f32.mrf.mxu0
      %v374 = vadd.f32 %v247, %v373
      %375 = vmatmul.bf16.gmra.mxu0 %v333
      %v376 = vpop.f32.mrf.mxu0
      %v377 = vadd.f32 %v247, %v376
      %v378 = vpop.f32.mrf.mxu0
      %v379 = vadd.f32 %v247, %v378
      %380 = vdwg.mxu0
      %381 = vmatpush.bf16.msra.mxu0 0
      %382 = vmatpush.bf16.msra.mxu0 0
      %383 = vmatpush.bf16.msra.mxu0 0
      %384 = vmatpush.bf16.msra.mxu0 0
      %385 = vmatpush.bf16.msra.mxu0 %v340
      %386 = vmatpush.bf16.msra.mxu0 %v307
      %387 = vmatpush.bf16.msra.mxu0 %v305
      %388 = vmatpush.bf16.msra.mxu0 %v303
      %389 = vmatmul.bf16.gmra.mxu0 %v318
      %v390 = vpop.f32.mrf.mxu0
      %v391 = vadd.f32 %v248, %v390
      %v392 = vpop.f32.mrf.mxu0
      %v393 = vadd.f32 %v248, %v392
      %394 = vmatmul.bf16.gmra.mxu0 %v321
      %v395 = vpop.f32.mrf.mxu0
      %v396 = vadd.f32 %v248, %v395
      %v397 = vpop.f32.mrf.mxu0
      %v398 = vadd.f32 %v248, %v397
      %399 = vmatmul.bf16.gmra.mxu0 %v324
      %v400 = vpop.f32.mrf.mxu0
      %v401 = vadd.f32 %v248, %v400
      %v402 = vpop.f32.mrf.mxu0
      %v403 = vadd.f32 %v248, %v402
      %404 = vmatmul.bf16.gmra.mxu0 %v327
      %v405 = vpop.f32.mrf.mxu0
      %v406 = vadd.f32 %v248, %v405
      %v407 = vpop.f32.mrf.mxu0
      %v408 = vadd.f32 %v248, %v407
      %409 = vmatmul.bf16.gmra.mxu0 %v330
      %v410 = vpop.f32.mrf.mxu0
      %v411 = vadd.f32 %v248, %v410
      %v412 = vpop.f32.mrf.mxu0
      %v413 = vadd.f32 %v248, %v412
      %414 = vmatmul.bf16.gmra.mxu0 %v333
      %v415 = vpop.f32.mrf.mxu0
      %v416 = vadd.f32 %v248, %v415
      %v417 = vpop.f32.mrf.mxu0
      %v418 = vadd.f32 %v248, %v417
      %419 = vdwg.mxu0
      %v420 = vmax.f32 %v352, 0.0
      %v421 = vmax.f32 %v391, 0.0
      %v422 = vmax.f32 %v354, 0.0
      %v423 = vmax.f32 %v393, 0.0
      %v424 = vmax.f32 %v357, 0.0
      %v425 = vmax.f32 %v396, 0.0
      %v426 = vmax.f32 %v359, 0.0
      %v427 = vmax.f32 %v398, 0.0
      %v428 = vmax.f32 %v362, 0.0
      %v429 = vmax.f32 %v401, 0.0
      %v430 = vmax.f32 %v364, 0.0
      %v431 = vmax.f32 %v403, 0.0
      %v432 = vmax.f32 %v367, 0.0
      %v433 = vmax.f32 %v406, 0.0
      %v434 = vmax.f32 %v369, 0.0
      %v435 = vmax.f32 %v408, 0.0
      %v436 = vmax.f32 %v372, 0.0
      %v437 = vmax.f32 %v411, 0.0
      %v438 = vmax.f32 %v374, 0.0
      %v439 = vmax.f32 %v413, 0.0
      %v440 = vmax.f32 %v377, 0.0
      %v441 = vmax.f32 %v416, 0.0
      %v442 = vmax.f32 %v379, 0.0
      %v443 = vmax.f32 %v418, 0.0
      %v468 = vrot.slane %v421, 7
      %v469 = vrot.slane %v423, 7
      %v470 = vrot.slane %v425, 7
      %v471 = vrot.slane %v427, 7
      %v472 = vrot.slane %v429, 7
      %v473 = vrot.slane %v431, 7
      %v474 = vrot.slane %v433, 7
      %v475 = vrot.slane %v435, 7
      %v476 = vrot.slane %v437, 7
      %v477 = vrot.slane %v439, 7
      %v478 = vrot.slane %v441, 7
      %v479 = vrot.slane %v443, 7
      %vm480 = vcmask 1040384
      %v481 = vsel %vm480, %v420, %v468
      %vm482 = vcmask 1041409
      %v483 = vsel %vm482, %v420, %v468
      %v484 = vrot.slane %v483, 1
      %vm485 = vcmask 1042434
      %v486 = vsel %vm485, %v420, %v468
      %v487 = vrot.slane %v486, 2
      %vm488 = vcmask 1043459
      %v489 = vsel %vm488, %v420, %v468
      %v490 = vrot.slane %v489, 3
      %vm491 = vcmask 1044484
      %v492 = vsel %vm491, %v420, %v468
      %v493 = vrot.slane %v492, 4
      %vm494 = vcmask 1045509
      %v495 = vsel %vm494, %v420, %v468
      %v496 = vrot.slane %v495, 5
      %vm497 = vcmask 1046534
      %v498 = vsel %vm497, %v420, %v468
      %v499 = vrot.slane %v498, 6
      %vm500 = vcmask 1046528
      %v501 = vsel %vm500, %v468, %v420
      %v502 = vrot.slane %v501, 7
      %v503 = vsel %vm480, %v422, %v469
      %v504 = vsel %vm482, %v422, %v469
      %v505 = vrot.slane %v504, 1
      %v506 = vsel %vm485, %v422, %v469
      %v507 = vrot.slane %v506, 2
      %v508 = vsel %vm488, %v422, %v469
      %v509 = vrot.slane %v508, 3
      %v510 = vsel %vm491, %v422, %v469
      %v511 = vrot.slane %v510, 4
      %v512 = vsel %vm494, %v422, %v469
      %v513 = vrot.slane %v512, 5
      %v514 = vsel %vm497, %v422, %v469
      %v515 = vrot.slane %v514, 6
      %v516 = vsel %vm500, %v469, %v422
      %v517 = vrot.slane %v516, 7
      %v518 = vsel %vm480, %v424, %v470
      %v519 = vsel %vm482, %v424, %v470
      %v520 = vrot.slane %v519, 1
      %v521 = vsel %vm485, %v424, %v470
      %v522 = vrot.slane %v521, 2
      %v523 = vsel %vm488, %v424, %v470
      %v524 = vrot.slane %v523, 3
      %v525 = vsel %vm491, %v424, %v470
      %v526 = vrot.slane %v525, 4
      %v527 = vsel %vm494, %v424, %v470
      %v528 = vrot.slane %v527, 5
      %v529 = vsel %vm497, %v424, %v470
      %v530 = vrot.slane %v529, 6
      %v531 = vsel %vm500, %v470, %v424
      %v532 = vrot.slane %v531, 7
      %v533 = vsel %vm480, %v426, %v471
      %v534 = vsel %vm482, %v426, %v471
      %v535 = vrot.slane %v534, 1
      %v536 = vsel %vm485, %v426, %v471
      %v537 = vrot.slane %v536, 2
      %v538 = vsel %vm488, %v426, %v471
      %v539 = vrot.slane %v538, 3
      %v540 = vsel %vm491, %v426, %v471
      %v541 = vrot.slane %v540, 4
      %v542 = vsel %vm494, %v426, %v471
      %v543 = vrot.slane %v542, 5
      %v544 = vsel %vm497, %v426, %v471
      %v545 = vrot.slane %v544, 6
      %v546 = vsel %vm500, %v471, %v426
      %v547 = vrot.slane %v546, 7
      %v548 = vsel %vm480, %v428, %v472
      %v549 = vsel %vm482, %v428, %v472
      %v550 = vrot.slane %v549, 1
      %v551 = vsel %vm485, %v428, %v472
      %v552 = vrot.slane %v551, 2
      %v553 = vsel %vm488, %v428, %v472
      %v554 = vrot.slane %v553, 3
      %v555 = vsel %vm491, %v428, %v472
      %v556 = vrot.slane %v555, 4
      %v557 = vsel %vm494, %v428, %v472
      %v558 = vrot.slane %v557, 5
      %v559 = vsel %vm497, %v428, %v472
      %v560 = vrot.slane %v559, 6
      %v561 = vsel %vm500, %v472, %v428
      %v562 = vrot.slane %v561, 7
      %v563 = vsel %vm480, %v430, %v473
      %v564 = vsel %vm482, %v430, %v473
      %v565 = vrot.slane %v564, 1
      %v566 = vsel %vm485, %v430, %v473
      %v567 = vrot.slane %v566, 2
      %v568 = vsel %vm488, %v430, %v473
      %v569 = vrot.slane %v568, 3
      %v570 = vsel %vm491, %v430, %v473
      %v571 = vrot.slane %v570, 4
      %v572 = vsel %vm494, %v430, %v473
      %v573 = vrot.slane %v572, 5
      %v574 = vsel %vm497, %v430, %v473
      %v575 = vrot.slane %v574, 6
      %v576 = vsel %vm500, %v473, %v430
      %v577 = vrot.slane %v576, 7
      %v578 = vsel %vm480, %v432, %v474
      %v579 = vsel %vm482, %v432, %v474
      %v580 = vrot.slane %v579, 1
      %v581 = vsel %vm485, %v432, %v474
      %v582 = vrot.slane %v581, 2
      %v583 = vsel %vm488, %v432, %v474
      %v584 = vrot.slane %v583, 3
      %v585 = vsel %vm491, %v432, %v474
      %v586 = vrot.slane %v585, 4
      %v587 = vsel %vm494, %v432, %v474
      %v588 = vrot.slane %v587, 5
      %v589 = vsel %vm497, %v432, %v474
      %v590 = vrot.slane %v589, 6
      %v591 = vsel %vm500, %v474, %v432
      %v592 = vrot.slane %v591, 7
      %v593 = vsel %vm480, %v434, %v475
      %v594 = vsel %vm482, %v434, %v475
      %v595 = vrot.slane %v594, 1
      %v596 = vsel %vm485, %v434, %v475
      %v597 = vrot.slane %v596, 2
      %v598 = vsel %vm488, %v434, %v475
      %v599 = vrot.slane %v598, 3
      %v600 = vsel %vm491, %v434, %v475
      %v601 = vrot.slane %v600, 4
      %v602 = vsel %vm494, %v434, %v475
      %v603 = vrot.slane %v602, 5
      %v604 = vsel %vm497, %v434, %v475
      %v605 = vrot.slane %v604, 6
      %v606 = vsel %vm500, %v475, %v434
      %v607 = vrot.slane %v606, 7
      %v608 = vsel %vm480, %v436, %v476
      %v609 = vsel %vm482, %v436, %v476
      %v610 = vrot.slane %v609, 1
      %v611 = vsel %vm485, %v436, %v476
      %v612 = vrot.slane %v611, 2
      %v613 = vsel %vm488, %v436, %v476
      %v614 = vrot.slane %v613, 3
      %v615 = vsel %vm491, %v436, %v476
      %v616 = vrot.slane %v615, 4
      %v617 = vsel %vm494, %v436, %v476
      %v618 = vrot.slane %v617, 5
      %v619 = vsel %vm497, %v436, %v476
      %v620 = vrot.slane %v619, 6
      %v621 = vsel %vm500, %v476, %v436
      %v622 = vrot.slane %v621, 7
      %v623 = vsel %vm480, %v438, %v477
      %v624 = vsel %vm482, %v438, %v477
      %v625 = vrot.slane %v624, 1
      %v626 = vsel %vm485, %v438, %v477
      %v627 = vrot.slane %v626, 2
      %v628 = vsel %vm488, %v438, %v477
      %v629 = vrot.slane %v628, 3
      %v630 = vsel %vm491, %v438, %v477
      %v631 = vrot.slane %v630, 4
      %v632 = vsel %vm494, %v438, %v477
      %v633 = vrot.slane %v632, 5
      %v634 = vsel %vm497, %v438, %v477
      %v635 = vrot.slane %v634, 6
      %v636 = vsel %vm500, %v477, %v438
      %v637 = vrot.slane %v636, 7
      %v638 = vsel %vm480, %v440, %v478
      %v639 = vsel %vm482, %v440, %v478
      %v640 = vrot.slane %v639, 1
      %v641 = vsel %vm485, %v440, %v478
      %v642 = vrot.slane %v641, 2
      %v643 = vsel %vm488, %v440, %v478
      %v644 = vrot.slane %v643, 3
      %v645 = vsel %vm491, %v440, %v478
      %v646 = vrot.slane %v645, 4
      %v647 = vsel %vm494, %v440, %v478
      %v648 = vrot.slane %v647, 5
      %v649 = vsel %vm497, %v440, %v478
      %v650 = vrot.slane %v649, 6
      %v651 = vsel %vm500, %v478, %v440
      %v652 = vrot.slane %v651, 7
      %v653 = vsel %vm480, %v442, %v479
      %v654 = vsel %vm482, %v442, %v479
      %v655 = vrot.slane %v654, 1
      %656 = vst [vmem:[#allocation1] ss:$9 sm:$0xff] %v481
      %s657 = scalar_lea.vmem [#allocation1], 1
      %658 = vst [vmem:[%s657] ss:$9 sm:$0xff] %v484
      %s659 = scalar_lea.vmem [#allocation1], 2
      %660 = vst [vmem:[%s659] ss:$9 sm:$0xff] %v487
      %v661 = vld [vmem:[#allocation1] sm:$0xff]
      %v662 = vld [vmem:[#allocation1 + $0x9] sm:$0xff]
      %663 = vst [vmem:[#allocation1] ss:$9 sm:$0xff] %v490
      %664 = vst [vmem:[%s657] ss:$9 sm:$0xff] %v493
      %665 = vst [vmem:[%s659] ss:$9 sm:$0xff] %v496
      %v666 = vld [vmem:[#allocation1] sm:$0xff]
      %v667 = vld [vmem:[#allocation1 + $0x9] sm:$0xff]
      %668 = vst [vmem:[#allocation1] ss:$9 sm:$0xff] %v499
      %669 = vst [vmem:[%s657] ss:$9 sm:$0xff] %v502
      %670 = vst [vmem:[%s659] ss:$9 sm:$0xff] %v503
      %v671 = vld [vmem:[#allocation1] sm:$0xff]
      %v672 = vld [vmem:[#allocation1 + $0x9] sm:$0xff]
      %673 = vst [vmem:[#allocation1] ss:$9 sm:$0xff] %v505
      %674 = vst [vmem:[%s657] ss:$9 sm:$0xff] %v507
      %675 = vst [vmem:[%s659] ss:$9 sm:$0xff] %v509
      %v676 = vld [vmem:[#allocation1] sm:$0xff]
      %v677 = vld [vmem:[#allocation1 + $0x9] sm:$0xff]
      %678 = vst [vmem:[#allocation1] ss:$9 sm:$0xff] %v511
      %679 = vst [vmem:[%s657] ss:$9 sm:$0xff] %v513
      %680 = vst [vmem:[%s659] ss:$9 sm:$0xff] %v515
      %v681 = vld [vmem:[#allocation1] sm:$0xff]
      %v682 = vld [vmem:[#allocation1 + $0x9] sm:$0xff]
      %683 = vst [vmem:[#allocation1] ss:$9 sm:$0xff] %v517
      %684 = vst [vmem:[%s657] ss:$9 sm:$0xff] %v518
      %685 = vst [vmem:[%s659] ss:$9 sm:$0xff] %v520
      %v686 = vld [vmem:[#allocation1] sm:$0xff]
      %v687 = vld [vmem:[#allocation1 + $0x9] sm:$0xff]
      %688 = vst [vmem:[#allocation1] ss:$9 sm:$0xff] %v522
      %689 = vst [vmem:[%s657] ss:$9 sm:$0xff] %v524
      %690 = vst [vmem:[%s659] ss:$9 sm:$0xff] %v526
      %v691 = vld [vmem:[#allocation1] sm:$0xff]
      %v692 = vld [vmem:[#allocation1 + $0x9] sm:$0xff]
      %693 = vst [vmem:[#allocation1] ss:$9 sm:$0xff] %v528
      %694 = vst [vmem:[%s657] ss:$9 sm:$0xff] %v530
      %695 = vst [vmem:[%s659] ss:$9 sm:$0xff] %v532
      %v696 = vld [vmem:[#allocation1] sm:$0xff]
      %v697 = vld [vmem:[#allocation1 + $0x9] sm:$0xff]
      %698 = vst [vmem:[#allocation1] ss:$9 sm:$0xff] %v533
      %699 = vst [vmem:[%s657] ss:$9 sm:$0xff] %v535
      %700 = vst [vmem:[%s659] ss:$9 sm:$0xff] %v537
      %v701 = vld [vmem:[#allocation1] sm:$0xff]
      %v702 = vld [vmem:[#allocation1 + $0x9] sm:$0xff]
      %703 = vst [vmem:[#allocation1] ss:$9 sm:$0xff] %v539
      %704 = vst [vmem:[%s657] ss:$9 sm:$0xff] %v541
      %705 = vst [vmem:[%s659] ss:$9 sm:$0xff] %v543
      %v706 = vld [vmem:[#allocation1] sm:$0xff]
      %v707 = vld [vmem:[#allocation1 + $0x9] sm:$0xff]
      %708 = vst [vmem:[#allocation1] ss:$9 sm:$0xff] %v545
      %709 = vst [vmem:[%s657] ss:$9 sm:$0xff] %v547
      %710 = vst [vmem:[%s659] ss:$9 sm:$0xff] %v548
      %v711 = vld [vmem:[#allocation1] sm:$0xff]
      %v712 = vld [vmem:[#allocation1 + $0x9] sm:$0xff]
      %713 = vst [vmem:[#allocation1] ss:$9 sm:$0xff] %v550
      %714 = vst [vmem:[%s657] ss:$9 sm:$0xff] %v552
      %715 = vst [vmem:[%s659] ss:$9 sm:$0xff] %v554
      %v716 = vld [vmem:[#allocation1] sm:$0xff]
      %v717 = vld [vmem:[#allocation1 + $0x9] sm:$0xff]
      %718 = vst [vmem:[#allocation1] ss:$9 sm:$0xff] %v556
      %719 = vst [vmem:[%s657] ss:$9 sm:$0xff] %v558
      %720 = vst [vmem:[%s659] ss:$9 sm:$0xff] %v560
      %v721 = vld [vmem:[#allocation1] sm:$0xff]
      %v722 = vld [vmem:[#allocation1 + $0x9] sm:$0xff]
      %723 = vst [vmem:[#allocation1] ss:$9 sm:$0xff] %v562
      %724 = vst [vmem:[%s657] ss:$9 sm:$0xff] %v563
      %725 = vst [vmem:[%s659] ss:$9 sm:$0xff] %v565
      %v726 = vld [vmem:[#allocation1] sm:$0xff]
      %v727 = vld [vmem:[#allocation1 + $0x9] sm:$0xff]
      %728 = vst [vmem:[#allocation1] ss:$9 sm:$0xff] %v567
      %729 = vst [vmem:[%s657] ss:$9 sm:$0xff] %v569
      %730 = vst [vmem:[%s659] ss:$9 sm:$0xff] %v571
      %v731 = vld [vmem:[#allocation1] sm:$0xff]
      %v732 = vld [vmem:[#allocation1 + $0x9] sm:$0xff]
      %733 = vst [vmem:[#allocation1] ss:$9 sm:$0xff] %v573
      %734 = vst [vmem:[%s657] ss:$9 sm:$0xff] %v575
      %735 = vst [vmem:[%s659] ss:$9 sm:$0xff] %v577
      %v736 = vld [vmem:[#allocation1] sm:$0xff]
      %v737 = vld [vmem:[#allocation1 + $0x9] sm:$0xff]
      %738 = vst [vmem:[#allocation1] ss:$9 sm:$0xff] %v578
      %739 = vst [vmem:[%s657] ss:$9 sm:$0xff] %v580
      %740 = vst [vmem:[%s659] ss:$9 sm:$0xff] %v582
      %v741 = vld [vmem:[#allocation1] sm:$0xff]
      %v742 = vld [vmem:[#allocation1 + $0x9] sm:$0xff]
      %743 = vst [vmem:[#allocation1] ss:$9 sm:$0xff] %v584
      %744 = vst [vmem:[%s657] ss:$9 sm:$0xff] %v586
      %745 = vst [vmem:[%s659] ss:$9 sm:$0xff] %v588
      %v746 = vld [vmem:[#allocation1] sm:$0xff]
      %v747 = vld [vmem:[#allocation1 + $0x9] sm:$0xff]
      %748 = vst [vmem:[#allocation1] ss:$9 sm:$0xff] %v590
      %749 = vst [vmem:[%s657] ss:$9 sm:$0xff] %v592
      %750 = vst [vmem:[%s659] ss:$9 sm:$0xff] %v593
      %v751 = vld [vmem:[#allocation1] sm:$0xff]
      %v752 = vld [vmem:[#allocation1 + $0x9] sm:$0xff]
      %753 = vst [vmem:[#allocation1] ss:$9 sm:$0xff] %v595
      %754 = vst [vmem:[%s657] ss:$9 sm:$0xff] %v597
      %755 = vst [vmem:[%s659] ss:$9 sm:$0xff] %v599
      %v756 = vld [vmem:[#allocation1] sm:$0xff]
      %v757 = vld [vmem:[#allocation1 + $0x9] sm:$0xff]
      %758 = vst [vmem:[#allocation1] ss:$9 sm:$0xff] %v601
      %759 = vst [vmem:[%s657] ss:$9 sm:$0xff] %v603
      %760 = vst [vmem:[%s659] ss:$9 sm:$0xff] %v605
      %v761 = vld [vmem:[#allocation1] sm:$0xff]
      %v762 = vld [vmem:[#allocation1 + $0x9] sm:$0xff]
      %763 = vst [vmem:[#allocation1] ss:$9 sm:$0xff] %v607
      %764 = vst [vmem:[%s657] ss:$9 sm:$0xff] %v608
      %765 = vst [vmem:[%s659] ss:$9 sm:$0xff] %v610
      %v766 = vld [vmem:[#allocation1] sm:$0xff]
      %v767 = vld [vmem:[#allocation1 + $0x9] sm:$0xff]
      %768 = vst [vmem:[#allocation1] ss:$9 sm:$0xff] %v612
      %769 = vst [vmem:[%s657] ss:$9 sm:$0xff] %v614
      %770 = vst [vmem:[%s659] ss:$9 sm:$0xff] %v616
      %v771 = vld [vmem:[#allocation1] sm:$0xff]
      %v772 = vld [vmem:[#allocation1 + $0x9] sm:$0xff]
      %773 = vst [vmem:[#allocation1] ss:$9 sm:$0xff] %v618
      %774 = vst [vmem:[%s657] ss:$9 sm:$0xff] %v620
      %775 = vst [vmem:[%s659] ss:$9 sm:$0xff] %v622
      %v776 = vld [vmem:[#allocation1] sm:$0xff]
      %v777 = vld [vmem:[#allocation1 + $0x9] sm:$0xff]
      %778 = vst [vmem:[#allocation1] ss:$9 sm:$0xff] %v623
      %779 = vst [vmem:[%s657] ss:$9 sm:$0xff] %v625
      %780 = vst [vmem:[%s659] ss:$9 sm:$0xff] %v627
      %v781 = vld [vmem:[#allocation1] sm:$0xff]
      %v782 = vld [vmem:[#allocation1 + $0x9] sm:$0xff]
      %783 = vst [vmem:[#allocation1] ss:$9 sm:$0xff] %v629
      %784 = vst [vmem:[%s657] ss:$9 sm:$0xff] %v631
      %785 = vst [vmem:[%s659] ss:$9 sm:$0xff] %v633
      %v786 = vld [vmem:[#allocation1] sm:$0xff]
      %v787 = vld [vmem:[#allocation1 + $0x9] sm:$0xff]
      %788 = vst [vmem:[#allocation1] ss:$9 sm:$0xff] %v635
      %789 = vst [vmem:[%s657] ss:$9 sm:$0xff] %v637
      %790 = vst [vmem:[%s659] ss:$9 sm:$0xff] %v638
      %v791 = vld [vmem:[#allocation1] sm:$0xff]
      %v792 = vld [vmem:[#allocation1 + $0x9] sm:$0xff]
      %793 = vst [vmem:[#allocation1] ss:$9 sm:$0xff] %v640
      %794 = vst [vmem:[%s657] ss:$9 sm:$0xff] %v642
      %795 = vst [vmem:[%s659] ss:$9 sm:$0xff] %v644
      %v796 = vld [vmem:[#allocation1] sm:$0xff]
      %v797 = vld [vmem:[#allocation1 + $0x9] sm:$0xff]
      %798 = vst [vmem:[#allocation1] ss:$9 sm:$0xff] %v646
      %799 = vst [vmem:[%s657] ss:$9 sm:$0xff] %v648
      %800 = vst [vmem:[%s659] ss:$9 sm:$0xff] %v650
      %v801 = vld [vmem:[#allocation1] sm:$0xff]
      %v802 = vld [vmem:[#allocation1 + $0x9] sm:$0xff]
      %803 = vst [vmem:[#allocation1] ss:$9 sm:$0xff] %v652
      %804 = vst [vmem:[%s657] ss:$9 sm:$0xff] %v653
      %805 = vst [vmem:[%s659] ss:$9 sm:$0xff] %v655
      %v806 = vld [vmem:[#allocation1] sm:$0xff]
      %v807 = vld [vmem:[#allocation1 + $0x9] sm:$0xff]
      %vm868 = vcmask 1042432
      %v869 = vsel %vm868, %v661, -inf
      %v870 = vrot.slane %v869, 4
      %v871 = vmax.f32 %v869, %v870
      %v872 = vrot.slane %v871, 2
      %v873 = vmax.f32 %v871, %v872
      %v874 = vrot.slane %v873, 1
      %v875 = vmax.f32 %v873, %v874
      %v876 = vsel %vm868, %v662, -inf
      %v877 = vrot.slane %v876, 4
      %v878 = vmax.f32 %v876, %v877
      %v879 = vrot.slane %v878, 2
      %v880 = vmax.f32 %v878, %v879
      %v881 = vrot.slane %v880, 1
      %v882 = vmax.f32 %v880, %v881
      %v883 = vsel %vm868, %v666, -inf
      %v884 = vrot.slane %v883, 4
      %v885 = vmax.f32 %v883, %v884
      %v886 = vrot.slane %v885, 2
      %v887 = vmax.f32 %v885, %v886
      %v888 = vrot.slane %v887, 1
      %v889 = vmax.f32 %v887, %v888
      %v890 = vsel %vm868, %v667, -inf
      %v891 = vrot.slane %v890, 4
      %v892 = vmax.f32 %v890, %v891
      %v893 = vrot.slane %v892, 2
      %v894 = vmax.f32 %v892, %v893
      %v895 = vrot.slane %v894, 1
      %v896 = vmax.f32 %v894, %v895
      %v897 = vsel %vm868, %v671, -inf
      %v898 = vrot.slane %v897, 4
      %v899 = vmax.f32 %v897, %v898
      %v900 = vrot.slane %v899, 2
      %v901 = vmax.f32 %v899, %v900
      %v902 = vrot.slane %v901, 1
      %v903 = vmax.f32 %v901, %v902
      %v904 = vsel %vm868, %v672, -inf
      %v905 = vrot.slane %v904, 4
      %v906 = vmax.f32 %v904, %v905
      %v907 = vrot.slane %v906, 2
      %v908 = vmax.f32 %v906, %v907
      %v909 = vrot.slane %v908, 1
      %v910 = vmax.f32 %v908, %v909
      %v911 = vsel %vm868, %v676, -inf
      %v912 = vrot.slane %v911, 4
      %v913 = vmax.f32 %v911, %v912
      %v914 = vrot.slane %v913, 2
      %v915 = vmax.f32 %v913, %v914
      %v916 = vrot.slane %v915, 1
      %v917 = vmax.f32 %v915, %v916
      %v918 = vsel %vm868, %v677, -inf
      %v919 = vrot.slane %v918, 4
      %v920 = vmax.f32 %v918, %v919
      %v921 = vrot.slane %v920, 2
      %v922 = vmax.f32 %v920, %v921
      %v923 = vrot.slane %v922, 1
      %v924 = vmax.f32 %v922, %v923
      %v925 = vsel %vm868, %v681, -inf
      %v926 = vrot.slane %v925, 4
      %v927 = vmax.f32 %v925, %v926
      %v928 = vrot.slane %v927, 2
      %v929 = vmax.f32 %v927, %v928
      %v930 = vrot.slane %v929, 1
      %v931 = vmax.f32 %v929, %v930
      %v932 = vsel %vm868, %v682, -inf
      %v933 = vrot.slane %v932, 4
      %v934 = vmax.f32 %v932, %v933
      %v935 = vrot.slane %v934, 2
      %v936 = vmax.f32 %v934, %v935
      %v937 = vrot.slane %v936, 1
      %v938 = vmax.f32 %v936, %v937
      %v939 = vsel %vm868, %v686, -inf
      %v940 = vrot.slane %v939, 4
      %v941 = vmax.f32 %v939, %v940
      %v942 = vrot.slane %v941, 2
      %v943 = vmax.f32 %v941, %v942
      %v944 = vrot.slane %v943, 1
      %v945 = vmax.f32 %v943, %v944
      %v946 = vsel %vm868, %v687, -inf
      %v947 = vrot.slane %v946, 4
      %v948 = vmax.f32 %v946, %v947
      %v949 = vrot.slane %v948, 2
      %v950 = vmax.f32 %v948, %v949
      %v951 = vrot.slane %v950, 1
      %v952 = vmax.f32 %v950, %v951
      %v953 = vsel %vm868, %v691, -inf
      %v954 = vrot.slane %v953, 4
      %v955 = vmax.f32 %v953, %v954
      %v956 = vrot.slane %v955, 2
      %v957 = vmax.f32 %v955, %v956
      %v958 = vrot.slane %v957, 1
      %v959 = vmax.f32 %v957, %v958
      %v960 = vsel %vm868, %v692, -inf
      %v961 = vrot.slane %v960, 4
      %v962 = vmax.f32 %v960, %v961
      %v963 = vrot.slane %v962, 2
      %v964 = vmax.f32 %v962, %v963
      %v965 = vrot.slane %v964, 1
      %v966 = vmax.f32 %v964, %v965
      %v967 = vsel %vm868, %v696, -inf
      %v968 = vrot.slane %v967, 4
      %v969 = vmax.f32 %v967, %v968
      %v970 = vrot.slane %v969, 2
      %v971 = vmax.f32 %v969, %v970
      %v972 = vrot.slane %v971, 1
      %v973 = vmax.f32 %v971, %v972
      %v974 = vsel %vm868, %v697, -inf
      %v975 = vrot.slane %v974, 4
      %v976 = vmax.f32 %v974, %v975
      %v977 = vrot.slane %v976, 2
      %v978 = vmax.f32 %v976, %v977
      %v979 = vrot.slane %v978, 1
      %v980 = vmax.f32 %v978, %v979
      %v981 = vsel %vm868, %v701, -inf
      %v982 = vrot.slane %v981, 4
      %v983 = vmax.f32 %v981, %v982
      %v984 = vrot.slane %v983, 2
      %v985 = vmax.f32 %v983, %v984
      %v986 = vrot.slane %v985, 1
      %v987 = vmax.f32 %v985, %v986
      %v988 = vsel %vm868, %v702, -inf
      %v989 = vrot.slane %v988, 4
      %v990 = vmax.f32 %v988, %v989
      %v991 = vrot.slane %v990, 2
      %v992 = vmax.f32 %v990, %v991
      %v993 = vrot.slane %v992, 1
      %v994 = vmax.f32 %v992, %v993
      %v995 = vsel %vm868, %v706, -inf
      %v996 = vrot.slane %v995, 4
      %v997 = vmax.f32 %v995, %v996
      %v998 = vrot.slane %v997, 2
      %v999 = vmax.f32 %v997, %v998
      %v1000 = vrot.slane %v999, 1
      %v1001 = vmax.f32 %v999, %v1000
      %v1002 = vsel %vm868, %v707, -inf
      %v1003 = vrot.slane %v1002, 4
      %v1004 = vmax.f32 %v1002, %v1003
      %v1005 = vrot.slane %v1004, 2
      %v1006 = vmax.f32 %v1004, %v1005
      %v1007 = vrot.slane %v1006, 1
      %v1008 = vmax.f32 %v1006, %v1007
      %v1009 = vsel %vm868, %v711, -inf
      %v1010 = vrot.slane %v1009, 4
      %v1011 = vmax.f32 %v1009, %v1010
      %v1012 = vrot.slane %v1011, 2
      %v1013 = vmax.f32 %v1011, %v1012
      %v1014 = vrot.slane %v1013, 1
      %v1015 = vmax.f32 %v1013, %v1014
      %v1016 = vsel %vm868, %v712, -inf
      %v1017 = vrot.slane %v1016, 4
      %v1018 = vmax.f32 %v1016, %v1017
      %v1019 = vrot.slane %v1018, 2
      %v1020 = vmax.f32 %v1018, %v1019
      %v1021 = vrot.slane %v1020, 1
      %v1022 = vmax.f32 %v1020, %v1021
      %v1023 = vsel %vm868, %v716, -inf
      %v1024 = vrot.slane %v1023, 4
      %v1025 = vmax.f32 %v1023, %v1024
      %v1026 = vrot.slane %v1025, 2
      %v1027 = vmax.f32 %v1025, %v1026
      %v1028 = vrot.slane %v1027, 1
      %v1029 = vmax.f32 %v1027, %v1028
      %v1030 = vsel %vm868, %v717, -inf
      %v1031 = vrot.slane %v1030, 4
      %v1032 = vmax.f32 %v1030, %v1031
      %v1033 = vrot.slane %v1032, 2
      %v1034 = vmax.f32 %v1032, %v1033
      %v1035 = vrot.slane %v1034, 1
      %v1036 = vmax.f32 %v1034, %v1035
      %v1037 = vsel %vm868, %v721, -inf
      %v1038 = vrot.slane %v1037, 4
      %v1039 = vmax.f32 %v1037, %v1038
      %v1040 = vrot.slane %v1039, 2
      %v1041 = vmax.f32 %v1039, %v1040
      %v1042 = vrot.slane %v1041, 1
      %v1043 = vmax.f32 %v1041, %v1042
      %v1044 = vsel %vm868, %v722, -inf
      %v1045 = vrot.slane %v1044, 4
      %v1046 = vmax.f32 %v1044, %v1045
      %v1047 = vrot.slane %v1046, 2
      %v1048 = vmax.f32 %v1046, %v1047
      %v1049 = vrot.slane %v1048, 1
      %v1050 = vmax.f32 %v1048, %v1049
      %v1051 = vsel %vm868, %v726, -inf
      %v1052 = vrot.slane %v1051, 4
      %v1053 = vmax.f32 %v1051, %v1052
      %v1054 = vrot.slane %v1053, 2
      %v1055 = vmax.f32 %v1053, %v1054
      %v1056 = vrot.slane %v1055, 1
      %v1057 = vmax.f32 %v1055, %v1056
      %v1058 = vsel %vm868, %v727, -inf
      %v1059 = vrot.slane %v1058, 4
      %v1060 = vmax.f32 %v1058, %v1059
      %v1061 = vrot.slane %v1060, 2
      %v1062 = vmax.f32 %v1060, %v1061
      %v1063 = vrot.slane %v1062, 1
      %v1064 = vmax.f32 %v1062, %v1063
      %v1065 = vsel %vm868, %v731, -inf
      %v1066 = vrot.slane %v1065, 4
      %v1067 = vmax.f32 %v1065, %v1066
      %v1068 = vrot.slane %v1067, 2
      %v1069 = vmax.f32 %v1067, %v1068
      %v1070 = vrot.slane %v1069, 1
      %v1071 = vmax.f32 %v1069, %v1070
      %v1072 = vsel %vm868, %v732, -inf
      %v1073 = vrot.slane %v1072, 4
      %v1074 = vmax.f32 %v1072, %v1073
      %v1075 = vrot.slane %v1074, 2
      %v1076 = vmax.f32 %v1074, %v1075
      %v1077 = vrot.slane %v1076, 1
      %v1078 = vmax.f32 %v1076, %v1077
      %v1079 = vsel %vm868, %v736, -inf
      %v1080 = vrot.slane %v1079, 4
      %v1081 = vmax.f32 %v1079, %v1080
      %v1082 = vrot.slane %v1081, 2
      %v1083 = vmax.f32 %v1081, %v1082
      %v1084 = vrot.slane %v1083, 1
      %v1085 = vmax.f32 %v1083, %v1084
      %v1086 = vsel %vm868, %v737, -inf
      %v1087 = vrot.slane %v1086, 4
      %v1088 = vmax.f32 %v1086, %v1087
      %v1089 = vrot.slane %v1088, 2
      %v1090 = vmax.f32 %v1088, %v1089
      %v1091 = vrot.slane %v1090, 1
      %v1092 = vmax.f32 %v1090, %v1091
      %v1093 = vsel %vm868, %v741, -inf
      %v1094 = vrot.slane %v1093, 4
      %v1095 = vmax.f32 %v1093, %v1094
      %v1096 = vrot.slane %v1095, 2
      %v1097 = vmax.f32 %v1095, %v1096
      %v1098 = vrot.slane %v1097, 1
      %v1099 = vmax.f32 %v1097, %v1098
      %v1100 = vsel %vm868, %v742, -inf
      %v1101 = vrot.slane %v1100, 4
      %v1102 = vmax.f32 %v1100, %v1101
      %v1103 = vrot.slane %v1102, 2
      %v1104 = vmax.f32 %v1102, %v1103
      %v1105 = vrot.slane %v1104, 1
      %v1106 = vmax.f32 %v1104, %v1105
      %v1107 = vsel %vm868, %v746, -inf
      %v1108 = vrot.slane %v1107, 4
      %v1109 = vmax.f32 %v1107, %v1108
      %v1110 = vrot.slane %v1109, 2
      %v1111 = vmax.f32 %v1109, %v1110
      %v1112 = vrot.slane %v1111, 1
      %v1113 = vmax.f32 %v1111, %v1112
      %v1114 = vsel %vm868, %v747, -inf
      %v1115 = vrot.slane %v1114, 4
      %v1116 = vmax.f32 %v1114, %v1115
      %v1117 = vrot.slane %v1116, 2
      %v1118 = vmax.f32 %v1116, %v1117
      %v1119 = vrot.slane %v1118, 1
      %v1120 = vmax.f32 %v1118, %v1119
      %v1121 = vsel %vm868, %v751, -inf
      %v1122 = vrot.slane %v1121, 4
      %v1123 = vmax.f32 %v1121, %v1122
      %v1124 = vrot.slane %v1123, 2
      %v1125 = vmax.f32 %v1123, %v1124
      %v1126 = vrot.slane %v1125, 1
      %v1127 = vmax.f32 %v1125, %v1126
      %v1128 = vsel %vm868, %v752, -inf
      %v1129 = vrot.slane %v1128, 4
      %v1130 = vmax.f32 %v1128, %v1129
      %v1131 = vrot.slane %v1130, 2
      %v1132 = vmax.f32 %v1130, %v1131
      %v1133 = vrot.slane %v1132, 1
      %v1134 = vmax.f32 %v1132, %v1133
      %v1135 = vsel %vm868, %v756, -inf
      %v1136 = vrot.slane %v1135, 4
      %v1137 = vmax.f32 %v1135, %v1136
      %v1138 = vrot.slane %v1137, 2
      %v1139 = vmax.f32 %v1137, %v1138
      %v1140 = vrot.slane %v1139, 1
      %v1141 = vmax.f32 %v1139, %v1140
      %v1142 = vsel %vm868, %v757, -inf
      %v1143 = vrot.slane %v1142, 4
      %v1144 = vmax.f32 %v1142, %v1143
      %v1145 = vrot.slane %v1144, 2
      %v1146 = vmax.f32 %v1144, %v1145
      %v1147 = vrot.slane %v1146, 1
      %v1148 = vmax.f32 %v1146, %v1147
      %v1149 = vsel %vm868, %v761, -inf
      %v1150 = vrot.slane %v1149, 4
      %v1151 = vmax.f32 %v1149, %v1150
      %v1152 = vrot.slane %v1151, 2
      %v1153 = vmax.f32 %v1151, %v1152
      %v1154 = vrot.slane %v1153, 1
      %v1155 = vmax.f32 %v1153, %v1154
      %v1156 = vsel %vm868, %v762, -inf
      %v1157 = vrot.slane %v1156, 4
      %v1158 = vmax.f32 %v1156, %v1157
      %v1159 = vrot.slane %v1158, 2
      %v1160 = vmax.f32 %v1158, %v1159
      %v1161 = vrot.slane %v1160, 1
      %v1162 = vmax.f32 %v1160, %v1161
      %v1163 = vsel %vm868, %v766, -inf
      %v1164 = vrot.slane %v1163, 4
      %v1165 = vmax.f32 %v1163, %v1164
      %v1166 = vrot.slane %v1165, 2
      %v1167 = vmax.f32 %v1165, %v1166
      %v1168 = vrot.slane %v1167, 1
      %v1169 = vmax.f32 %v1167, %v1168
      %v1170 = vsel %vm868, %v767, -inf
      %v1171 = vrot.slane %v1170, 4
      %v1172 = vmax.f32 %v1170, %v1171
      %v1173 = vrot.slane %v1172, 2
      %v1174 = vmax.f32 %v1172, %v1173
      %v1175 = vrot.slane %v1174, 1
      %v1176 = vmax.f32 %v1174, %v1175
      %v1177 = vsel %vm868, %v771, -inf
      %v1178 = vrot.slane %v1177, 4
      %v1179 = vmax.f32 %v1177, %v1178
      %v1180 = vrot.slane %v1179, 2
      %v1181 = vmax.f32 %v1179, %v1180
      %v1182 = vrot.slane %v1181, 1
      %v1183 = vmax.f32 %v1181, %v1182
      %v1184 = vsel %vm868, %v772, -inf
      %v1185 = vrot.slane %v1184, 4
      %v1186 = vmax.f32 %v1184, %v1185
      %v1187 = vrot.slane %v1186, 2
      %v1188 = vmax.f32 %v1186, %v1187
      %v1189 = vrot.slane %v1188, 1
      %v1190 = vmax.f32 %v1188, %v1189
      %v1191 = vsel %vm868, %v776, -inf
      %v1192 = vrot.slane %v1191, 4
      %v1193 = vmax.f32 %v1191, %v1192
      %v1194 = vrot.slane %v1193, 2
      %v1195 = vmax.f32 %v1193, %v1194
      %v1196 = vrot.slane %v1195, 1
      %v1197 = vmax.f32 %v1195, %v1196
      %v1198 = vsel %vm868, %v777, -inf
      %v1199 = vrot.slane %v1198, 4
      %v1200 = vmax.f32 %v1198, %v1199
      %v1201 = vrot.slane %v1200, 2
      %v1202 = vmax.f32 %v1200, %v1201
      %v1203 = vrot.slane %v1202, 1
      %v1204 = vmax.f32 %v1202, %v1203
      %v1205 = vsel %vm868, %v781, -inf
      %v1206 = vrot.slane %v1205, 4
      %v1207 = vmax.f32 %v1205, %v1206
      %v1208 = vrot.slane %v1207, 2
      %v1209 = vmax.f32 %v1207, %v1208
      %v1210 = vrot.slane %v1209, 1
      %v1211 = vmax.f32 %v1209, %v1210
      %v1212 = vsel %vm868, %v782, -inf
      %v1213 = vrot.slane %v1212, 4
      %v1214 = vmax.f32 %v1212, %v1213
      %v1215 = vrot.slane %v1214, 2
      %v1216 = vmax.f32 %v1214, %v1215
      %v1217 = vrot.slane %v1216, 1
      %v1218 = vmax.f32 %v1216, %v1217
      %v1219 = vsel %vm868, %v786, -inf
      %v1220 = vrot.slane %v1219, 4
      %v1221 = vmax.f32 %v1219, %v1220
      %v1222 = vrot.slane %v1221, 2
      %v1223 = vmax.f32 %v1221, %v1222
      %v1224 = vrot.slane %v1223, 1
      %v1225 = vmax.f32 %v1223, %v1224
      %v1226 = vsel %vm868, %v787, -inf
      %v1227 = vrot.slane %v1226, 4
      %v1228 = vmax.f32 %v1226, %v1227
      %v1229 = vrot.slane %v1228, 2
      %v1230 = vmax.f32 %v1228, %v1229
      %v1231 = vrot.slane %v1230, 1
      %v1232 = vmax.f32 %v1230, %v1231
      %v1233 = vsel %vm868, %v791, -inf
      %v1234 = vrot.slane %v1233, 4
      %v1235 = vmax.f32 %v1233, %v1234
      %v1236 = vrot.slane %v1235, 2
      %v1237 = vmax.f32 %v1235, %v1236
      %v1238 = vrot.slane %v1237, 1
      %v1239 = vmax.f32 %v1237, %v1238
      %v1240 = vsel %vm868, %v792, -inf
      %v1241 = vrot.slane %v1240, 4
      %v1242 = vmax.f32 %v1240, %v1241
      %v1243 = vrot.slane %v1242, 2
      %v1244 = vmax.f32 %v1242, %v1243
      %v1245 = vrot.slane %v1244, 1
      %v1246 = vmax.f32 %v1244, %v1245
      %v1247 = vsel %vm868, %v796, -inf
      %v1248 = vrot.slane %v1247, 4
      %v1249 = vmax.f32 %v1247, %v1248
      %v1250 = vrot.slane %v1249, 2
      %v1251 = vmax.f32 %v1249, %v1250
      %v1252 = vrot.slane %v1251, 1
      %v1253 = vmax.f32 %v1251, %v1252
      %v1254 = vsel %vm868, %v797, -inf
      %v1255 = vrot.slane %v1254, 4
      %v1256 = vmax.f32 %v1254, %v1255
      %v1257 = vrot.slane %v1256, 2
      %v1258 = vmax.f32 %v1256, %v1257
      %v1259 = vrot.slane %v1258, 1
      %v1260 = vmax.f32 %v1258, %v1259
      %v1261 = vsel %vm868, %v801, -inf
      %v1262 = vrot.slane %v1261, 4
      %v1263 = vmax.f32 %v1261, %v1262
      %v1264 = vrot.slane %v1263, 2
      %v1265 = vmax.f32 %v1263, %v1264
      %v1266 = vrot.slane %v1265, 1
      %v1267 = vmax.f32 %v1265, %v1266
      %v1268 = vsel %vm868, %v802, -inf
      %v1269 = vrot.slane %v1268, 4
      %v1270 = vmax.f32 %v1268, %v1269
      %v1271 = vrot.slane %v1270, 2
      %v1272 = vmax.f32 %v1270, %v1271
      %v1273 = vrot.slane %v1272, 1
      %v1274 = vmax.f32 %v1272, %v1273
      %v1275 = vsel %vm868, %v806, -inf
      %v1276 = vrot.slane %v1275, 4
      %v1277 = vmax.f32 %v1275, %v1276
      %v1278 = vrot.slane %v1277, 2
      %v1279 = vmax.f32 %v1277, %v1278
      %v1280 = vrot.slane %v1279, 1
      %v1281 = vmax.f32 %v1279, %v1280
      %v1282 = vsel %vm868, %v807, -inf
      %v1283 = vrot.slane %v1282, 4
      %v1284 = vmax.f32 %v1282, %v1283
      %v1285 = vrot.slane %v1284, 2
      %v1286 = vmax.f32 %v1284, %v1285
      %v1287 = vrot.slane %v1286, 1
      %v1288 = vmax.f32 %v1286, %v1287
      %v1289 = vpack.c.bf16 %v875, %v875
      %v1290 = vpack.c.bf16 %v882, %v882
      %v1291 = vpack.c.bf16 %v889, %v889
      %v1292 = vpack.c.bf16 %v896, %v896
      %v1293 = vpack.c.bf16 %v903, %v903
      %v1294 = vpack.c.bf16 %v910, %v910
      %v1295 = vpack.c.bf16 %v917, %v917
      %v1296 = vpack.c.bf16 %v924, %v924
      %v1297 = vpack.c.bf16 %v931, %v931
      %v1298 = vpack.c.bf16 %v938, %v938
      %v1299 = vpack.c.bf16 %v945, %v945
      %v1300 = vpack.c.bf16 %v952, %v952
      %v1301 = vpack.c.bf16 %v959, %v959
      %v1302 = vpack.c.bf16 %v966, %v966
      %v1303 = vpack.c.bf16 %v973, %v973
      %v1304 = vpack.c.bf16 %v980, %v980
      %v1305 = vpack.c.bf16 %v987, %v987
      %v1306 = vpack.c.bf16 %v994, %v994
      %v1307 = vpack.c.bf16 %v1001, %v1001
      %v1308 = vpack.c.bf16 %v1008, %v1008
      %v1309 = vpack.c.bf16 %v1015, %v1015
      %v1310 = vpack.c.bf16 %v1022, %v1022
      %v1311 = vpack.c.bf16 %v1029, %v1029
      %v1312 = vpack.c.bf16 %v1036, %v1036
      %v1313 = vpack.c.bf16 %v1043, %v1043
      %v1314 = vpack.c.bf16 %v1050, %v1050
      %v1315 = vpack.c.bf16 %v1057, %v1057
      %v1316 = vpack.c.bf16 %v1064, %v1064
      %v1317 = vpack.c.bf16 %v1071, %v1071
      %v1318 = vpack.c.bf16 %v1078, %v1078
      %v1319 = vpack.c.bf16 %v1085, %v1085
      %v1320 = vpack.c.bf16 %v1092, %v1092
      %v1321 = vpack.c.bf16 %v1099, %v1099
      %v1322 = vpack.c.bf16 %v1106, %v1106
      %v1323 = vpack.c.bf16 %v1113, %v1113
      %v1324 = vpack.c.bf16 %v1120, %v1120
      %v1325 = vpack.c.bf16 %v1127, %v1127
      %v1326 = vpack.c.bf16 %v1134, %v1134
      %v1327 = vpack.c.bf16 %v1141, %v1141
      %v1328 = vpack.c.bf16 %v1148, %v1148
      %v1329 = vpack.c.bf16 %v1155, %v1155
      %v1330 = vpack.c.bf16 %v1162, %v1162
      %v1331 = vpack.c.bf16 %v1169, %v1169
      %v1332 = vpack.c.bf16 %v1176, %v1176
      %v1333 = vpack.c.bf16 %v1183, %v1183
      %v1334 = vpack.c.bf16 %v1190, %v1190
      %v1335 = vpack.c.bf16 %v1197, %v1197
      %v1336 = vpack.c.bf16 %v1204, %v1204
      %v1337 = vld [vmem:[%s3] sm:$0xff]
      %v1338 = vld [vmem:[%s3 + $0x8] sm:$0xff]
      %v1339 = vld [vmem:[%s3 + $0x10] sm:$0xff]
      %v1340 = vld [vmem:[%s3 + $0x18] sm:$0xff]
      %v1341 = vld [vmem:[%s3 + $0x20] sm:$0xff]
      %v1342 = vld [vmem:[%s3 + $0x28] sm:$0xff]
      %v1343 = vld [vmem:[%s3 + $0x30] sm:$0xff]
      %v1344 = vld [vmem:[%s3 + $0x38] sm:$0xff]
      %v1345 = vld [vmem:[%s3 + $0x40] sm:$0xff]
      %v1346 = vld [vmem:[%s3 + $0x48] sm:$0xff]
      %v1347 = vld [vmem:[%s3 + $0x50] sm:$0xff]
      %v1348 = vld [vmem:[%s3 + $0x58] sm:$0xff]
      %v1349 = vld [vmem:[%s3 + $0x60] sm:$0xff]
      %v1350 = vld [vmem:[%s3 + $0x68] sm:$0xff]
      %v1351 = vld [vmem:[%s3 + $0x70] sm:$0xff]
      %v1352 = vld [vmem:[%s3 + $0x78] sm:$0xff]
      %v1353 = vld [vmem:[%s3 + $0x80] sm:$0xff]
      %v1354 = vld [vmem:[%s3 + $0x88] sm:$0xff]
      %v1355 = vld [vmem:[%s3 + $0x90] sm:$0xff]
      %v1356 = vld [vmem:[%s3 + $0x98] sm:$0xff]
      %v1357 = vld [vmem:[%s3 + $0xa0] sm:$0xff]
      %v1358 = vld [vmem:[%s3 + $0xa8] sm:$0xff]
      %v1359 = vld [vmem:[%s3 + $0xb0] sm:$0xff]
      %v1360 = vld [vmem:[%s3 + $0xb8] sm:$0xff]
      %v1361 = vld [vmem:[%s3 + $0xc0] sm:$0xff]
      %v1362 = vld [vmem:[%s3 + $0xc8] sm:$0xff]
      %v1363 = vld [vmem:[%s3 + $0xd0] sm:$0xff]
      %v1364 = vld [vmem:[%s3 + $0xd8] sm:$0xff]
      %v1365 = vld [vmem:[%s3 + $0xe0] sm:$0xff]
      %v1366 = vld [vmem:[%s3 + $0xe8] sm:$0xff]
      %v1367 = vld [vmem:[%s3 + $0xf0] sm:$0xff]
      %v1368 = vld [vmem:[%s3 + $0xf8] sm:$0xff]
      %v1369 = vpack.c.bf16 %v1211, %v1211
      %v1370 = vpack.c.bf16 %v1218, %v1218
      %s1371 = scalar_lea.vmem %s3, 256
      %v1372 = vld [vmem:[%s1371] sm:$0xff]
      %v1373 = vld [vmem:[%s1371 + $0x8] sm:$0xff]
      %v1374 = vld [vmem:[%s1371 + $0x10] sm:$0xff]
      %v1375 = vld [vmem:[%s1371 + $0x18] sm:$0xff]
      %v1376 = vld [vmem:[%s1371 + $0x20] sm:$0xff]
      %v1377 = vld [vmem:[%s1371 + $0x28] sm:$0xff]
      %v1378 = vld [vmem:[%s1371 + $0x30] sm:$0xff]
      %v1379 = vld [vmem:[%s1371 + $0x38] sm:$0xff]
      %v1380 = vld [vmem:[%s1371 + $0x40] sm:$0xff]
      %v1381 = vld [vmem:[%s1371 + $0x48] sm:$0xff]
      %v1382 = vld [vmem:[%s1371 + $0x50] sm:$0xff]
      %v1383 = vld [vmem:[%s1371 + $0x58] sm:$0xff]
      %v1384 = vld [vmem:[%s1371 + $0x60] sm:$0xff]
      %v1385 = vld [vmem:[%s1371 + $0x68] sm:$0xff]
      %v1386 = vld [vmem:[%s1371 + $0x70] sm:$0xff]
      %v1387 = vld [vmem:[%s1371 + $0x78] sm:$0xff]
      %v1388 = vld [vmem:[%s1371 + $0x80] sm:$0xff]
      %v1389 = vld [vmem:[%s1371 + $0x88] sm:$0xff]
      %v1390 = vld [vmem:[%s1371 + $0x90] sm:$0xff]
      %v1391 = vld [vmem:[%s1371 + $0x98] sm:$0xff]
      %v1392 = vld [vmem:[%s1371 + $0xa0] sm:$0xff]
      %v1393 = vld [vmem:[%s1371 + $0xa8] sm:$0xff]
      %v1394 = vld [vmem:[%s1371 + $0xb0] sm:$0xff]
      %v1395 = vld [vmem:[%s1371 + $0xb8] sm:$0xff]
      %v1396 = vld [vmem:[%s1371 + $0xc0] sm:$0xff]
      %v1397 = vld [vmem:[%s1371 + $0xc8] sm:$0xff]
      %v1398 = vld [vmem:[%s1371 + $0xd0] sm:$0xff]
      %v1399 = vld [vmem:[%s1371 + $0xd8] sm:$0xff]
      %v1400 = vld [vmem:[%s1371 + $0xe0] sm:$0xff]
      %v1401 = vld [vmem:[%s1371 + $0xe8] sm:$0xff]
      %v1402 = vld [vmem:[%s1371 + $0xf0] sm:$0xff]
      %v1403 = vld [vmem:[%s1371 + $0xf8] sm:$0xff]
      %v1452 = vunpack.c.l.b16 %v1291
      %v1453 = vunpack.c.l.b16 %v1292
      %v1454 = vunpack.c.l.b16 %v1293
      %v1455 = vunpack.c.l.b16 %v1294
      %v1456 = vunpack.c.l.b16 %v1295
      %v1457 = vunpack.c.l.b16 %v1296
      %v1458 = vunpack.c.l.b16 %v1297
      %v1459 = vunpack.c.l.b16 %v1298
      %v1460 = vunpack.c.l.b16 %v1299
      %v1461 = vunpack.c.l.b16 %v1300
      %v1462 = vunpack.c.l.b16 %v1301
      %v1463 = vunpack.c.l.b16 %v1302
      %v1464 = vunpack.c.l.b16 %v1303
      %v1465 = vunpack.c.l.b16 %v1304
      %v1466 = vunpack.c.l.b16 %v1305
      %v1467 = vunpack.c.l.b16 %v1306
      %v1468 = vunpack.c.l.b16 %v1307
      %v1469 = vunpack.c.l.b16 %v1308
      %v1470 = vunpack.c.l.b16 %v1309
      %v1471 = vunpack.c.l.b16 %v1310
      %v1472 = vunpack.c.l.b16 %v1311
      %v1473 = vunpack.c.l.b16 %v1312
      %v1474 = vunpack.c.l.b16 %v1313
      %v1475 = vunpack.c.l.b16 %v1314
      %v1476 = vunpack.c.l.b16 %v1315
      %v1477 = vunpack.c.l.b16 %v1316
      %v1478 = vunpack.c.l.b16 %v1317
      %v1479 = vunpack.c.l.b16 %v1318
      %v1480 = vunpack.c.l.b16 %v1319
      %v1481 = vunpack.c.l.b16 %v1320
      %v1482 = vunpack.c.l.b16 %v1321
      %v1483 = vunpack.c.l.b16 %v1322
      %v1484 = vunpack.c.l.b16 %v1323
      %v1485 = vunpack.c.l.b16 %v1324
      %v1486 = vunpack.c.l.b16 %v1325
      %v1487 = vunpack.c.l.b16 %v1326
      %v1488 = vunpack.c.l.b16 %v1327
      %v1489 = vunpack.c.l.b16 %v1328
      %v1490 = vunpack.c.l.b16 %v1329
      %v1491 = vunpack.c.l.b16 %v1330
      %v1492 = vunpack.c.l.b16 %v1331
      %v1493 = vunpack.c.l.b16 %v1332
      %v1494 = vunpack.c.l.b16 %v1333
      %v1495 = vunpack.c.l.b16 %v1334
      %v1496 = vunpack.c.l.b16 %v1335
      %v1497 = vunpack.c.l.b16 %v1336
      %v1498 = vunpack.c.l.b16 %v1369
      %v1499 = vunpack.c.l.b16 %v1370
      %v1500 = vsel %vm482, %v1454, %v1452
      %v1501 = vsel %vm485, %v1456, %v1500
      %v1502 = vsel %vm488, %v1458, %v1501
      %v1503 = vsel %vm491, %v1460, %v1502
      %v1504 = vsel %vm494, %v1462, %v1503
      %v1505 = vsel %vm497, %v1464, %v1504
      %vm1506 = vcmask 1047559
      %v1507 = vsel %vm1506, %v1466, %v1505
      %v1508 = vsel %vm482, %v1455, %v1453
      %v1509 = vsel %vm485, %v1457, %v1508
      %v1510 = vsel %vm488, %v1459, %v1509
      %v1511 = vsel %vm491, %v1461, %v1510
      %v1512 = vsel %vm494, %v1463, %v1511
      %v1513 = vsel %vm497, %v1465, %v1512
      %v1514 = vsel %vm1506, %v1467, %v1513
      %v1515 = vsel %vm482, %v1470, %v1468
      %v1516 = vsel %vm485, %v1472, %v1515
      %v1517 = vsel %vm488, %v1474, %v1516
      %v1518 = vsel %vm491, %v1476, %v1517
      %v1519 = vsel %vm494, %v1478, %v1518
      %v1520 = vsel %vm497, %v1480, %v1519
      %v1521 = vsel %vm1506, %v1482, %v1520
      %v1522 = vsel %vm482, %v1471, %v1469
      %v1523 = vsel %vm485, %v1473, %v1522
      %v1524 = vsel %vm488, %v1475, %v1523
      %v1525 = vsel %vm491, %v1477, %v1524
      %v1526 = vsel %vm494, %v1479, %v1525
      %v1527 = vsel %vm497, %v1481, %v1526
      %v1528 = vsel %vm1506, %v1483, %v1527
      %v1529 = vsel %vm482, %v1486, %v1484
      %v1530 = vsel %vm485, %v1488, %v1529
      %v1531 = vsel %vm488, %v1490, %v1530
      %v1532 = vsel %vm491, %v1492, %v1531
      %v1533 = vsel %vm494, %v1494, %v1532
      %v1534 = vsel %vm497, %v1496, %v1533
      %v1535 = vsel %vm1506, %v1498, %v1534
      %v1536 = vsel %vm482, %v1487, %v1485
      %v1537 = vsel %vm485, %v1489, %v1536
      %v1538 = vsel %vm488, %v1491, %v1537
      %v1539 = vsel %vm491, %v1493, %v1538
      %v1540 = vsel %vm494, %v1495, %v1539
      %v1541 = vsel %vm497, %v1497, %v1540
      %v1542 = vsel %vm1506, %v1499, %v1541
      %v1543 = vpack.c.b16 %v1521, %v1507
      %v1544 = vpack.c.b16 %v1528, %v1514
      %v1545 = vpack.c.b16 %v1535, %v1535
      %v1546 = vpack.c.b16 %v1542, %v1542
      %v1583 = vunpack.c.l.b16 %v1372
      %v1584 = vunpack.c.h.b16 %v1372
      %v1585 = vunpack.c.l.b16 %v1373
      %v1586 = vunpack.c.h.b16 %v1373
      %v1587 = vunpack.c.l.b16 %v1374
      %v1588 = vunpack.c.h.b16 %v1374
      %v1589 = vunpack.c.l.b16 %v1375
      %v1590 = vunpack.c.h.b16 %v1375
      %v1591 = vunpack.c.l.b16 %v1376
      %v1592 = vunpack.c.h.b16 %v1376
      %v1593 = vunpack.c.l.b16 %v1377
      %v1594 = vunpack.c.h.b16 %v1377
      %v1595 = vunpack.c.l.b16 %v1378
      %v1596 = vunpack.c.h.b16 %v1378
      %v1597 = vunpack.c.l.b16 %v1379
      %v1598 = vunpack.c.h.b16 %v1379
      %v1599 = vunpack.c.l.b16 %v1380
      %v1600 = vunpack.c.h.b16 %v1380
      %v1601 = vunpack.c.l.b16 %v1381
      %v1602 = vunpack.c.h.b16 %v1381
      %v1603 = vunpack.c.l.b16 %v1382
      %v1604 = vunpack.c.h.b16 %v1382
      %v1605 = vunpack.c.l.b16 %v1383
      %v1606 = vunpack.c.h.b16 %v1383
      %v1607 = vunpack.c.l.b16 %v1384
      %v1608 = vunpack.c.h.b16 %v1384
      %v1609 = vunpack.c.l.b16 %v1385
      %v1610 = vunpack.c.h.b16 %v1385
      %v1611 = vunpack.c.l.b16 %v1386
      %v1612 = vunpack.c.h.b16 %v1386
      %v1613 = vunpack.c.l.b16 %v1387
      %v1614 = vunpack.c.h.b16 %v1387
      %v1615 = vunpack.c.l.b16 %v1388
      %v1616 = vunpack.c.h.b16 %v1388
      %v1617 = vunpack.c.l.b16 %v1389
      %v1618 = vunpack.c.h.b16 %v1389
      %v1619 = vunpack.c.l.b16 %v1390
      %v1620 = vunpack.c.h.b16 %v1390
      %v1621 = vunpack.c.l.b16 %v1391
      %v1622 = vunpack.c.h.b16 %v1391
      %v1623 = vunpack.c.l.b16 %v1392
      %v1624 = vunpack.c.h.b16 %v1392
      %v1625 = vunpack.c.l.b16 %v1393
      %v1626 = vunpack.c.h.b16 %v1393
      %v1627 = vunpack.c.l.b16 %v1394
      %v1628 = vunpack.c.h.b16 %v1394
      %v1629 = vunpack.c.l.b16 %v1395
      %v1630 = vunpack.c.h.b16 %v1395
      %v1631 = vunpack.c.l.b16 %v1396
      %v1632 = vunpack.c.h.b16 %v1396
      %v1633 = vunpack.c.l.b16 %v1397
      %v1634 = vunpack.c.h.b16 %v1397
      %v1635 = vunpack.c.l.b16 %v1398
      %v1636 = vunpack.c.h.b16 %v1398
      %v1637 = vunpack.c.l.b16 %v1399
      %v1638 = vunpack.c.h.b16 %v1399
      %v1639 = vunpack.c.l.b16 %v1400
      %v1640 = vunpack.c.h.b16 %v1400
      %v1641 = vunpack.c.l.b16 %v1401
      %v1642 = vunpack.c.h.b16 %v1401
      %v1643 = vunpack.c.l.b16 %v1402
      %v1644 = vunpack.c.h.b16 %v1402
      %v1645 = vunpack.c.l.b16 %v1403
      %v1646 = vunpack.c.h.b16 %v1403
      %v1647 = vpack.c.b16 %v1585, %v1583
      %v1648 = vpack.c.b16 %v1586, %v1584
      %v1649 = vpack.c.b16 %v1589, %v1587
      %v1650 = vpack.c.b16 %v1590, %v1588
      %v1651 = vpack.c.b16 %v1593, %v1591
      %v1652 = vpack.c.b16 %v1594, %v1592
      %v1653 = vpack.c.b16 %v1597, %v1595
      %v1654 = vpack.c.b16 %v1598, %v1596
      %v1655 = vpack.c.b16 %v1601, %v1599
      %v1656 = vpack.c.b16 %v1602, %v1600
      %v1657 = vpack.c.b16 %v1605, %v1603
      %v1658 = vpack.c.b16 %v1606, %v1604
      %v1659 = vpack.c.b16 %v1609, %v1607
      %v1660 = vpack.c.b16 %v1610, %v1608
      %v1661 = vpack.c.b16 %v1613, %v1611
      %v1662 = vpack.c.b16 %v1614, %v1612
      %v1663 = vpack.c.b16 %v1617, %v1615
      %v1664 = vpack.c.b16 %v1618, %v1616
      %v1665 = vpack.c.b16 %v1621, %v1619
      %v1666 = vpack.c.b16 %v1622, %v1620
      %v1667 = vpack.c.b16 %v1625, %v1623
      %v1668 = vpack.c.b16 %v1626, %v1624
      %v1669 = vpack.c.b16 %v1629, %v1627
      %v1670 = vpack.c.b16 %v1630, %v1628
      %v1671 = vpack.c.b16 %v1633, %v1631
      %v1672 = vpack.c.b16 %v1634, %v1632
      %v1673 = vpack.c.b16 %v1637, %v1635
      %v1674 = vpack.c.b16 %v1638, %v1636
      %v1675 = vpack.c.b16 %v1641, %v1639
      %v1676 = vpack.c.b16 %v1642, %v1640
      %v1677 = vpack.c.b16 %v1645, %v1643
      %v1678 = vpack.c.b16 %v1646, %v1644
      %1711 = vmatpush.bf16.msra.mxu0 %v1661
      %1712 = vmatpush.bf16.msra.mxu0 %v1659
      %1713 = vmatpush.bf16.msra.mxu0 %v1657
      %1714 = vmatpush.bf16.msra.mxu0 %v1655
      %1715 = vmatpush.bf16.msra.mxu0 %v1653
      %1716 = vmatpush.bf16.msra.mxu0 %v1651
      %1717 = vmatpush.bf16.msra.mxu0 %v1649
      %1718 = vmatpush.bf16.msra.mxu0 %v1647
      %1719 = vmatmul.bf16.gmra.mxu0 %v1543
      %v1720 = vpop.f32.mrf.mxu0
      %v1721 = vadd.f32 0.0, %v1720
      %v1722 = vpop.f32.mrf.mxu0
      %v1723 = vadd.f32 0.0, %v1722
      %1724 = vmatmul.bf16.gmra.mxu0 %v1545
      %v1725 = vpop.f32.mrf.mxu0
      %v1726 = vadd.f32 0.0, %v1725
      %v1727 = vpop.f32.mrf.mxu0
      %1728 = vdwg.mxu0
      %1729 = vmatpush.bf16.msra.mxu0 %v1677
      %1730 = vmatpush.bf16.msra.mxu0 %v1675
      %1731 = vmatpush.bf16.msra.mxu0 %v1673
      %1732 = vmatpush.bf16.msra.mxu0 %v1671
      %1733 = vmatpush.bf16.msra.mxu0 %v1669
      %1734 = vmatpush.bf16.msra.mxu0 %v1667
      %1735 = vmatpush.bf16.msra.mxu0 %v1665
      %1736 = vmatpush.bf16.msra.mxu0 %v1663
      %1737 = vmatmul.bf16.gmra.mxu0 %v1544
      %v1738 = vpop.f32.mrf.mxu0
      %v1739 = vadd.f32 %v1721, %v1738
      %v1740 = vpop.f32.mrf.mxu0
      %v1741 = vadd.f32 %v1723, %v1740
      %1742 = vmatmul.bf16.gmra.mxu0 %v1546
      %v1743 = vpop.f32.mrf.mxu0
      %v1744 = vadd.f32 %v1726, %v1743
      %v1745 = vpop.f32.mrf.mxu0
      %1746 = vdwg.mxu0
      %1747 = vmatpush.bf16.msra.mxu0 %v1662
      %1748 = vmatpush.bf16.msra.mxu0 %v1660
      %1749 = vmatpush.bf16.msra.mxu0 %v1658
      %1750 = vmatpush.bf16.msra.mxu0 %v1656
      %1751 = vmatpush.bf16.msra.mxu0 %v1654
      %1752 = vmatpush.bf16.msra.mxu0 %v1652
      %1753 = vmatpush.bf16.msra.mxu0 %v1650
      %1754 = vmatpush.bf16.msra.mxu0 %v1648
      %1755 = vmatmul.bf16.gmra.mxu0 %v1543
      %v1756 = vpop.f32.mrf.mxu0
      %v1757 = vadd.f32 0.0, %v1756
      %v1758 = vpop.f32.mrf.mxu0
      %v1759 = vadd.f32 0.0, %v1758
      %1760 = vmatmul.bf16.gmra.mxu0 %v1545
      %v1761 = vpop.f32.mrf.mxu0
      %v1762 = vadd.f32 0.0, %v1761
      %v1763 = vpop.f32.mrf.mxu0
      %1764 = vdwg.mxu0
      %1765 = vmatpush.bf16.msra.mxu0 %v1678
      %1766 = vmatpush.bf16.msra.mxu0 %v1676
      %1767 = vmatpush.bf16.msra.mxu0 %v1674
      %1768 = vmatpush.bf16.msra.mxu0 %v1672
      %1769 = vmatpush.bf16.msra.mxu0 %v1670
      %1770 = vmatpush.bf16.msra.mxu0 %v1668
      %1771 = vmatpush.bf16.msra.mxu0 %v1666
      %1772 = vmatpush.bf16.msra.mxu0 %v1664
      %1773 = vmatmul.bf16.gmra.mxu0 %v1544
      %v1774 = vpop.f32.mrf.mxu0
      %v1775 = vadd.f32 %v1757, %v1774
      %v1776 = vpop.f32.mrf.mxu0
      %v1777 = vadd.f32 %v1759, %v1776
      %1778 = vmatmul.bf16.gmra.mxu0 %v1546
      %v1779 = vpop.f32.mrf.mxu0
      %v1780 = vadd.f32 %v1762, %v1779
      %v1781 = vpop.f32.mrf.mxu0
      %1782 = vdwg.mxu0
      %v1785 = vunpack.c.l.b16 %v1289
      %v1786 = vunpack.c.l.b16 %v1290
      %v1787 = vsel %vm482, %v1452, %v1785
      %v1788 = vsel %vm485, %v1454, %v1787
      %v1789 = vsel %vm488, %v1456, %v1788
      %v1790 = vsel %vm491, %v1458, %v1789
      %v1791 = vsel %vm494, %v1460, %v1790
      %v1792 = vsel %vm497, %v1462, %v1791
      %v1793 = vsel %vm1506, %v1464, %v1792
      %v1794 = vsel %vm482, %v1453, %v1786
      %v1795 = vsel %vm485, %v1455, %v1794
      %v1796 = vsel %vm488, %v1457, %v1795
      %v1797 = vsel %vm491, %v1459, %v1796
      %v1798 = vsel %vm494, %v1461, %v1797
      %v1799 = vsel %vm497, %v1463, %v1798
      %v1800 = vsel %vm1506, %v1465, %v1799
      %v1801 = vsel %vm482, %v1468, %v1466
      %v1802 = vsel %vm485, %v1470, %v1801
      %v1803 = vsel %vm488, %v1472, %v1802
      %v1804 = vsel %vm491, %v1474, %v1803
      %v1805 = vsel %vm494, %v1476, %v1804
      %v1806 = vsel %vm497, %v1478, %v1805
      %v1807 = vsel %vm1506, %v1480, %v1806
      %v1808 = vsel %vm482, %v1469, %v1467
      %v1809 = vsel %vm485, %v1471, %v1808
      %v1810 = vsel %vm488, %v1473, %v1809
      %v1811 = vsel %vm491, %v1475, %v1810
      %v1812 = vsel %vm494, %v1477, %v1811
      %v1813 = vsel %vm497, %v1479, %v1812
      %v1814 = vsel %vm1506, %v1481, %v1813
      %v1815 = vsel %vm482, %v1484, %v1482
      %v1816 = vsel %vm485, %v1486, %v1815
      %v1817 = vsel %vm488, %v1488, %v1816
      %v1818 = vsel %vm491, %v1490, %v1817
      %v1819 = vsel %vm494, %v1492, %v1818
      %v1820 = vsel %vm497, %v1494, %v1819
      %v1821 = vsel %vm1506, %v1496, %v1820
      %v1822 = vsel %vm482, %v1485, %v1483
      %v1823 = vsel %vm485, %v1487, %v1822
      %v1824 = vsel %vm488, %v1489, %v1823
      %v1825 = vsel %vm491, %v1491, %v1824
      %v1826 = vsel %vm494, %v1493, %v1825
      %v1827 = vsel %vm497, %v1495, %v1826
      %v1828 = vsel %vm1506, %v1497, %v1827
      %v1829 = vpack.c.b16 %v1807, %v1793
      %v1830 = vpack.c.b16 %v1814, %v1800
      %v1831 = vpack.c.b16 %v1821, %v1821
      %v1832 = vpack.c.b16 %v1828, %v1828
      %v1869 = vunpack.c.l.b16 %v1337
      %v1870 = vunpack.c.h.b16 %v1337
      %v1871 = vunpack.c.l.b16 %v1338
      %v1872 = vunpack.c.h.b16 %v1338
      %v1873 = vunpack.c.l.b16 %v1339
      %v1874 = vunpack.c.h.b16 %v1339
      %v1875 = vunpack.c.l.b16 %v1340
      %v1876 = vunpack.c.h.b16 %v1340
      %v1877 = vunpack.c.l.b16 %v1341
      %v1878 = vunpack.c.h.b16 %v1341
      %v1879 = vunpack.c.l.b16 %v1342
      %v1880 = vunpack.c.h.b16 %v1342
      %v1881 = vunpack.c.l.b16 %v1343
      %v1882 = vunpack.c.h.b16 %v1343
      %v1883 = vunpack.c.l.b16 %v1344
      %v1884 = vunpack.c.h.b16 %v1344
      %v1885 = vunpack.c.l.b16 %v1345
      %v1886 = vunpack.c.h.b16 %v1345
      %v1887 = vunpack.c.l.b16 %v1346
      %v1888 = vunpack.c.h.b16 %v1346
      %v1889 = vunpack.c.l.b16 %v1347
      %v1890 = vunpack.c.h.b16 %v1347
      %v1891 = vunpack.c.l.b16 %v1348
      %v1892 = vunpack.c.h.b16 %v1348
      %v1893 = vunpack.c.l.b16 %v1349
      %v1894 = vunpack.c.h.b16 %v1349
      %v1895 = vunpack.c.l.b16 %v1350
      %v1896 = vunpack.c.h.b16 %v1350
      %v1897 = vunpack.c.l.b16 %v1351
      %v1898 = vunpack.c.h.b16 %v1351
      %v1899 = vunpack.c.l.b16 %v1352
      %v1900 = vunpack.c.h.b16 %v1352
      %v1901 = vunpack.c.l.b16 %v1353
      %v1902 = vunpack.c.h.b16 %v1353
      %v1903 = vunpack.c.l.b16 %v1354
      %v1904 = vunpack.c.h.b16 %v1354
      %v1905 = vunpack.c.l.b16 %v1355
      %v1906 = vunpack.c.h.b16 %v1355
      %v1907 = vunpack.c.l.b16 %v1356
      %v1908 = vunpack.c.h.b16 %v1356
      %v1909 = vunpack.c.l.b16 %v1357
      %v1910 = vunpack.c.h.b16 %v1357
      %v1911 = vunpack.c.l.b16 %v1358
      %v1912 = vunpack.c.h.b16 %v1358
      %v1913 = vunpack.c.l.b16 %v1359
      %v1914 = vunpack.c.h.b16 %v1359
      %v1915 = vunpack.c.l.b16 %v1360
      %v1916 = vunpack.c.h.b16 %v1360
      %v1917 = vunpack.c.l.b16 %v1361
      %v1918 = vunpack.c.h.b16 %v1361
      %v1919 = vunpack.c.l.b16 %v1362
      %v1920 = vunpack.c.h.b16 %v1362
      %v1921 = vunpack.c.l.b16 %v1363
      %v1922 = vunpack.c.h.b16 %v1363
      %v1923 = vunpack.c.l.b16 %v1364
      %v1924 = vunpack.c.h.b16 %v1364
      %v1925 = vunpack.c.l.b16 %v1365
      %v1926 = vunpack.c.h.b16 %v1365
      %v1927 = vunpack.c.l.b16 %v1366
      %v1928 = vunpack.c.h.b16 %v1366
      %v1929 = vunpack.c.l.b16 %v1367
      %v1930 = vunpack.c.h.b16 %v1367
      %v1931 = vunpack.c.l.b16 %v1368
      %v1932 = vunpack.c.h.b16 %v1368
      %v1933 = vpack.c.b16 %v1871, %v1869
      %v1934 = vpack.c.b16 %v1872, %v1870
      %v1935 = vpack.c.b16 %v1875, %v1873
      %v1936 = vpack.c.b16 %v1876, %v1874
      %v1937 = vpack.c.b16 %v1879, %v1877
      %v1938 = vpack.c.b16 %v1880, %v1878
      %v1939 = vpack.c.b16 %v1883, %v1881
      %v1940 = vpack.c.b16 %v1884, %v1882
      %v1941 = vpack.c.b16 %v1887, %v1885
      %v1942 = vpack.c.b16 %v1888, %v1886
      %v1943 = vpack.c.b16 %v1891, %v1889
      %v1944 = vpack.c.b16 %v1892, %v1890
      %v1945 = vpack.c.b16 %v1895, %v1893
      %v1946 = vpack.c.b16 %v1896, %v1894
      %v1947 = vpack.c.b16 %v1899, %v1897
      %v1948 = vpack.c.b16 %v1900, %v1898
      %v1949 = vpack.c.b16 %v1903, %v1901
      %v1950 = vpack.c.b16 %v1904, %v1902
      %v1951 = vpack.c.b16 %v1907, %v1905
      %v1952 = vpack.c.b16 %v1908, %v1906
      %v1953 = vpack.c.b16 %v1911, %v1909
      %v1954 = vpack.c.b16 %v1912, %v1910
      %v1955 = vpack.c.b16 %v1915, %v1913
      %v1956 = vpack.c.b16 %v1916, %v1914
      %v1957 = vpack.c.b16 %v1919, %v1917
      %v1958 = vpack.c.b16 %v1920, %v1918
      %v1959 = vpack.c.b16 %v1923, %v1921
      %v1960 = vpack.c.b16 %v1924, %v1922
      %v1961 = vpack.c.b16 %v1927, %v1925
      %v1962 = vpack.c.b16 %v1928, %v1926
      %v1963 = vpack.c.b16 %v1931, %v1929
      %v1964 = vpack.c.b16 %v1932, %v1930
      %1997 = vmatpush.bf16.msra.mxu0 %v1947
      %1998 = vmatpush.bf16.msra.mxu0 %v1945
      %1999 = vmatpush.bf16.msra.mxu0 %v1943
      %2000 = vmatpush.bf16.msra.mxu0 %v1941
      %2001 = vmatpush.bf16.msra.mxu0 %v1939
      %2002 = vmatpush.bf16.msra.mxu0 %v1937
      %2003 = vmatpush.bf16.msra.mxu0 %v1935
      %2004 = vmatpush.bf16.msra.mxu0 %v1933
      %2005 = vmatmul.bf16.gmra.mxu0 %v1829
      %v2006 = vpop.f32.mrf.mxu0
      %v2007 = vadd.f32 %v1739, %v2006
      %v2008 = vpop.f32.mrf.mxu0
      %v2009 = vadd.f32 %v1741, %v2008
      %2010 = vmatmul.bf16.gmra.mxu0 %v1831
      %v2011 = vpop.f32.mrf.mxu0
      %v2012 = vadd.f32 %v1744, %v2011
      %v2013 = vpop.f32.mrf.mxu0
      %2014 = vdwg.mxu0
      %2015 = vmatpush.bf16.msra.mxu0 %v1963
      %2016 = vmatpush.bf16.msra.mxu0 %v1961
      %2017 = vmatpush.bf16.msra.mxu0 %v1959
      %2018 = vmatpush.bf16.msra.mxu0 %v1957
      %2019 = vmatpush.bf16.msra.mxu0 %v1955
      %2020 = vmatpush.bf16.msra.mxu0 %v1953
      %2021 = vmatpush.bf16.msra.mxu0 %v1951
      %2022 = vmatpush.bf16.msra.mxu0 %v1949
      %2023 = vmatmul.bf16.gmra.mxu0 %v1830
      %v2024 = vpop.f32.mrf.mxu0
      %v2025 = vadd.f32 %v2007, %v2024
      %v2026 = vpop.f32.mrf.mxu0
      %v2027 = vadd.f32 %v2009, %v2026
      %2028 = vmatmul.bf16.gmra.mxu0 %v1832
      %v2029 = vpop.f32.mrf.mxu0
      %v2030 = vadd.f32 %v2012, %v2029
      %v2031 = vpop.f32.mrf.mxu0
      %2032 = vdwg.mxu0
      %2033 = vmatpush.bf16.msra.mxu0 %v1948
      %2034 = vmatpush.bf16.msra.mxu0 %v1946
      %2035 = vmatpush.bf16.msra.mxu0 %v1944
      %2036 = vmatpush.bf16.msra.mxu0 %v1942
      %2037 = vmatpush.bf16.msra.mxu0 %v1940
      %2038 = vmatpush.bf16.msra.mxu0 %v1938
      %2039 = vmatpush.bf16.msra.mxu0 %v1936
      %2040 = vmatpush.bf16.msra.mxu0 %v1934
      %2041 = vmatmul.bf16.gmra.mxu0 %v1829
      %v2042 = vpop.f32.mrf.mxu0
      %v2043 = vadd.f32 %v1775, %v2042
      %v2044 = vpop.f32.mrf.mxu0
      %v2045 = vadd.f32 %v1777, %v2044
      %2046 = vmatmul.bf16.gmra.mxu0 %v1831
      %v2047 = vpop.f32.mrf.mxu0
      %v2048 = vadd.f32 %v1780, %v2047
      %v2049 = vpop.f32.mrf.mxu0
      %2050 = vdwg.mxu0
      %2051 = vmatpush.bf16.msra.mxu0 %v1964
      %2052 = vmatpush.bf16.msra.mxu0 %v1962
      %2053 = vmatpush.bf16.msra.mxu0 %v1960
      %2054 = vmatpush.bf16.msra.mxu0 %v1958
      %2055 = vmatpush.bf16.msra.mxu0 %v1956
      %2056 = vmatpush.bf16.msra.mxu0 %v1954
      %2057 = vmatpush.bf16.msra.mxu0 %v1952
      %2058 = vmatpush.bf16.msra.mxu0 %v1950
      %2059 = vmatmul.bf16.gmra.mxu0 %v1830
      %v2060 = vpop.f32.mrf.mxu0
      %v2061 = vadd.f32 %v2043, %v2060
      %v2062 = vpop.f32.mrf.mxu0
      %v2063 = vadd.f32 %v2045, %v2062
      %2064 = vmatmul.bf16.gmra.mxu0 %v1832
      %v2065 = vpop.f32.mrf.mxu0
      %v2066 = vadd.f32 %v2048, %v2065
      %v2067 = vpop.f32.mrf.mxu0
      %2068 = vdwg.mxu0
      %v2069 = vpack.c.bf16 %v1225, %v1225
      %v2070 = vpack.c.bf16 %v1232, %v1232
      %s2071 = scalar_lea.vmem %s3, 512
      %v2072 = vld [vmem:[%s2071] sm:$0xff]
      %v2073 = vld [vmem:[%s2071 + $0x8] sm:$0xff]
      %v2074 = vld [vmem:[%s2071 + $0x10] sm:$0xff]
      %v2075 = vld [vmem:[%s2071 + $0x18] sm:$0xff]
      %v2076 = vld [vmem:[%s2071 + $0x20] sm:$0xff]
      %v2077 = vld [vmem:[%s2071 + $0x28] sm:$0xff]
      %v2078 = vld [vmem:[%s2071 + $0x30] sm:$0xff]
      %v2079 = vld [vmem:[%s2071 + $0x38] sm:$0xff]
      %v2080 = vld [vmem:[%s2071 + $0x40] sm:$0xff]
      %v2081 = vld [vmem:[%s2071 + $0x48] sm:$0xff]
      %v2082 = vld [vmem:[%s2071 + $0x50] sm:$0xff]
      %v2083 = vld [vmem:[%s2071 + $0x58] sm:$0xff]
      %v2084 = vld [vmem:[%s2071 + $0x60] sm:$0xff]
      %v2085 = vld [vmem:[%s2071 + $0x68] sm:$0xff]
      %v2086 = vld [vmem:[%s2071 + $0x70] sm:$0xff]
      %v2087 = vld [vmem:[%s2071 + $0x78] sm:$0xff]
      %v2088 = vld [vmem:[%s2071 + $0x80] sm:$0xff]
      %v2089 = vld [vmem:[%s2071 + $0x88] sm:$0xff]
      %v2090 = vld [vmem:[%s2071 + $0x90] sm:$0xff]
      %v2091 = vld [vmem:[%s2071 + $0x98] sm:$0xff]
      %v2092 = vld [vmem:[%s2071 + $0xa0] sm:$0xff]
      %v2093 = vld [vmem:[%s2071 + $0xa8] sm:$0xff]
      %v2094 = vld [vmem:[%s2071 + $0xb0] sm:$0xff]
      %v2095 = vld [vmem:[%s2071 + $0xb8] sm:$0xff]
      %v2096 = vld [vmem:[%s2071 + $0xc0] sm:$0xff]
      %v2097 = vld [vmem:[%s2071 + $0xc8] sm:$0xff]
      %v2098 = vld [vmem:[%s2071 + $0xd0] sm:$0xff]
      %v2099 = vld [vmem:[%s2071 + $0xd8] sm:$0xff]
      %v2100 = vld [vmem:[%s2071 + $0xe0] sm:$0xff]
      %v2101 = vld [vmem:[%s2071 + $0xe8] sm:$0xff]
      %v2102 = vld [vmem:[%s2071 + $0xf0] sm:$0xff]
      %v2103 = vld [vmem:[%s2071 + $0xf8] sm:$0xff]
      %v2106 = vunpack.c.l.b16 %v2069
      %v2107 = vunpack.c.l.b16 %v2070
      %v2108 = vsel %vm482, %v1456, %v1454
      %v2109 = vsel %vm485, %v1458, %v2108
      %v2110 = vsel %vm488, %v1460, %v2109
      %v2111 = vsel %vm491, %v1462, %v2110
      %v2112 = vsel %vm494, %v1464, %v2111
      %v2113 = vsel %vm497, %v1466, %v2112
      %v2114 = vsel %vm1506, %v1468, %v2113
      %v2115 = vsel %vm482, %v1457, %v1455
      %v2116 = vsel %vm485, %v1459, %v2115
      %v2117 = vsel %vm488, %v1461, %v2116
      %v2118 = vsel %vm491, %v1463, %v2117
      %v2119 = vsel %vm494, %v1465, %v2118
      %v2120 = vsel %vm497, %v1467, %v2119
      %v2121 = vsel %vm1506, %v1469, %v2120
      %v2122 = vsel %vm482, %v1472, %v1470
      %v2123 = vsel %vm485, %v1474, %v2122
      %v2124 = vsel %vm488, %v1476, %v2123
      %v2125 = vsel %vm491, %v1478, %v2124
      %v2126 = vsel %vm494, %v1480, %v2125
      %v2127 = vsel %vm497, %v1482, %v2126
      %v2128 = vsel %vm1506, %v1484, %v2127
      %v2129 = vsel %vm482, %v1473, %v1471
      %v2130 = vsel %vm485, %v1475, %v2129
      %v2131 = vsel %vm488, %v1477, %v2130
      %v2132 = vsel %vm491, %v1479, %v2131
      %v2133 = vsel %vm494, %v1481, %v2132
      %v2134 = vsel %vm497, %v1483, %v2133
      %v2135 = vsel %vm1506, %v1485, %v2134
      %v2136 = vsel %vm482, %v1488, %v1486
      %v2137 = vsel %vm485, %v1490, %v2136
      %v2138 = vsel %vm488, %v1492, %v2137
      %v2139 = vsel %vm491, %v1494, %v2138
      %v2140 = vsel %vm494, %v1496, %v2139
      %v2141 = vsel %vm497, %v1498, %v2140
      %v2142 = vsel %vm1506, %v2106, %v2141
      %v2143 = vsel %vm482, %v1489, %v1487
      %v2144 = vsel %vm485, %v1491, %v2143
      %v2145 = vsel %vm488, %v1493, %v2144
      %v2146 = vsel %vm491, %v1495, %v2145
      %v2147 = vsel %vm494, %v1497, %v2146
      %v2148 = vsel %vm497, %v1499, %v2147
      %v2149 = vsel %vm1506, %v2107, %v2148
      %v2150 = vpack.c.b16 %v2128, %v2114
      %v2151 = vpack.c.b16 %v2135, %v2121
      %v2152 = vpack.c.b16 %v2142, %v2142
      %v2153 = vpack.c.b16 %v2149, %v2149
      %v2190 = vunpack.c.l.b16 %v2072
      %v2191 = vunpack.c.h.b16 %v2072
      %v2192 = vunpack.c.l.b16 %v2073
      %v2193 = vunpack.c.h.b16 %v2073
      %v2194 = vunpack.c.l.b16 %v2074
      %v2195 = vunpack.c.h.b16 %v2074
      %v2196 = vunpack.c.l.b16 %v2075
      %v2197 = vunpack.c.h.b16 %v2075
      %v2198 = vunpack.c.l.b16 %v2076
      %v2199 = vunpack.c.h.b16 %v2076
      %v2200 = vunpack.c.l.b16 %v2077
      %v2201 = vunpack.c.h.b16 %v2077
      %v2202 = vunpack.c.l.b16 %v2078
      %v2203 = vunpack.c.h.b16 %v2078
      %v2204 = vunpack.c.l.b16 %v2079
      %v2205 = vunpack.c.h.b16 %v2079
      %v2206 = vunpack.c.l.b16 %v2080
      %v2207 = vunpack.c.h.b16 %v2080
      %v2208 = vunpack.c.l.b16 %v2081
      %v2209 = vunpack.c.h.b16 %v2081
      %v2210 = vunpack.c.l.b16 %v2082
      %v2211 = vunpack.c.h.b16 %v2082
      %v2212 = vunpack.c.l.b16 %v2083
      %v2213 = vunpack.c.h.b16 %v2083
      %v2214 = vunpack.c.l.b16 %v2084
      %v2215 = vunpack.c.h.b16 %v2084
      %v2216 = vunpack.c.l.b16 %v2085
      %v2217 = vunpack.c.h.b16 %v2085
      %v2218 = vunpack.c.l.b16 %v2086
      %v2219 = vunpack.c.h.b16 %v2086
      %v2220 = vunpack.c.l.b16 %v2087
      %v2221 = vunpack.c.h.b16 %v2087
      %v2222 = vunpack.c.l.b16 %v2088
      %v2223 = vunpack.c.h.b16 %v2088
      %v2224 = vunpack.c.l.b16 %v2089
      %v2225 = vunpack.c.h.b16 %v2089
      %v2226 = vunpack.c.l.b16 %v2090
      %v2227 = vunpack.c.h.b16 %v2090
      %v2228 = vunpack.c.l.b16 %v2091
      %v2229 = vunpack.c.h.b16 %v2091
      %v2230 = vunpack.c.l.b16 %v2092
      %v2231 = vunpack.c.h.b16 %v2092
      %v2232 = vunpack.c.l.b16 %v2093
      %v2233 = vunpack.c.h.b16 %v2093
      %v2234 = vunpack.c.l.b16 %v2094
      %v2235 = vunpack.c.h.b16 %v2094
      %v2236 = vunpack.c.l.b16 %v2095
      %v2237 = vunpack.c.h.b16 %v2095
      %v2238 = vunpack.c.l.b16 %v2096
      %v2239 = vunpack.c.h.b16 %v2096
      %v2240 = vunpack.c.l.b16 %v2097
      %v2241 = vunpack.c.h.b16 %v2097
      %v2242 = vunpack.c.l.b16 %v2098
      %v2243 = vunpack.c.h.b16 %v2098
      %v2244 = vunpack.c.l.b16 %v2099
      %v2245 = vunpack.c.h.b16 %v2099
      %v2246 = vunpack.c.l.b16 %v2100
      %v2247 = vunpack.c.h.b16 %v2100
      %v2248 = vunpack.c.l.b16 %v2101
      %v2249 = vunpack.c.h.b16 %v2101
      %v2250 = vunpack.c.l.b16 %v2102
      %v2251 = vunpack.c.h.b16 %v2102
      %v2252 = vunpack.c.l.b16 %v2103
      %v2253 = vunpack.c.h.b16 %v2103
      %v2254 = vpack.c.b16 %v2192, %v2190
      %v2255 = vpack.c.b16 %v2193, %v2191
      %v2256 = vpack.c.b16 %v2196, %v2194
      %v2257 = vpack.c.b16 %v2197, %v2195
      %v2258 = vpack.c.b16 %v2200, %v2198
      %v2259 = vpack.c.b16 %v2201, %v2199
      %v2260 = vpack.c.b16 %v2204, %v2202
      %v2261 = vpack.c.b16 %v2205, %v2203
      %v2262 = vpack.c.b16 %v2208, %v2206
      %v2263 = vpack.c.b16 %v2209, %v2207
      %v2264 = vpack.c.b16 %v2212, %v2210
      %v2265 = vpack.c.b16 %v2213, %v2211
      %v2266 = vpack.c.b16 %v2216, %v2214
      %v2267 = vpack.c.b16 %v2217, %v2215
      %v2268 = vpack.c.b16 %v2220, %v2218
      %v2269 = vpack.c.b16 %v2221, %v2219
      %v2270 = vpack.c.b16 %v2224, %v2222
      %v2271 = vpack.c.b16 %v2225, %v2223
      %v2272 = vpack.c.b16 %v2228, %v2226
      %v2273 = vpack.c.b16 %v2229, %v2227
      %v2274 = vpack.c.b16 %v2232, %v2230
      %v2275 = vpack.c.b16 %v2233, %v2231
      %v2276 = vpack.c.b16 %v2236, %v2234
      %v2277 = vpack.c.b16 %v2237, %v2235
      %v2278 = vpack.c.b16 %v2240, %v2238
      %v2279 = vpack.c.b16 %v2241, %v2239
      %v2280 = vpack.c.b16 %v2244, %v2242
      %v2281 = vpack.c.b16 %v2245, %v2243
      %v2282 = vpack.c.b16 %v2248, %v2246
      %v2283 = vpack.c.b16 %v2249, %v2247
      %v2284 = vpack.c.b16 %v2252, %v2250
      %v2285 = vpack.c.b16 %v2253, %v2251
      %2318 = vmatpush.bf16.msra.mxu0 %v2268
      %2319 = vmatpush.bf16.msra.mxu0 %v2266
      %2320 = vmatpush.bf16.msra.mxu0 %v2264
      %2321 = vmatpush.bf16.msra.mxu0 %v2262
      %2322 = vmatpush.bf16.msra.mxu0 %v2260
      %2323 = vmatpush.bf16.msra.mxu0 %v2258
      %2324 = vmatpush.bf16.msra.mxu0 %v2256
      %2325 = vmatpush.bf16.msra.mxu0 %v2254
      %2326 = vmatmul.bf16.gmra.mxu0 %v2150
      %v2327 = vpop.f32.mrf.mxu0
      %v2328 = vadd.f32 0.0, %v2327
      %v2329 = vpop.f32.mrf.mxu0
      %v2330 = vadd.f32 0.0, %v2329
      %2331 = vmatmul.bf16.gmra.mxu0 %v2152
      %v2332 = vpop.f32.mrf.mxu0
      %v2333 = vadd.f32 0.0, %v2332
      %v2334 = vpop.f32.mrf.mxu0
      %2335 = vdwg.mxu0
      %2336 = vmatpush.bf16.msra.mxu0 %v2284
      %2337 = vmatpush.bf16.msra.mxu0 %v2282
      %2338 = vmatpush.bf16.msra.mxu0 %v2280
      %2339 = vmatpush.bf16.msra.mxu0 %v2278
      %2340 = vmatpush.bf16.msra.mxu0 %v2276
      %2341 = vmatpush.bf16.msra.mxu0 %v2274
      %2342 = vmatpush.bf16.msra.mxu0 %v2272
      %2343 = vmatpush.bf16.msra.mxu0 %v2270
      %2344 = vmatmul.bf16.gmra.mxu0 %v2151
      %v2345 = vpop.f32.mrf.mxu0
      %v2346 = vadd.f32 %v2328, %v2345
      %v2347 = vpop.f32.mrf.mxu0
      %v2348 = vadd.f32 %v2330, %v2347
      %2349 = vmatmul.bf16.gmra.mxu0 %v2153
      %v2350 = vpop.f32.mrf.mxu0
      %v2351 = vadd.f32 %v2333, %v2350
      %v2352 = vpop.f32.mrf.mxu0
      %2353 = vdwg.mxu0
      %2354 = vmatpush.bf16.msra.mxu0 %v2269
      %2355 = vmatpush.bf16.msra.mxu0 %v2267
      %2356 = vmatpush.bf16.msra.mxu0 %v2265
      %2357 = vmatpush.bf16.msra.mxu0 %v2263
      %2358 = vmatpush.bf16.msra.mxu0 %v2261
      %2359 = vmatpush.bf16.msra.mxu0 %v2259
      %2360 = vmatpush.bf16.msra.mxu0 %v2257
      %2361 = vmatpush.bf16.msra.mxu0 %v2255
      %2362 = vmatmul.bf16.gmra.mxu0 %v2150
      %v2363 = vpop.f32.mrf.mxu0
      %v2364 = vadd.f32 0.0, %v2363
      %v2365 = vpop.f32.mrf.mxu0
      %v2366 = vadd.f32 0.0, %v2365
      %2367 = vmatmul.bf16.gmra.mxu0 %v2152
      %v2368 = vpop.f32.mrf.mxu0
      %v2369 = vadd.f32 0.0, %v2368
      %v2370 = vpop.f32.mrf.mxu0
      %2371 = vdwg.mxu0
      %2372 = vmatpush.bf16.msra.mxu0 %v2285
      %2373 = vmatpush.bf16.msra.mxu0 %v2283
      %2374 = vmatpush.bf16.msra.mxu0 %v2281
      %2375 = vmatpush.bf16.msra.mxu0 %v2279
      %2376 = vmatpush.bf16.msra.mxu0 %v2277
      %2377 = vmatpush.bf16.msra.mxu0 %v2275
      %2378 = vmatpush.bf16.msra.mxu0 %v2273
      %2379 = vmatpush.bf16.msra.mxu0 %v2271
      %2380 = vmatmul.bf16.gmra.mxu0 %v2151
      %v2381 = vpop.f32.mrf.mxu0
      %v2382 = vadd.f32 %v2364, %v2381
      %v2383 = vpop.f32.mrf.mxu0
      %v2384 = vadd.f32 %v2366, %v2383
      %2385 = vmatmul.bf16.gmra.mxu0 %v2153
      %v2386 = vpop.f32.mrf.mxu0
      %v2387 = vadd.f32 %v2369, %v2386
      %v2388 = vpop.f32.mrf.mxu0
      %2389 = vdwg.mxu0
      %v2390 = vadd.f32 %v2025, %v2346
      %v2391 = vadd.f32 %v2061, %v2382
      %v2392 = vadd.f32 %v2027, %v2348
      %v2393 = vadd.f32 %v2063, %v2384
      %v2394 = vadd.f32 %v2030, %v2351
      %v2395 = vadd.f32 %v2066, %v2387
      %v2396 = vpack.c.bf16 %v1239, %v1239
      %v2397 = vpack.c.bf16 %v1246, %v1246
      %s2398 = scalar_lea.vmem %s3, 768
      %v2399 = vld [vmem:[%s2398] sm:$0xff]
      %v2400 = vld [vmem:[%s2398 + $0x8] sm:$0xff]
      %v2401 = vld [vmem:[%s2398 + $0x10] sm:$0xff]
      %v2402 = vld [vmem:[%s2398 + $0x18] sm:$0xff]
      %v2403 = vld [vmem:[%s2398 + $0x20] sm:$0xff]
      %v2404 = vld [vmem:[%s2398 + $0x28] sm:$0xff]
      %v2405 = vld [vmem:[%s2398 + $0x30] sm:$0xff]
      %v2406 = vld [vmem:[%s2398 + $0x38] sm:$0xff]
      %v2407 = vld [vmem:[%s2398 + $0x40] sm:$0xff]
      %v2408 = vld [vmem:[%s2398 + $0x48] sm:$0xff]
      %v2409 = vld [vmem:[%s2398 + $0x50] sm:$0xff]
      %v2410 = vld [vmem:[%s2398 + $0x58] sm:$0xff]
      %v2411 = vld [vmem:[%s2398 + $0x60] sm:$0xff]
      %v2412 = vld [vmem:[%s2398 + $0x68] sm:$0xff]
      %v2413 = vld [vmem:[%s2398 + $0x70] sm:$0xff]
      %v2414 = vld [vmem:[%s2398 + $0x78] sm:$0xff]
      %v2415 = vld [vmem:[%s2398 + $0x80] sm:$0xff]
      %v2416 = vld [vmem:[%s2398 + $0x88] sm:$0xff]
      %v2417 = vld [vmem:[%s2398 + $0x90] sm:$0xff]
      %v2418 = vld [vmem:[%s2398 + $0x98] sm:$0xff]
      %v2419 = vld [vmem:[%s2398 + $0xa0] sm:$0xff]
      %v2420 = vld [vmem:[%s2398 + $0xa8] sm:$0xff]
      %v2421 = vld [vmem:[%s2398 + $0xb0] sm:$0xff]
      %v2422 = vld [vmem:[%s2398 + $0xb8] sm:$0xff]
      %v2423 = vld [vmem:[%s2398 + $0xc0] sm:$0xff]
      %v2424 = vld [vmem:[%s2398 + $0xc8] sm:$0xff]
      %v2425 = vld [vmem:[%s2398 + $0xd0] sm:$0xff]
      %v2426 = vld [vmem:[%s2398 + $0xd8] sm:$0xff]
      %v2427 = vld [vmem:[%s2398 + $0xe0] sm:$0xff]
      %v2428 = vld [vmem:[%s2398 + $0xe8] sm:$0xff]
      %v2429 = vld [vmem:[%s2398 + $0xf0] sm:$0xff]
      %v2430 = vld [vmem:[%s2398 + $0xf8] sm:$0xff]
      %v2433 = vunpack.c.l.b16 %v2396
      %v2434 = vunpack.c.l.b16 %v2397
      %v2435 = vsel %vm482, %v1458, %v1456
      %v2436 = vsel %vm485, %v1460, %v2435
      %v2437 = vsel %vm488, %v1462, %v2436
      %v2438 = vsel %vm491, %v1464, %v2437
      %v2439 = vsel %vm494, %v1466, %v2438
      %v2440 = vsel %vm497, %v1468, %v2439
      %v2441 = vsel %vm1506, %v1470, %v2440
      %v2442 = vsel %vm482, %v1459, %v1457
      %v2443 = vsel %vm485, %v1461, %v2442
      %v2444 = vsel %vm488, %v1463, %v2443
      %v2445 = vsel %vm491, %v1465, %v2444
      %v2446 = vsel %vm494, %v1467, %v2445
      %v2447 = vsel %vm497, %v1469, %v2446
      %v2448 = vsel %vm1506, %v1471, %v2447
      %v2449 = vsel %vm482, %v1474, %v1472
      %v2450 = vsel %vm485, %v1476, %v2449
      %v2451 = vsel %vm488, %v1478, %v2450
      %v2452 = vsel %vm491, %v1480, %v2451
      %v2453 = vsel %vm494, %v1482, %v2452
      %v2454 = vsel %vm497, %v1484, %v2453
      %v2455 = vsel %vm1506, %v1486, %v2454
      %v2456 = vsel %vm482, %v1475, %v1473
      %v2457 = vsel %vm485, %v1477, %v2456
      %v2458 = vsel %vm488, %v1479, %v2457
      %v2459 = vsel %vm491, %v1481, %v2458
      %v2460 = vsel %vm494, %v1483, %v2459
      %v2461 = vsel %vm497, %v1485, %v2460
      %v2462 = vsel %vm1506, %v1487, %v2461
      %v2463 = vsel %vm482, %v1490, %v1488
      %v2464 = vsel %vm485, %v1492, %v2463
      %v2465 = vsel %vm488, %v1494, %v2464
      %v2466 = vsel %vm491, %v1496, %v2465
      %v2467 = vsel %vm494, %v1498, %v2466
      %v2468 = vsel %vm497, %v2106, %v2467
      %v2469 = vsel %vm1506, %v2433, %v2468
      %v2470 = vsel %vm482, %v1491, %v1489
      %v2471 = vsel %vm485, %v1493, %v2470
      %v2472 = vsel %vm488, %v1495, %v2471
      %v2473 = vsel %vm491, %v1497, %v2472
      %v2474 = vsel %vm494, %v1499, %v2473
      %v2475 = vsel %vm497, %v2107, %v2474
      %v2476 = vsel %vm1506, %v2434, %v2475
      %v2477 = vpack.c.b16 %v2455, %v2441
      %v2478 = vpack.c.b16 %v2462, %v2448
      %v2479 = vpack.c.b16 %v2469, %v2469
      %v2480 = vpack.c.b16 %v2476, %v2476
      %v2517 = vunpack.c.l.b16 %v2399
      %v2518 = vunpack.c.h.b16 %v2399
      %v2519 = vunpack.c.l.b16 %v2400
      %v2520 = vunpack.c.h.b16 %v2400
      %v2521 = vunpack.c.l.b16 %v2401
      %v2522 = vunpack.c.h.b16 %v2401
      %v2523 = vunpack.c.l.b16 %v2402
      %v2524 = vunpack.c.h.b16 %v2402
      %v2525 = vunpack.c.l.b16 %v2403
      %v2526 = vunpack.c.h.b16 %v2403
      %v2527 = vunpack.c.l.b16 %v2404
      %v2528 = vunpack.c.h.b16 %v2404
      %v2529 = vunpack.c.l.b16 %v2405
      %v2530 = vunpack.c.h.b16 %v2405
      %v2531 = vunpack.c.l.b16 %v2406
      %v2532 = vunpack.c.h.b16 %v2406
      %v2533 = vunpack.c.l.b16 %v2407
      %v2534 = vunpack.c.h.b16 %v2407
      %v2535 = vunpack.c.l.b16 %v2408
      %v2536 = vunpack.c.h.b16 %v2408
      %v2537 = vunpack.c.l.b16 %v2409
      %v2538 = vunpack.c.h.b16 %v2409
      %v2539 = vunpack.c.l.b16 %v2410
      %v2540 = vunpack.c.h.b16 %v2410
      %v2541 = vunpack.c.l.b16 %v2411
      %v2542 = vunpack.c.h.b16 %v2411
      %v2543 = vunpack.c.l.b16 %v2412
      %v2544 = vunpack.c.h.b16 %v2412
      %v2545 = vunpack.c.l.b16 %v2413
      %v2546 = vunpack.c.h.b16 %v2413
      %v2547 = vunpack.c.l.b16 %v2414
      %v2548 = vunpack.c.h.b16 %v2414
      %v2549 = vunpack.c.l.b16 %v2415
      %v2550 = vunpack.c.h.b16 %v2415
      %v2551 = vunpack.c.l.b16 %v2416
      %v2552 = vunpack.c.h.b16 %v2416
      %v2553 = vunpack.c.l.b16 %v2417
      %v2554 = vunpack.c.h.b16 %v2417
      %v2555 = vunpack.c.l.b16 %v2418
      %v2556 = vunpack.c.h.b16 %v2418
      %v2557 = vunpack.c.l.b16 %v2419
      %v2558 = vunpack.c.h.b16 %v2419
      %v2559 = vunpack.c.l.b16 %v2420
      %v2560 = vunpack.c.h.b16 %v2420
      %v2561 = vunpack.c.l.b16 %v2421
      %v2562 = vunpack.c.h.b16 %v2421
      %v2563 = vunpack.c.l.b16 %v2422
      %v2564 = vunpack.c.h.b16 %v2422
      %v2565 = vunpack.c.l.b16 %v2423
      %v2566 = vunpack.c.h.b16 %v2423
      %v2567 = vunpack.c.l.b16 %v2424
      %v2568 = vunpack.c.h.b16 %v2424
      %v2569 = vunpack.c.l.b16 %v2425
      %v2570 = vunpack.c.h.b16 %v2425
      %v2571 = vunpack.c.l.b16 %v2426
      %v2572 = vunpack.c.h.b16 %v2426
      %v2573 = vunpack.c.l.b16 %v2427
      %v2574 = vunpack.c.h.b16 %v2427
      %v2575 = vunpack.c.l.b16 %v2428
      %v2576 = vunpack.c.h.b16 %v2428
      %v2577 = vunpack.c.l.b16 %v2429
      %v2578 = vunpack.c.h.b16 %v2429
      %v2579 = vunpack.c.l.b16 %v2430
      %v2580 = vunpack.c.h.b16 %v2430
      %v2581 = vpack.c.b16 %v2519, %v2517
      %v2582 = vpack.c.b16 %v2520, %v2518
      %v2583 = vpack.c.b16 %v2523, %v2521
      %v2584 = vpack.c.b16 %v2524, %v2522
      %v2585 = vpack.c.b16 %v2527, %v2525
      %v2586 = vpack.c.b16 %v2528, %v2526
      %v2587 = vpack.c.b16 %v2531, %v2529
      %v2588 = vpack.c.b16 %v2532, %v2530
      %v2589 = vpack.c.b16 %v2535, %v2533
      %v2590 = vpack.c.b16 %v2536, %v2534
      %v2591 = vpack.c.b16 %v2539, %v2537
      %v2592 = vpack.c.b16 %v2540, %v2538
      %v2593 = vpack.c.b16 %v2543, %v2541
      %v2594 = vpack.c.b16 %v2544, %v2542
      %v2595 = vpack.c.b16 %v2547, %v2545
      %v2596 = vpack.c.b16 %v2548, %v2546
      %v2597 = vpack.c.b16 %v2551, %v2549
      %v2598 = vpack.c.b16 %v2552, %v2550
      %v2599 = vpack.c.b16 %v2555, %v2553
      %v2600 = vpack.c.b16 %v2556, %v2554
      %v2601 = vpack.c.b16 %v2559, %v2557
      %v2602 = vpack.c.b16 %v2560, %v2558
      %v2603 = vpack.c.b16 %v2563, %v2561
      %v2604 = vpack.c.b16 %v2564, %v2562
      %v2605 = vpack.c.b16 %v2567, %v2565
      %v2606 = vpack.c.b16 %v2568, %v2566
      %v2607 = vpack.c.b16 %v2571, %v2569
      %v2608 = vpack.c.b16 %v2572, %v2570
      %v2609 = vpack.c.b16 %v2575, %v2573
      %v2610 = vpack.c.b16 %v2576, %v2574
      %v2611 = vpack.c.b16 %v2579, %v2577
      %v2612 = vpack.c.b16 %v2580, %v2578
      %2645 = vmatpush.bf16.msra.mxu0 %v2595
      %2646 = vmatpush.bf16.msra.mxu0 %v2593
      %2647 = vmatpush.bf16.msra.mxu0 %v2591
      %2648 = vmatpush.bf16.msra.mxu0 %v2589
      %2649 = vmatpush.bf16.msra.mxu0 %v2587
      %2650 = vmatpush.bf16.msra.mxu0 %v2585
      %2651 = vmatpush.bf16.msra.mxu0 %v2583
      %2652 = vmatpush.bf16.msra.mxu0 %v2581
      %2653 = vmatmul.bf16.gmra.mxu0 %v2477
      %v2654 = vpop.f32.mrf.mxu0
      %v2655 = vadd.f32 0.0, %v2654
      %v2656 = vpop.f32.mrf.mxu0
      %v2657 = vadd.f32 0.0, %v2656
      %2658 = vmatmul.bf16.gmra.mxu0 %v2479
      %v2659 = vpop.f32.mrf.mxu0
      %v2660 = vadd.f32 0.0, %v2659
      %v2661 = vpop.f32.mrf.mxu0
      %2662 = vdwg.mxu0
      %2663 = vmatpush.bf16.msra.mxu0 %v2611
      %2664 = vmatpush.bf16.msra.mxu0 %v2609
      %2665 = vmatpush.bf16.msra.mxu0 %v2607
      %2666 = vmatpush.bf16.msra.mxu0 %v2605
      %2667 = vmatpush.bf16.msra.mxu0 %v2603
      %2668 = vmatpush.bf16.msra.mxu0 %v2601
      %2669 = vmatpush.bf16.msra.mxu0 %v2599
      %2670 = vmatpush.bf16.msra.mxu0 %v2597
      %2671 = vmatmul.bf16.gmra.mxu0 %v2478
      %v2672 = vpop.f32.mrf.mxu0
      %v2673 = vadd.f32 %v2655, %v2672
      %v2674 = vpop.f32.mrf.mxu0
      %v2675 = vadd.f32 %v2657, %v2674
      %2676 = vmatmul.bf16.gmra.mxu0 %v2480
      %v2677 = vpop.f32.mrf.mxu0
      %v2678 = vadd.f32 %v2660, %v2677
      %v2679 = vpop.f32.mrf.mxu0
      %2680 = vdwg.mxu0
      %2681 = vmatpush.bf16.msra.mxu0 %v2596
      %2682 = vmatpush.bf16.msra.mxu0 %v2594
      %2683 = vmatpush.bf16.msra.mxu0 %v2592
      %2684 = vmatpush.bf16.msra.mxu0 %v2590
      %2685 = vmatpush.bf16.msra.mxu0 %v2588
      %2686 = vmatpush.bf16.msra.mxu0 %v2586
      %2687 = vmatpush.bf16.msra.mxu0 %v2584
      %2688 = vmatpush.bf16.msra.mxu0 %v2582
      %2689 = vmatmul.bf16.gmra.mxu0 %v2477
      %v2690 = vpop.f32.mrf.mxu0
      %v2691 = vadd.f32 0.0, %v2690
      %v2692 = vpop.f32.mrf.mxu0
      %v2693 = vadd.f32 0.0, %v2692
      %2694 = vmatmul.bf16.gmra.mxu0 %v2479
      %v2695 = vpop.f32.mrf.mxu0
      %v2696 = vadd.f32 0.0, %v2695
      %v2697 = vpop.f32.mrf.mxu0
      %2698 = vdwg.mxu0
      %2699 = vmatpush.bf16.msra.mxu0 %v2612
      %2700 = vmatpush.bf16.msra.mxu0 %v2610
      %2701 = vmatpush.bf16.msra.mxu0 %v2608
      %2702 = vmatpush.bf16.msra.mxu0 %v2606
      %2703 = vmatpush.bf16.msra.mxu0 %v2604
      %2704 = vmatpush.bf16.msra.mxu0 %v2602
      %2705 = vmatpush.bf16.msra.mxu0 %v2600
      %2706 = vmatpush.bf16.msra.mxu0 %v2598
      %2707 = vmatmul.bf16.gmra.mxu0 %v2478
      %v2708 = vpop.f32.mrf.mxu0
      %v2709 = vadd.f32 %v2691, %v2708
      %v2710 = vpop.f32.mrf.mxu0
      %v2711 = vadd.f32 %v2693, %v2710
      %2712 = vmatmul.bf16.gmra.mxu0 %v2480
      %v2713 = vpop.f32.mrf.mxu0
      %v2714 = vadd.f32 %v2696, %v2713
      %v2715 = vpop.f32.mrf.mxu0
      %2716 = vdwg.mxu0
      %v2717 = vadd.f32 %v2390, %v2673
      %v2718 = vadd.f32 %v2391, %v2709
      %v2719 = vadd.f32 %v2392, %v2675
      %v2720 = vadd.f32 %v2393, %v2711
      %v2721 = vadd.f32 %v2394, %v2678
      %v2722 = vadd.f32 %v2395, %v2714
      %v2723 = vpack.c.bf16 %v1253, %v1253
      %v2724 = vpack.c.bf16 %v1260, %v1260
      %s2725 = scalar_lea.vmem %s3, 1024
      %v2726 = vld [vmem:[%s2725] sm:$0xff]
      %v2727 = vld [vmem:[%s2725 + $0x8] sm:$0xff]
      %v2728 = vld [vmem:[%s2725 + $0x10] sm:$0xff]
      %v2729 = vld [vmem:[%s2725 + $0x18] sm:$0xff]
      %v2730 = vld [vmem:[%s2725 + $0x20] sm:$0xff]
      %v2731 = vld [vmem:[%s2725 + $0x28] sm:$0xff]
      %v2732 = vld [vmem:[%s2725 + $0x30] sm:$0xff]
      %v2733 = vld [vmem:[%s2725 + $0x38] sm:$0xff]
      %v2734 = vld [vmem:[%s2725 + $0x40] sm:$0xff]
      %v2735 = vld [vmem:[%s2725 + $0x48] sm:$0xff]
      %v2736 = vld [vmem:[%s2725 + $0x50] sm:$0xff]
      %v2737 = vld [vmem:[%s2725 + $0x58] sm:$0xff]
      %v2738 = vld [vmem:[%s2725 + $0x60] sm:$0xff]
      %v2739 = vld [vmem:[%s2725 + $0x68] sm:$0xff]
      %v2740 = vld [vmem:[%s2725 + $0x70] sm:$0xff]
      %v2741 = vld [vmem:[%s2725 + $0x78] sm:$0xff]
      %v2742 = vld [vmem:[%s2725 + $0x80] sm:$0xff]
      %v2743 = vld [vmem:[%s2725 + $0x88] sm:$0xff]
      %v2744 = vld [vmem:[%s2725 + $0x90] sm:$0xff]
      %v2745 = vld [vmem:[%s2725 + $0x98] sm:$0xff]
      %v2746 = vld [vmem:[%s2725 + $0xa0] sm:$0xff]
      %v2747 = vld [vmem:[%s2725 + $0xa8] sm:$0xff]
      %v2748 = vld [vmem:[%s2725 + $0xb0] sm:$0xff]
      %v2749 = vld [vmem:[%s2725 + $0xb8] sm:$0xff]
      %v2750 = vld [vmem:[%s2725 + $0xc0] sm:$0xff]
      %v2751 = vld [vmem:[%s2725 + $0xc8] sm:$0xff]
      %v2752 = vld [vmem:[%s2725 + $0xd0] sm:$0xff]
      %v2753 = vld [vmem:[%s2725 + $0xd8] sm:$0xff]
      %v2754 = vld [vmem:[%s2725 + $0xe0] sm:$0xff]
      %v2755 = vld [vmem:[%s2725 + $0xe8] sm:$0xff]
      %v2756 = vld [vmem:[%s2725 + $0xf0] sm:$0xff]
      %v2757 = vld [vmem:[%s2725 + $0xf8] sm:$0xff]
      %v2760 = vunpack.c.l.b16 %v2723
      %v2761 = vunpack.c.l.b16 %v2724
      %v2762 = vsel %vm482, %v1460, %v1458
      %v2763 = vsel %vm485, %v1462, %v2762
      %v2764 = vsel %vm488, %v1464, %v2763
      %v2765 = vsel %vm491, %v1466, %v2764
      %v2766 = vsel %vm494, %v1468, %v2765
      %v2767 = vsel %vm497, %v1470, %v2766
      %v2768 = vsel %vm1506, %v1472, %v2767
      %v2769 = vsel %vm482, %v1461, %v1459
      %v2770 = vsel %vm485, %v1463, %v2769
      %v2771 = vsel %vm488, %v1465, %v2770
      %v2772 = vsel %vm491, %v1467, %v2771
      %v2773 = vsel %vm494, %v1469, %v2772
      %v2774 = vsel %vm497, %v1471, %v2773
      %v2775 = vsel %vm1506, %v1473, %v2774
      %v2776 = vsel %vm482, %v1476, %v1474
      %v2777 = vsel %vm485, %v1478, %v2776
      %v2778 = vsel %vm488, %v1480, %v2777
      %v2779 = vsel %vm491, %v1482, %v2778
      %v2780 = vsel %vm494, %v1484, %v2779
      %v2781 = vsel %vm497, %v1486, %v2780
      %v2782 = vsel %vm1506, %v1488, %v2781
      %v2783 = vsel %vm482, %v1477, %v1475
      %v2784 = vsel %vm485, %v1479, %v2783
      %v2785 = vsel %vm488, %v1481, %v2784
      %v2786 = vsel %vm491, %v1483, %v2785
      %v2787 = vsel %vm494, %v1485, %v2786
      %v2788 = vsel %vm497, %v1487, %v2787
      %v2789 = vsel %vm1506, %v1489, %v2788
      %v2790 = vsel %vm482, %v1492, %v1490
      %v2791 = vsel %vm485, %v1494, %v2790
      %v2792 = vsel %vm488, %v1496, %v2791
      %v2793 = vsel %vm491, %v1498, %v2792
      %v2794 = vsel %vm494, %v2106, %v2793
      %v2795 = vsel %vm497, %v2433, %v2794
      %v2796 = vsel %vm1506, %v2760, %v2795
      %v2797 = vsel %vm482, %v1493, %v1491
      %v2798 = vsel %vm485, %v1495, %v2797
      %v2799 = vsel %vm488, %v1497, %v2798
      %v2800 = vsel %vm491, %v1499, %v2799
      %v2801 = vsel %vm494, %v2107, %v2800
      %v2802 = vsel %vm497, %v2434, %v2801
      %v2803 = vsel %vm1506, %v2761, %v2802
      %v2804 = vpack.c.b16 %v2782, %v2768
      %v2805 = vpack.c.b16 %v2789, %v2775
      %v2806 = vpack.c.b16 %v2796, %v2796
      %v2807 = vpack.c.b16 %v2803, %v2803
      %v2844 = vunpack.c.l.b16 %v2726
      %v2845 = vunpack.c.h.b16 %v2726
      %v2846 = vunpack.c.l.b16 %v2727
      %v2847 = vunpack.c.h.b16 %v2727
      %v2848 = vunpack.c.l.b16 %v2728
      %v2849 = vunpack.c.h.b16 %v2728
      %v2850 = vunpack.c.l.b16 %v2729
      %v2851 = vunpack.c.h.b16 %v2729
      %v2852 = vunpack.c.l.b16 %v2730
      %v2853 = vunpack.c.h.b16 %v2730
      %v2854 = vunpack.c.l.b16 %v2731
      %v2855 = vunpack.c.h.b16 %v2731
      %v2856 = vunpack.c.l.b16 %v2732
      %v2857 = vunpack.c.h.b16 %v2732
      %v2858 = vunpack.c.l.b16 %v2733
      %v2859 = vunpack.c.h.b16 %v2733
      %v2860 = vunpack.c.l.b16 %v2734
      %v2861 = vunpack.c.h.b16 %v2734
      %v2862 = vunpack.c.l.b16 %v2735
      %v2863 = vunpack.c.h.b16 %v2735
      %v2864 = vunpack.c.l.b16 %v2736
      %v2865 = vunpack.c.h.b16 %v2736
      %v2866 = vunpack.c.l.b16 %v2737
      %v2867 = vunpack.c.h.b16 %v2737
      %v2868 = vunpack.c.l.b16 %v2738
      %v2869 = vunpack.c.h.b16 %v2738
      %v2870 = vunpack.c.l.b16 %v2739
      %v2871 = vunpack.c.h.b16 %v2739
      %v2872 = vunpack.c.l.b16 %v2740
      %v2873 = vunpack.c.h.b16 %v2740
      %v2874 = vunpack.c.l.b16 %v2741
      %v2875 = vunpack.c.h.b16 %v2741
      %v2876 = vunpack.c.l.b16 %v2742
      %v2877 = vunpack.c.h.b16 %v2742
      %v2878 = vunpack.c.l.b16 %v2743
      %v2879 = vunpack.c.h.b16 %v2743
      %v2880 = vunpack.c.l.b16 %v2744
      %v2881 = vunpack.c.h.b16 %v2744
      %v2882 = vunpack.c.l.b16 %v2745
      %v2883 = vunpack.c.h.b16 %v2745
      %v2884 = vunpack.c.l.b16 %v2746
      %v2885 = vunpack.c.h.b16 %v2746
      %v2886 = vunpack.c.l.b16 %v2747
      %v2887 = vunpack.c.h.b16 %v2747
      %v2888 = vunpack.c.l.b16 %v2748
      %v2889 = vunpack.c.h.b16 %v2748
      %v2890 = vunpack.c.l.b16 %v2749
      %v2891 = vunpack.c.h.b16 %v2749
      %v2892 = vunpack.c.l.b16 %v2750
      %v2893 = vunpack.c.h.b16 %v2750
      %v2894 = vunpack.c.l.b16 %v2751
      %v2895 = vunpack.c.h.b16 %v2751
      %v2896 = vunpack.c.l.b16 %v2752
      %v2897 = vunpack.c.h.b16 %v2752
      %v2898 = vunpack.c.l.b16 %v2753
      %v2899 = vunpack.c.h.b16 %v2753
      %v2900 = vunpack.c.l.b16 %v2754
      %v2901 = vunpack.c.h.b16 %v2754
      %v2902 = vunpack.c.l.b16 %v2755
      %v2903 = vunpack.c.h.b16 %v2755
      %v2904 = vunpack.c.l.b16 %v2756
      %v2905 = vunpack.c.h.b16 %v2756
      %v2906 = vunpack.c.l.b16 %v2757
      %v2907 = vunpack.c.h.b16 %v2757
      %v2908 = vpack.c.b16 %v2846, %v2844
      %v2909 = vpack.c.b16 %v2847, %v2845
      %v2910 = vpack.c.b16 %v2850, %v2848
      %v2911 = vpack.c.b16 %v2851, %v2849
      %v2912 = vpack.c.b16 %v2854, %v2852
      %v2913 = vpack.c.b16 %v2855, %v2853
      %v2914 = vpack.c.b16 %v2858, %v2856
      %v2915 = vpack.c.b16 %v2859, %v2857
      %v2916 = vpack.c.b16 %v2862, %v2860
      %v2917 = vpack.c.b16 %v2863, %v2861
      %v2918 = vpack.c.b16 %v2866, %v2864
      %v2919 = vpack.c.b16 %v2867, %v2865
      %v2920 = vpack.c.b16 %v2870, %v2868
      %v2921 = vpack.c.b16 %v2871, %v2869
      %v2922 = vpack.c.b16 %v2874, %v2872
      %v2923 = vpack.c.b16 %v2875, %v2873
      %v2924 = vpack.c.b16 %v2878, %v2876
      %v2925 = vpack.c.b16 %v2879, %v2877
      %v2926 = vpack.c.b16 %v2882, %v2880
      %v2927 = vpack.c.b16 %v2883, %v2881
      %v2928 = vpack.c.b16 %v2886, %v2884
      %v2929 = vpack.c.b16 %v2887, %v2885
      %v2930 = vpack.c.b16 %v2890, %v2888
      %v2931 = vpack.c.b16 %v2891, %v2889
      %v2932 = vpack.c.b16 %v2894, %v2892
      %v2933 = vpack.c.b16 %v2895, %v2893
      %v2934 = vpack.c.b16 %v2898, %v2896
      %v2935 = vpack.c.b16 %v2899, %v2897
      %v2936 = vpack.c.b16 %v2902, %v2900
      %v2937 = vpack.c.b16 %v2903, %v2901
      %v2938 = vpack.c.b16 %v2906, %v2904
      %v2939 = vpack.c.b16 %v2907, %v2905
      %2972 = vmatpush.bf16.msra.mxu0 %v2922
      %2973 = vmatpush.bf16.msra.mxu0 %v2920
      %2974 = vmatpush.bf16.msra.mxu0 %v2918
      %2975 = vmatpush.bf16.msra.mxu0 %v2916
      %2976 = vmatpush.bf16.msra.mxu0 %v2914
      %2977 = vmatpush.bf16.msra.mxu0 %v2912
      %2978 = vmatpush.bf16.msra.mxu0 %v2910
      %2979 = vmatpush.bf16.msra.mxu0 %v2908
      %2980 = vmatmul.bf16.gmra.mxu0 %v2804
      %v2981 = vpop.f32.mrf.mxu0
      %v2982 = vadd.f32 0.0, %v2981
      %v2983 = vpop.f32.mrf.mxu0
      %v2984 = vadd.f32 0.0, %v2983
      %2985 = vmatmul.bf16.gmra.mxu0 %v2806
      %v2986 = vpop.f32.mrf.mxu0
      %v2987 = vadd.f32 0.0, %v2986
      %v2988 = vpop.f32.mrf.mxu0
      %2989 = vdwg.mxu0
      %2990 = vmatpush.bf16.msra.mxu0 %v2938
      %2991 = vmatpush.bf16.msra.mxu0 %v2936
      %2992 = vmatpush.bf16.msra.mxu0 %v2934
      %2993 = vmatpush.bf16.msra.mxu0 %v2932
      %2994 = vmatpush.bf16.msra.mxu0 %v2930
      %2995 = vmatpush.bf16.msra.mxu0 %v2928
      %2996 = vmatpush.bf16.msra.mxu0 %v2926
      %2997 = vmatpush.bf16.msra.mxu0 %v2924
      %2998 = vmatmul.bf16.gmra.mxu0 %v2805
      %v2999 = vpop.f32.mrf.mxu0
      %v3000 = vadd.f32 %v2982, %v2999
      %v3001 = vpop.f32.mrf.mxu0
      %v3002 = vadd.f32 %v2984, %v3001
      %3003 = vmatmul.bf16.gmra.mxu0 %v2807
      %v3004 = vpop.f32.mrf.mxu0
      %v3005 = vadd.f32 %v2987, %v3004
      %v3006 = vpop.f32.mrf.mxu0
      %3007 = vdwg.mxu0
      %3008 = vmatpush.bf16.msra.mxu0 %v2923
      %3009 = vmatpush.bf16.msra.mxu0 %v2921
      %3010 = vmatpush.bf16.msra.mxu0 %v2919
      %3011 = vmatpush.bf16.msra.mxu0 %v2917
      %3012 = vmatpush.bf16.msra.mxu0 %v2915
      %3013 = vmatpush.bf16.msra.mxu0 %v2913
      %3014 = vmatpush.bf16.msra.mxu0 %v2911
      %3015 = vmatpush.bf16.msra.mxu0 %v2909
      %3016 = vmatmul.bf16.gmra.mxu0 %v2804
      %v3017 = vpop.f32.mrf.mxu0
      %v3018 = vadd.f32 0.0, %v3017
      %v3019 = vpop.f32.mrf.mxu0
      %v3020 = vadd.f32 0.0, %v3019
      %3021 = vmatmul.bf16.gmra.mxu0 %v2806
      %v3022 = vpop.f32.mrf.mxu0
      %v3023 = vadd.f32 0.0, %v3022
      %v3024 = vpop.f32.mrf.mxu0
      %3025 = vdwg.mxu0
      %3026 = vmatpush.bf16.msra.mxu0 %v2939
      %3027 = vmatpush.bf16.msra.mxu0 %v2937
      %3028 = vmatpush.bf16.msra.mxu0 %v2935
      %3029 = vmatpush.bf16.msra.mxu0 %v2933
      %3030 = vmatpush.bf16.msra.mxu0 %v2931
      %3031 = vmatpush.bf16.msra.mxu0 %v2929
      %3032 = vmatpush.bf16.msra.mxu0 %v2927
      %3033 = vmatpush.bf16.msra.mxu0 %v2925
      %3034 = vmatmul.bf16.gmra.mxu0 %v2805
      %v3035 = vpop.f32.mrf.mxu0
      %v3036 = vadd.f32 %v3018, %v3035
      %v3037 = vpop.f32.mrf.mxu0
      %v3038 = vadd.f32 %v3020, %v3037
      %3039 = vmatmul.bf16.gmra.mxu0 %v2807
      %v3040 = vpop.f32.mrf.mxu0
      %v3041 = vadd.f32 %v3023, %v3040
      %v3042 = vpop.f32.mrf.mxu0
      %3043 = vdwg.mxu0
      %v3044 = vadd.f32 %v2717, %v3000
      %v3045 = vadd.f32 %v2718, %v3036
      %v3046 = vadd.f32 %v2719, %v3002
      %v3047 = vadd.f32 %v2720, %v3038
      %v3048 = vadd.f32 %v2721, %v3005
      %v3049 = vadd.f32 %v2722, %v3041
      %v3050 = vpack.c.bf16 %v1267, %v1267
      %v3051 = vpack.c.bf16 %v1274, %v1274
      %s3052 = scalar_lea.vmem %s3, 1280
      %v3053 = vld [vmem:[%s3052] sm:$0xff]
      %v3054 = vld [vmem:[%s3052 + $0x8] sm:$0xff]
      %v3055 = vld [vmem:[%s3052 + $0x10] sm:$0xff]
      %v3056 = vld [vmem:[%s3052 + $0x18] sm:$0xff]
      %v3057 = vld [vmem:[%s3052 + $0x20] sm:$0xff]
      %v3058 = vld [vmem:[%s3052 + $0x28] sm:$0xff]
      %v3059 = vld [vmem:[%s3052 + $0x30] sm:$0xff]
      %v3060 = vld [vmem:[%s3052 + $0x38] sm:$0xff]
      %v3061 = vld [vmem:[%s3052 + $0x40] sm:$0xff]
      %v3062 = vld [vmem:[%s3052 + $0x48] sm:$0xff]
      %v3063 = vld [vmem:[%s3052 + $0x50] sm:$0xff]
      %v3064 = vld [vmem:[%s3052 + $0x58] sm:$0xff]
      %v3065 = vld [vmem:[%s3052 + $0x60] sm:$0xff]
      %v3066 = vld [vmem:[%s3052 + $0x68] sm:$0xff]
      %v3067 = vld [vmem:[%s3052 + $0x70] sm:$0xff]
      %v3068 = vld [vmem:[%s3052 + $0x78] sm:$0xff]
      %v3069 = vld [vmem:[%s3052 + $0x80] sm:$0xff]
      %v3070 = vld [vmem:[%s3052 + $0x88] sm:$0xff]
      %v3071 = vld [vmem:[%s3052 + $0x90] sm:$0xff]
      %v3072 = vld [vmem:[%s3052 + $0x98] sm:$0xff]
      %v3073 = vld [vmem:[%s3052 + $0xa0] sm:$0xff]
      %v3074 = vld [vmem:[%s3052 + $0xa8] sm:$0xff]
      %v3075 = vld [vmem:[%s3052 + $0xb0] sm:$0xff]
      %v3076 = vld [vmem:[%s3052 + $0xb8] sm:$0xff]
      %v3077 = vld [vmem:[%s3052 + $0xc0] sm:$0xff]
      %v3078 = vld [vmem:[%s3052 + $0xc8] sm:$0xff]
      %v3079 = vld [vmem:[%s3052 + $0xd0] sm:$0xff]
      %v3080 = vld [vmem:[%s3052 + $0xd8] sm:$0xff]
      %v3081 = vld [vmem:[%s3052 + $0xe0] sm:$0xff]
      %v3082 = vld [vmem:[%s3052 + $0xe8] sm:$0xff]
      %v3083 = vld [vmem:[%s3052 + $0xf0] sm:$0xff]
      %v3084 = vld [vmem:[%s3052 + $0xf8] sm:$0xff]
      %v3087 = vunpack.c.l.b16 %v3050
      %v3088 = vunpack.c.l.b16 %v3051
      %v3089 = vsel %vm482, %v1462, %v1460
      %v3090 = vsel %vm485, %v1464, %v3089
      %v3091 = vsel %vm488, %v1466, %v3090
      %v3092 = vsel %vm491, %v1468, %v3091
      %v3093 = vsel %vm494, %v1470, %v3092
      %v3094 = vsel %vm497, %v1472, %v3093
      %v3095 = vsel %vm1506, %v1474, %v3094
      %v3096 = vsel %vm482, %v1463, %v1461
      %v3097 = vsel %vm485, %v1465, %v3096
      %v3098 = vsel %vm488, %v1467, %v3097
      %v3099 = vsel %vm491, %v1469, %v3098
      %v3100 = vsel %vm494, %v1471, %v3099
      %v3101 = vsel %vm497, %v1473, %v3100
      %v3102 = vsel %vm1506, %v1475, %v3101
      %v3103 = vsel %vm482, %v1478, %v1476
      %v3104 = vsel %vm485, %v1480, %v3103
      %v3105 = vsel %vm488, %v1482, %v3104
      %v3106 = vsel %vm491, %v1484, %v3105
      %v3107 = vsel %vm494, %v1486, %v3106
      %v3108 = vsel %vm497, %v1488, %v3107
      %v3109 = vsel %vm1506, %v1490, %v3108
      %v3110 = vsel %vm482, %v1479, %v1477
      %v3111 = vsel %vm485, %v1481, %v3110
      %v3112 = vsel %vm488, %v1483, %v3111
      %v3113 = vsel %vm491, %v1485, %v3112
      %v3114 = vsel %vm494, %v1487, %v3113
      %v3115 = vsel %vm497, %v1489, %v3114
      %v3116 = vsel %vm1506, %v1491, %v3115
      %v3117 = vsel %vm482, %v1494, %v1492
      %v3118 = vsel %vm485, %v1496, %v3117
      %v3119 = vsel %vm488, %v1498, %v3118
      %v3120 = vsel %vm491, %v2106, %v3119
      %v3121 = vsel %vm494, %v2433, %v3120
      %v3122 = vsel %vm497, %v2760, %v3121
      %v3123 = vsel %vm1506, %v3087, %v3122
      %v3124 = vsel %vm482, %v1495, %v1493
      %v3125 = vsel %vm485, %v1497, %v3124
      %v3126 = vsel %vm488, %v1499, %v3125
      %v3127 = vsel %vm491, %v2107, %v3126
      %v3128 = vsel %vm494, %v2434, %v3127
      %v3129 = vsel %vm497, %v2761, %v3128
      %v3130 = vsel %vm1506, %v3088, %v3129
      %v3131 = vpack.c.b16 %v3109, %v3095
      %v3132 = vpack.c.b16 %v3116, %v3102
      %v3133 = vpack.c.b16 %v3123, %v3123
      %v3134 = vpack.c.b16 %v3130, %v3130
      %v3171 = vunpack.c.l.b16 %v3053
      %v3172 = vunpack.c.h.b16 %v3053
      %v3173 = vunpack.c.l.b16 %v3054
      %v3174 = vunpack.c.h.b16 %v3054
      %v3175 = vunpack.c.l.b16 %v3055
      %v3176 = vunpack.c.h.b16 %v3055
      %v3177 = vunpack.c.l.b16 %v3056
      %v3178 = vunpack.c.h.b16 %v3056
      %v3179 = vunpack.c.l.b16 %v3057
      %v3180 = vunpack.c.h.b16 %v3057
      %v3181 = vunpack.c.l.b16 %v3058
      %v3182 = vunpack.c.h.b16 %v3058
      %v3183 = vunpack.c.l.b16 %v3059
      %v3184 = vunpack.c.h.b16 %v3059
      %v3185 = vunpack.c.l.b16 %v3060
      %v3186 = vunpack.c.h.b16 %v3060
      %v3187 = vunpack.c.l.b16 %v3061
      %v3188 = vunpack.c.h.b16 %v3061
      %v3189 = vunpack.c.l.b16 %v3062
      %v3190 = vunpack.c.h.b16 %v3062
      %v3191 = vunpack.c.l.b16 %v3063
      %v3192 = vunpack.c.h.b16 %v3063
      %v3193 = vunpack.c.l.b16 %v3064
      %v3194 = vunpack.c.h.b16 %v3064
      %v3195 = vunpack.c.l.b16 %v3065
      %v3196 = vunpack.c.h.b16 %v3065
      %v3197 = vunpack.c.l.b16 %v3066
      %v3198 = vunpack.c.h.b16 %v3066
      %v3199 = vunpack.c.l.b16 %v3067
      %v3200 = vunpack.c.h.b16 %v3067
      %v3201 = vunpack.c.l.b16 %v3068
      %v3202 = vunpack.c.h.b16 %v3068
      %v3203 = vunpack.c.l.b16 %v3069
      %v3204 = vunpack.c.h.b16 %v3069
      %v3205 = vunpack.c.l.b16 %v3070
      %v3206 = vunpack.c.h.b16 %v3070
      %v3207 = vunpack.c.l.b16 %v3071
      %v3208 = vunpack.c.h.b16 %v3071
      %v3209 = vunpack.c.l.b16 %v3072
      %v3210 = vunpack.c.h.b16 %v3072
      %v3211 = vunpack.c.l.b16 %v3073
      %v3212 = vunpack.c.h.b16 %v3073
      %v3213 = vunpack.c.l.b16 %v3074
      %v3214 = vunpack.c.h.b16 %v3074
      %v3215 = vunpack.c.l.b16 %v3075
      %v3216 = vunpack.c.h.b16 %v3075
      %v3217 = vunpack.c.l.b16 %v3076
      %v3218 = vunpack.c.h.b16 %v3076
      %v3219 = vunpack.c.l.b16 %v3077
      %v3220 = vunpack.c.h.b16 %v3077
      %v3221 = vunpack.c.l.b16 %v3078
      %v3222 = vunpack.c.h.b16 %v3078
      %v3223 = vunpack.c.l.b16 %v3079
      %v3224 = vunpack.c.h.b16 %v3079
      %v3225 = vunpack.c.l.b16 %v3080
      %v3226 = vunpack.c.h.b16 %v3080
      %v3227 = vunpack.c.l.b16 %v3081
      %v3228 = vunpack.c.h.b16 %v3081
      %v3229 = vunpack.c.l.b16 %v3082
      %v3230 = vunpack.c.h.b16 %v3082
      %v3231 = vunpack.c.l.b16 %v3083
      %v3232 = vunpack.c.h.b16 %v3083
      %v3233 = vunpack.c.l.b16 %v3084
      %v3234 = vunpack.c.h.b16 %v3084
      %v3235 = vpack.c.b16 %v3173, %v3171
      %v3236 = vpack.c.b16 %v3174, %v3172
      %v3237 = vpack.c.b16 %v3177, %v3175
      %v3238 = vpack.c.b16 %v3178, %v3176
      %v3239 = vpack.c.b16 %v3181, %v3179
      %v3240 = vpack.c.b16 %v3182, %v3180
      %v3241 = vpack.c.b16 %v3185, %v3183
      %v3242 = vpack.c.b16 %v3186, %v3184
      %v3243 = vpack.c.b16 %v3189, %v3187
      %v3244 = vpack.c.b16 %v3190, %v3188
      %v3245 = vpack.c.b16 %v3193, %v3191
      %v3246 = vpack.c.b16 %v3194, %v3192
      %v3247 = vpack.c.b16 %v3197, %v3195
      %v3248 = vpack.c.b16 %v3198, %v3196
      %v3249 = vpack.c.b16 %v3201, %v3199
      %v3250 = vpack.c.b16 %v3202, %v3200
      %v3251 = vpack.c.b16 %v3205, %v3203
      %v3252 = vpack.c.b16 %v3206, %v3204
      %v3253 = vpack.c.b16 %v3209, %v3207
      %v3254 = vpack.c.b16 %v3210, %v3208
      %v3255 = vpack.c.b16 %v3213, %v3211
      %v3256 = vpack.c.b16 %v3214, %v3212
      %v3257 = vpack.c.b16 %v3217, %v3215
      %v3258 = vpack.c.b16 %v3218, %v3216
      %v3259 = vpack.c.b16 %v3221, %v3219
      %v3260 = vpack.c.b16 %v3222, %v3220
      %v3261 = vpack.c.b16 %v3225, %v3223
      %v3262 = vpack.c.b16 %v3226, %v3224
      %v3263 = vpack.c.b16 %v3229, %v3227
      %v3264 = vpack.c.b16 %v3230, %v3228
      %v3265 = vpack.c.b16 %v3233, %v3231
      %v3266 = vpack.c.b16 %v3234, %v3232
      %3299 = vmatpush.bf16.msra.mxu0 %v3249
      %3300 = vmatpush.bf16.msra.mxu0 %v3247
      %3301 = vmatpush.bf16.msra.mxu0 %v3245
      %3302 = vmatpush.bf16.msra.mxu0 %v3243
      %3303 = vmatpush.bf16.msra.mxu0 %v3241
      %3304 = vmatpush.bf16.msra.mxu0 %v3239
      %3305 = vmatpush.bf16.msra.mxu0 %v3237
      %3306 = vmatpush.bf16.msra.mxu0 %v3235
      %3307 = vmatmul.bf16.gmra.mxu0 %v3131
      %v3308 = vpop.f32.mrf.mxu0
      %v3309 = vadd.f32 0.0, %v3308
      %v3310 = vpop.f32.mrf.mxu0
      %v3311 = vadd.f32 0.0, %v3310
      %3312 = vmatmul.bf16.gmra.mxu0 %v3133
      %v3313 = vpop.f32.mrf.mxu0
      %v3314 = vadd.f32 0.0, %v3313
      %v3315 = vpop.f32.mrf.mxu0
      %3316 = vdwg.mxu0
      %3317 = vmatpush.bf16.msra.mxu0 %v3265
      %3318 = vmatpush.bf16.msra.mxu0 %v3263
      %3319 = vmatpush.bf16.msra.mxu0 %v3261
      %3320 = vmatpush.bf16.msra.mxu0 %v3259
      %3321 = vmatpush.bf16.msra.mxu0 %v3257
      %3322 = vmatpush.bf16.msra.mxu0 %v3255
      %3323 = vmatpush.bf16.msra.mxu0 %v3253
      %3324 = vmatpush.bf16.msra.mxu0 %v3251
      %3325 = vmatmul.bf16.gmra.mxu0 %v3132
      %v3326 = vpop.f32.mrf.mxu0
      %v3327 = vadd.f32 %v3309, %v3326
      %v3328 = vpop.f32.mrf.mxu0
      %v3329 = vadd.f32 %v3311, %v3328
      %3330 = vmatmul.bf16.gmra.mxu0 %v3134
      %v3331 = vpop.f32.mrf.mxu0
      %v3332 = vadd.f32 %v3314, %v3331
      %v3333 = vpop.f32.mrf.mxu0
      %3334 = vdwg.mxu0
      %3335 = vmatpush.bf16.msra.mxu0 %v3250
      %3336 = vmatpush.bf16.msra.mxu0 %v3248
      %3337 = vmatpush.bf16.msra.mxu0 %v3246
      %3338 = vmatpush.bf16.msra.mxu0 %v3244
      %3339 = vmatpush.bf16.msra.mxu0 %v3242
      %3340 = vmatpush.bf16.msra.mxu0 %v3240
      %3341 = vmatpush.bf16.msra.mxu0 %v3238
      %3342 = vmatpush.bf16.msra.mxu0 %v3236
      %3343 = vmatmul.bf16.gmra.mxu0 %v3131
      %v3344 = vpop.f32.mrf.mxu0
      %v3345 = vadd.f32 0.0, %v3344
      %v3346 = vpop.f32.mrf.mxu0
      %v3347 = vadd.f32 0.0, %v3346
      %3348 = vmatmul.bf16.gmra.mxu0 %v3133
      %v3349 = vpop.f32.mrf.mxu0
      %v3350 = vadd.f32 0.0, %v3349
      %v3351 = vpop.f32.mrf.mxu0
      %3352 = vdwg.mxu0
      %3353 = vmatpush.bf16.msra.mxu0 %v3266
      %3354 = vmatpush.bf16.msra.mxu0 %v3264
      %3355 = vmatpush.bf16.msra.mxu0 %v3262
      %3356 = vmatpush.bf16.msra.mxu0 %v3260
      %3357 = vmatpush.bf16.msra.mxu0 %v3258
      %3358 = vmatpush.bf16.msra.mxu0 %v3256
      %3359 = vmatpush.bf16.msra.mxu0 %v3254
      %3360 = vmatpush.bf16.msra.mxu0 %v3252
      %3361 = vmatmul.bf16.gmra.mxu0 %v3132
      %v3362 = vpop.f32.mrf.mxu0
      %v3363 = vadd.f32 %v3345, %v3362
      %v3364 = vpop.f32.mrf.mxu0
      %v3365 = vadd.f32 %v3347, %v3364
      %3366 = vmatmul.bf16.gmra.mxu0 %v3134
      %v3367 = vpop.f32.mrf.mxu0
      %v3368 = vadd.f32 %v3350, %v3367
      %v3369 = vpop.f32.mrf.mxu0
      %3370 = vdwg.mxu0
      %v3371 = vadd.f32 %v3044, %v3327
      %v3372 = vadd.f32 %v3045, %v3363
      %v3373 = vadd.f32 %v3046, %v3329
      %v3374 = vadd.f32 %v3047, %v3365
      %v3375 = vadd.f32 %v3048, %v3332
      %v3376 = vadd.f32 %v3049, %v3368
      %v3377 = vpack.c.bf16 %v1281, %v1281
      %v3378 = vpack.c.bf16 %v1288, %v1288
      %s3379 = scalar_lea.vmem %s3, 1536
      %v3380 = vld [vmem:[%s3379] sm:$0xff]
      %v3381 = vld [vmem:[%s3379 + $0x8] sm:$0xff]
      %v3382 = vld [vmem:[%s3379 + $0x10] sm:$0xff]
      %v3383 = vld [vmem:[%s3379 + $0x18] sm:$0xff]
      %v3384 = vld [vmem:[%s3379 + $0x20] sm:$0xff]
      %v3385 = vld [vmem:[%s3379 + $0x28] sm:$0xff]
      %v3386 = vld [vmem:[%s3379 + $0x30] sm:$0xff]
      %v3387 = vld [vmem:[%s3379 + $0x38] sm:$0xff]
      %v3388 = vld [vmem:[%s3379 + $0x40] sm:$0xff]
      %v3389 = vld [vmem:[%s3379 + $0x48] sm:$0xff]
      %v3390 = vld [vmem:[%s3379 + $0x50] sm:$0xff]
      %v3391 = vld [vmem:[%s3379 + $0x58] sm:$0xff]
      %v3392 = vld [vmem:[%s3379 + $0x60] sm:$0xff]
      %v3393 = vld [vmem:[%s3379 + $0x68] sm:$0xff]
      %v3394 = vld [vmem:[%s3379 + $0x70] sm:$0xff]
      %v3395 = vld [vmem:[%s3379 + $0x78] sm:$0xff]
      %v3396 = vld [vmem:[%s3379 + $0x80] sm:$0xff]
      %v3397 = vld [vmem:[%s3379 + $0x88] sm:$0xff]
      %v3398 = vld [vmem:[%s3379 + $0x90] sm:$0xff]
      %v3399 = vld [vmem:[%s3379 + $0x98] sm:$0xff]
      %v3400 = vld [vmem:[%s3379 + $0xa0] sm:$0xff]
      %v3401 = vld [vmem:[%s3379 + $0xa8] sm:$0xff]
      %v3402 = vld [vmem:[%s3379 + $0xb0] sm:$0xff]
      %v3403 = vld [vmem:[%s3379 + $0xb8] sm:$0xff]
      %v3404 = vld [vmem:[%s3379 + $0xc0] sm:$0xff]
      %v3405 = vld [vmem:[%s3379 + $0xc8] sm:$0xff]
      %v3406 = vld [vmem:[%s3379 + $0xd0] sm:$0xff]
      %v3407 = vld [vmem:[%s3379 + $0xd8] sm:$0xff]
      %v3408 = vld [vmem:[%s3379 + $0xe0] sm:$0xff]
      %v3409 = vld [vmem:[%s3379 + $0xe8] sm:$0xff]
      %v3410 = vld [vmem:[%s3379 + $0xf0] sm:$0xff]
      %v3411 = vld [vmem:[%s3379 + $0xf8] sm:$0xff]
      %v3414 = vunpack.c.l.b16 %v3377
      %v3415 = vunpack.c.l.b16 %v3378
      %v3416 = vsel %vm482, %v1464, %v1462
      %v3417 = vsel %vm485, %v1466, %v3416
      %v3418 = vsel %vm488, %v1468, %v3417
      %v3419 = vsel %vm491, %v1470, %v3418
      %v3420 = vsel %vm494, %v1472, %v3419
      %v3421 = vsel %vm497, %v1474, %v3420
      %v3422 = vsel %vm1506, %v1476, %v3421
      %v3423 = vsel %vm482, %v1465, %v1463
      %v3424 = vsel %vm485, %v1467, %v3423
      %v3425 = vsel %vm488, %v1469, %v3424
      %v3426 = vsel %vm491, %v1471, %v3425
      %v3427 = vsel %vm494, %v1473, %v3426
      %v3428 = vsel %vm497, %v1475, %v3427
      %v3429 = vsel %vm1506, %v1477, %v3428
      %v3430 = vsel %vm482, %v1480, %v1478
      %v3431 = vsel %vm485, %v1482, %v3430
      %v3432 = vsel %vm488, %v1484, %v3431
      %v3433 = vsel %vm491, %v1486, %v3432
      %v3434 = vsel %vm494, %v1488, %v3433
      %v3435 = vsel %vm497, %v1490, %v3434
      %v3436 = vsel %vm1506, %v1492, %v3435
      %v3437 = vsel %vm482, %v1481, %v1479
      %v3438 = vsel %vm485, %v1483, %v3437
      %v3439 = vsel %vm488, %v1485, %v3438
      %v3440 = vsel %vm491, %v1487, %v3439
      %v3441 = vsel %vm494, %v1489, %v3440
      %v3442 = vsel %vm497, %v1491, %v3441
      %v3443 = vsel %vm1506, %v1493, %v3442
      %v3444 = vsel %vm482, %v1496, %v1494
      %v3445 = vsel %vm485, %v1498, %v3444
      %v3446 = vsel %vm488, %v2106, %v3445
      %v3447 = vsel %vm491, %v2433, %v3446
      %v3448 = vsel %vm494, %v2760, %v3447
      %v3449 = vsel %vm497, %v3087, %v3448
      %v3450 = vsel %vm1506, %v3414, %v3449
      %v3451 = vsel %vm482, %v1497, %v1495
      %v3452 = vsel %vm485, %v1499, %v3451
      %v3453 = vsel %vm488, %v2107, %v3452
      %v3454 = vsel %vm491, %v2434, %v3453
      %v3455 = vsel %vm494, %v2761, %v3454
      %v3456 = vsel %vm497, %v3088, %v3455
      %v3457 = vsel %vm1506, %v3415, %v3456
      %v3458 = vpack.c.b16 %v3436, %v3422
      %v3459 = vpack.c.b16 %v3443, %v3429
      %v3460 = vpack.c.b16 %v3450, %v3450
      %v3461 = vpack.c.b16 %v3457, %v3457
      %v3498 = vunpack.c.l.b16 %v3380
      %v3499 = vunpack.c.h.b16 %v3380
      %v3500 = vunpack.c.l.b16 %v3381
      %v3501 = vunpack.c.h.b16 %v3381
      %v3502 = vunpack.c.l.b16 %v3382
      %v3503 = vunpack.c.h.b16 %v3382
      %v3504 = vunpack.c.l.b16 %v3383
      %v3505 = vunpack.c.h.b16 %v3383
      %v3506 = vunpack.c.l.b16 %v3384
      %v3507 = vunpack.c.h.b16 %v3384
      %v3508 = vunpack.c.l.b16 %v3385
      %v3509 = vunpack.c.h.b16 %v3385
      %v3510 = vunpack.c.l.b16 %v3386
      %v3511 = vunpack.c.h.b16 %v3386
      %v3512 = vunpack.c.l.b16 %v3387
      %v3513 = vunpack.c.h.b16 %v3387
      %v3514 = vunpack.c.l.b16 %v3388
      %v3515 = vunpack.c.h.b16 %v3388
      %v3516 = vunpack.c.l.b16 %v3389
      %v3517 = vunpack.c.h.b16 %v3389
      %v3518 = vunpack.c.l.b16 %v3390
      %v3519 = vunpack.c.h.b16 %v3390
      %v3520 = vunpack.c.l.b16 %v3391
      %v3521 = vunpack.c.h.b16 %v3391
      %v3522 = vunpack.c.l.b16 %v3392
      %v3523 = vunpack.c.h.b16 %v3392
      %v3524 = vunpack.c.l.b16 %v3393
      %v3525 = vunpack.c.h.b16 %v3393
      %v3526 = vunpack.c.l.b16 %v3394
      %v3527 = vunpack.c.h.b16 %v3394
      %v3528 = vunpack.c.l.b16 %v3395
      %v3529 = vunpack.c.h.b16 %v3395
      %v3530 = vunpack.c.l.b16 %v3396
      %v3531 = vunpack.c.h.b16 %v3396
      %v3532 = vunpack.c.l.b16 %v3397
      %v3533 = vunpack.c.h.b16 %v3397
      %v3534 = vunpack.c.l.b16 %v3398
      %v3535 = vunpack.c.h.b16 %v3398
      %v3536 = vunpack.c.l.b16 %v3399
      %v3537 = vunpack.c.h.b16 %v3399
      %v3538 = vunpack.c.l.b16 %v3400
      %v3539 = vunpack.c.h.b16 %v3400
      %v3540 = vunpack.c.l.b16 %v3401
      %v3541 = vunpack.c.h.b16 %v3401
      %v3542 = vunpack.c.l.b16 %v3402
      %v3543 = vunpack.c.h.b16 %v3402
      %v3544 = vunpack.c.l.b16 %v3403
      %v3545 = vunpack.c.h.b16 %v3403
      %v3546 = vunpack.c.l.b16 %v3404
      %v3547 = vunpack.c.h.b16 %v3404
      %v3548 = vunpack.c.l.b16 %v3405
      %v3549 = vunpack.c.h.b16 %v3405
      %v3550 = vunpack.c.l.b16 %v3406
      %v3551 = vunpack.c.h.b16 %v3406
      %v3552 = vunpack.c.l.b16 %v3407
      %v3553 = vunpack.c.h.b16 %v3407
      %v3554 = vunpack.c.l.b16 %v3408
      %v3555 = vunpack.c.h.b16 %v3408
      %v3556 = vunpack.c.l.b16 %v3409
      %v3557 = vunpack.c.h.b16 %v3409
      %v3558 = vunpack.c.l.b16 %v3410
      %v3559 = vunpack.c.h.b16 %v3410
      %v3560 = vunpack.c.l.b16 %v3411
      %v3561 = vunpack.c.h.b16 %v3411
      %v3562 = vpack.c.b16 %v3500, %v3498
      %v3563 = vpack.c.b16 %v3501, %v3499
      %v3564 = vpack.c.b16 %v3504, %v3502
      %v3565 = vpack.c.b16 %v3505, %v3503
      %v3566 = vpack.c.b16 %v3508, %v3506
      %v3567 = vpack.c.b16 %v3509, %v3507
      %v3568 = vpack.c.b16 %v3512, %v3510
      %v3569 = vpack.c.b16 %v3513, %v3511
      %v3570 = vpack.c.b16 %v3516, %v3514
      %v3571 = vpack.c.b16 %v3517, %v3515
      %v3572 = vpack.c.b16 %v3520, %v3518
      %v3573 = vpack.c.b16 %v3521, %v3519
      %v3574 = vpack.c.b16 %v3524, %v3522
      %v3575 = vpack.c.b16 %v3525, %v3523
      %v3576 = vpack.c.b16 %v3528, %v3526
      %v3577 = vpack.c.b16 %v3529, %v3527
      %v3578 = vpack.c.b16 %v3532, %v3530
      %v3579 = vpack.c.b16 %v3533, %v3531
      %v3580 = vpack.c.b16 %v3536, %v3534
      %v3581 = vpack.c.b16 %v3537, %v3535
      %v3582 = vpack.c.b16 %v3540, %v3538
      %v3583 = vpack.c.b16 %v3541, %v3539
      %v3584 = vpack.c.b16 %v3544, %v3542
      %v3585 = vpack.c.b16 %v3545, %v3543
      %v3586 = vpack.c.b16 %v3548, %v3546
      %v3587 = vpack.c.b16 %v3549, %v3547
      %v3588 = vpack.c.b16 %v3552, %v3550
      %v3589 = vpack.c.b16 %v3553, %v3551
      %v3590 = vpack.c.b16 %v3556, %v3554
      %v3591 = vpack.c.b16 %v3557, %v3555
      %v3592 = vpack.c.b16 %v3560, %v3558
      %v3593 = vpack.c.b16 %v3561, %v3559
      %3626 = vmatpush.bf16.msra.mxu0 %v3576
      %3627 = vmatpush.bf16.msra.mxu0 %v3574
      %3628 = vmatpush.bf16.msra.mxu0 %v3572
      %3629 = vmatpush.bf16.msra.mxu0 %v3570
      %3630 = vmatpush.bf16.msra.mxu0 %v3568
      %3631 = vmatpush.bf16.msra.mxu0 %v3566
      %3632 = vmatpush.bf16.msra.mxu0 %v3564
      %3633 = vmatpush.bf16.msra.mxu0 %v3562
      %3634 = vmatmul.bf16.gmra.mxu0 %v3458
      %v3635 = vpop.f32.mrf.mxu0
      %v3636 = vadd.f32 0.0, %v3635
      %v3637 = vpop.f32.mrf.mxu0
      %v3638 = vadd.f32 0.0, %v3637
      %3639 = vmatmul.bf16.gmra.mxu0 %v3460
      %v3640 = vpop.f32.mrf.mxu0
      %v3641 = vadd.f32 0.0, %v3640
      %v3642 = vpop.f32.mrf.mxu0
      %3643 = vdwg.mxu0
      %3644 = vmatpush.bf16.msra.mxu0 %v3592
      %3645 = vmatpush.bf16.msra.mxu0 %v3590
      %3646 = vmatpush.bf16.msra.mxu0 %v3588
      %3647 = vmatpush.bf16.msra.mxu0 %v3586
      %3648 = vmatpush.bf16.msra.mxu0 %v3584
      %3649 = vmatpush.bf16.msra.mxu0 %v3582
      %3650 = vmatpush.bf16.msra.mxu0 %v3580
      %3651 = vmatpush.bf16.msra.mxu0 %v3578
      %3652 = vmatmul.bf16.gmra.mxu0 %v3459
      %v3653 = vpop.f32.mrf.mxu0
      %v3654 = vadd.f32 %v3636, %v3653
      %v3655 = vpop.f32.mrf.mxu0
      %v3656 = vadd.f32 %v3638, %v3655
      %3657 = vmatmul.bf16.gmra.mxu0 %v3461
      %v3658 = vpop.f32.mrf.mxu0
      %v3659 = vadd.f32 %v3641, %v3658
      %v3660 = vpop.f32.mrf.mxu0
      %3661 = vdwg.mxu0
      %3662 = vmatpush.bf16.msra.mxu0 %v3577
      %3663 = vmatpush.bf16.msra.mxu0 %v3575
      %3664 = vmatpush.bf16.msra.mxu0 %v3573
      %3665 = vmatpush.bf16.msra.mxu0 %v3571
      %3666 = vmatpush.bf16.msra.mxu0 %v3569
      %3667 = vmatpush.bf16.msra.mxu0 %v3567
      %3668 = vmatpush.bf16.msra.mxu0 %v3565
      %3669 = vmatpush.bf16.msra.mxu0 %v3563
      %3670 = vmatmul.bf16.gmra.mxu0 %v3458
      %v3671 = vpop.f32.mrf.mxu0
      %v3672 = vadd.f32 0.0, %v3671
      %v3673 = vpop.f32.mrf.mxu0
      %v3674 = vadd.f32 0.0, %v3673
      %3675 = vmatmul.bf16.gmra.mxu0 %v3460
      %v3676 = vpop.f32.mrf.mxu0
      %v3677 = vadd.f32 0.0, %v3676
      %v3678 = vpop.f32.mrf.mxu0
      %3679 = vdwg.mxu0
      %3680 = vmatpush.bf16.msra.mxu0 %v3593
      %3681 = vmatpush.bf16.msra.mxu0 %v3591
      %3682 = vmatpush.bf16.msra.mxu0 %v3589
      %3683 = vmatpush.bf16.msra.mxu0 %v3587
      %3684 = vmatpush.bf16.msra.mxu0 %v3585
      %3685 = vmatpush.bf16.msra.mxu0 %v3583
      %3686 = vmatpush.bf16.msra.mxu0 %v3581
      %3687 = vmatpush.bf16.msra.mxu0 %v3579
      %3688 = vmatmul.bf16.gmra.mxu0 %v3459
      %v3689 = vpop.f32.mrf.mxu0
      %v3690 = vadd.f32 %v3672, %v3689
      %v3691 = vpop.f32.mrf.mxu0
      %v3692 = vadd.f32 %v3674, %v3691
      %3693 = vmatmul.bf16.gmra.mxu0 %v3461
      %v3694 = vpop.f32.mrf.mxu0
      %v3695 = vadd.f32 %v3677, %v3694
      %v3696 = vpop.f32.mrf.mxu0
      %3697 = vdwg.mxu0
      %v3698 = vadd.f32 %v3371, %v3654
      %v3699 = vadd.f32 %v3372, %v3690
      %v3700 = vadd.f32 %v3373, %v3656
      %v3701 = vadd.f32 %v3374, %v3692
      %v3702 = vadd.f32 %v3375, %v3659
      %v3703 = vadd.f32 %v3376, %v3695
      %v3704 = vld [vmem:[%s4] sm:$0x3]
      %v3706 = vperm.slane %v3704, 0
      %v3707 = vperm.slane %v3704, 1
      %v3710 = vadd.f32 %v3698, %v3706
      %v3711 = vadd.f32 %v3699, %v3707
      %v3712 = vadd.f32 %v3700, %v3706
      %v3713 = vadd.f32 %v3701, %v3707
      %v3714 = vadd.f32 %v3702, %v3706
      %v3715 = vadd.f32 %v3703, %v3707
      %v3716 = vmax.f32 %v3710, 0.0
      %v3717 = vmax.f32 %v3711, 0.0
      %v3718 = vmax.f32 %v3712, 0.0
      %v3719 = vmax.f32 %v3713, 0.0
      %v3720 = vmax.f32 %v3714, 0.0
      %v3721 = vmax.f32 %v3715, 0.0
      %v3728 = vrot.slane %v3717, 7
      %v3729 = vrot.slane %v3719, 7
      %v3730 = vrot.slane %v3721, 7
      %v3731 = vsel %vm480, %v3716, %v3728
      %v3732 = vsel %vm482, %v3716, %v3728
      %v3733 = vrot.slane %v3732, 1
      %v3734 = vsel %vm485, %v3716, %v3728
      %v3735 = vrot.slane %v3734, 2
      %v3736 = vsel %vm488, %v3716, %v3728
      %v3737 = vrot.slane %v3736, 3
      %v3738 = vsel %vm491, %v3716, %v3728
      %v3739 = vrot.slane %v3738, 4
      %v3740 = vsel %vm494, %v3716, %v3728
      %v3741 = vrot.slane %v3740, 5
      %v3742 = vsel %vm497, %v3716, %v3728
      %v3743 = vrot.slane %v3742, 6
      %v3744 = vsel %vm500, %v3728, %v3716
      %v3745 = vrot.slane %v3744, 7
      %v3746 = vsel %vm480, %v3718, %v3729
      %v3747 = vsel %vm482, %v3718, %v3729
      %v3748 = vrot.slane %v3747, 1
      %v3749 = vsel %vm485, %v3718, %v3729
      %v3750 = vrot.slane %v3749, 2
      %v3751 = vsel %vm488, %v3718, %v3729
      %v3752 = vrot.slane %v3751, 3
      %v3753 = vsel %vm491, %v3718, %v3729
      %v3754 = vrot.slane %v3753, 4
      %v3755 = vsel %vm494, %v3718, %v3729
      %v3756 = vrot.slane %v3755, 5
      %v3757 = vsel %vm497, %v3718, %v3729
      %v3758 = vrot.slane %v3757, 6
      %v3759 = vsel %vm500, %v3729, %v3718
      %v3760 = vrot.slane %v3759, 7
      %v3761 = vsel %vm480, %v3720, %v3730
      %v3762 = vsel %vm482, %v3720, %v3730
      %v3763 = vrot.slane %v3762, 1
      %v3764 = vsel %vm485, %v3720, %v3730
      %v3765 = vrot.slane %v3764, 2
      %v3766 = vsel %vm488, %v3720, %v3730
      %v3767 = vrot.slane %v3766, 3
      %v3768 = vsel %vm491, %v3720, %v3730
      %v3769 = vrot.slane %v3768, 4
      %v3770 = vsel %vm494, %v3720, %v3730
      %v3771 = vrot.slane %v3770, 5
      %v3772 = vsel %vm497, %v3720, %v3730
      %v3773 = vrot.slane %v3772, 6
      %v3774 = vsel %vm500, %v3730, %v3720
      %v3775 = vrot.slane %v3774, 7
      %3776 = vst [vmem:[#allocation1] ss:$9 sm:$0xff] %v3731
      %s3777 = scalar_lea.vmem [#allocation1], 1
      %3778 = vst [vmem:[%s3777] ss:$9 sm:$0xff] %v3733
      %s3779 = scalar_lea.vmem [#allocation1], 2
      %3780 = vst [vmem:[%s3779] ss:$9 sm:$0xff] %v3735
      %v3781 = vld [vmem:[#allocation1] sm:$0xff]
      %v3782 = vld [vmem:[#allocation1 + $0x9] sm:$0xff]
      %3783 = vst [vmem:[#allocation1] ss:$9 sm:$0xff] %v3737
      %3784 = vst [vmem:[%s3777] ss:$9 sm:$0xff] %v3739
      %3785 = vst [vmem:[%s3779] ss:$9 sm:$0xff] %v3741
      %v3786 = vld [vmem:[#allocation1] sm:$0xff]
      %v3787 = vld [vmem:[#allocation1 + $0x9] sm:$0xff]
      %3788 = vst [vmem:[#allocation1] ss:$9 sm:$0xff] %v3743
      %3789 = vst [vmem:[%s3777] ss:$9 sm:$0xff] %v3745
      %3790 = vst [vmem:[%s3779] ss:$9 sm:$0xff] %v3746
      %v3791 = vld [vmem:[#allocation1] sm:$0xff]
      %v3792 = vld [vmem:[#allocation1 + $0x9] sm:$0xff]
      %3793 = vst [vmem:[#allocation1] ss:$9 sm:$0xff] %v3748
      %3794 = vst [vmem:[%s3777] ss:$9 sm:$0xff] %v3750
      %3795 = vst [vmem:[%s3779] ss:$9 sm:$0xff] %v3752
      %v3796 = vld [vmem:[#allocation1] sm:$0xff]
      %v3797 = vld [vmem:[#allocation1 + $0x9] sm:$0xff]
      %3798 = vst [vmem:[#allocation1] ss:$9 sm:$0xff] %v3754
      %3799 = vst [vmem:[%s3777] ss:$9 sm:$0xff] %v3756
      %3800 = vst [vmem:[%s3779] ss:$9 sm:$0xff] %v3758
      %v3801 = vld [vmem:[#allocation1] sm:$0xff]
      %v3802 = vld [vmem:[#allocation1 + $0x9] sm:$0xff]
      %3803 = vst [vmem:[#allocation1] ss:$9 sm:$0xff] %v3760
      %3804 = vst [vmem:[%s3777] ss:$9 sm:$0xff] %v3761
      %3805 = vst [vmem:[%s3779] ss:$9 sm:$0xff] %v3763
      %v3806 = vld [vmem:[#allocation1] sm:$0xff]
      %v3807 = vld [vmem:[#allocation1 + $0x9] sm:$0xff]
      %3808 = vst [vmem:[#allocation1] ss:$9 sm:$0xff] %v3765
      %3809 = vst [vmem:[%s3777] ss:$9 sm:$0xff] %v3767
      %3810 = vst [vmem:[%s3779] ss:$9 sm:$0xff] %v3769
      %v3811 = vld [vmem:[#allocation1] sm:$0xff]
      %v3812 = vld [vmem:[#allocation1 + $0x9] sm:$0xff]
      %3813 = vst [vmem:[#allocation1] ss:$9 sm:$0xff] %v3771
      %3814 = vst [vmem:[%s3777] ss:$9 sm:$0xff] %v3773
      %3815 = vst [vmem:[%s3779] ss:$9 sm:$0xff] %v3775
      %v3816 = vld [vmem:[#allocation1] sm:$0xff]
      %v3817 = vld [vmem:[#allocation1 + $0x9] sm:$0xff]
      %v3834 = vsel %vm868, %v3781, -inf
      %v3835 = vrot.slane %v3834, 4
      %v3836 = vmax.f32 %v3834, %v3835
      %v3837 = vrot.slane %v3836, 2
      %v3838 = vmax.f32 %v3836, %v3837
      %v3839 = vrot.slane %v3838, 1
      %v3840 = vmax.f32 %v3838, %v3839
      %v3841 = vsel %vm868, %v3782, -inf
      %v3842 = vrot.slane %v3841, 4
      %v3843 = vmax.f32 %v3841, %v3842
      %v3844 = vrot.slane %v3843, 2
      %v3845 = vmax.f32 %v3843, %v3844
      %v3846 = vrot.slane %v3845, 1
      %v3847 = vmax.f32 %v3845, %v3846
      %v3848 = vsel %vm868, %v3786, -inf
      %v3849 = vrot.slane %v3848, 4
      %v3850 = vmax.f32 %v3848, %v3849
      %v3851 = vrot.slane %v3850, 2
      %v3852 = vmax.f32 %v3850, %v3851
      %v3853 = vrot.slane %v3852, 1
      %v3854 = vmax.f32 %v3852, %v3853
      %v3855 = vsel %vm868, %v3787, -inf
      %v3856 = vrot.slane %v3855, 4
      %v3857 = vmax.f32 %v3855, %v3856
      %v3858 = vrot.slane %v3857, 2
      %v3859 = vmax.f32 %v3857, %v3858
      %v3860 = vrot.slane %v3859, 1
      %v3861 = vmax.f32 %v3859, %v3860
      %v3862 = vsel %vm868, %v3791, -inf
      %v3863 = vrot.slane %v3862, 4
      %v3864 = vmax.f32 %v3862, %v3863
      %v3865 = vrot.slane %v3864, 2
      %v3866 = vmax.f32 %v3864, %v3865
      %v3867 = vrot.slane %v3866, 1
      %v3868 = vmax.f32 %v3866, %v3867
      %v3869 = vsel %vm868, %v3792, -inf
      %v3870 = vrot.slane %v3869, 4
      %v3871 = vmax.f32 %v3869, %v3870
      %v3872 = vrot.slane %v3871, 2
      %v3873 = vmax.f32 %v3871, %v3872
      %v3874 = vrot.slane %v3873, 1
      %v3875 = vmax.f32 %v3873, %v3874
      %v3876 = vsel %vm868, %v3796, -inf
      %v3877 = vrot.slane %v3876, 4
      %v3878 = vmax.f32 %v3876, %v3877
      %v3879 = vrot.slane %v3878, 2
      %v3880 = vmax.f32 %v3878, %v3879
      %v3881 = vrot.slane %v3880, 1
      %v3882 = vmax.f32 %v3880, %v3881
      %v3883 = vsel %vm868, %v3797, -inf
      %v3884 = vrot.slane %v3883, 4
      %v3885 = vmax.f32 %v3883, %v3884
      %v3886 = vrot.slane %v3885, 2
      %v3887 = vmax.f32 %v3885, %v3886
      %v3888 = vrot.slane %v3887, 1
      %v3889 = vmax.f32 %v3887, %v3888
      %v3890 = vsel %vm868, %v3801, -inf
      %v3891 = vrot.slane %v3890, 4
      %v3892 = vmax.f32 %v3890, %v3891
      %v3893 = vrot.slane %v3892, 2
      %v3894 = vmax.f32 %v3892, %v3893
      %v3895 = vrot.slane %v3894, 1
      %v3896 = vmax.f32 %v3894, %v3895
      %v3897 = vsel %vm868, %v3802, -inf
      %v3898 = vrot.slane %v3897, 4
      %v3899 = vmax.f32 %v3897, %v3898
      %v3900 = vrot.slane %v3899, 2
      %v3901 = vmax.f32 %v3899, %v3900
      %v3902 = vrot.slane %v3901, 1
      %v3903 = vmax.f32 %v3901, %v3902
      %v3904 = vsel %vm868, %v3806, -inf
      %v3905 = vrot.slane %v3904, 4
      %v3906 = vmax.f32 %v3904, %v3905
      %v3907 = vrot.slane %v3906, 2
      %v3908 = vmax.f32 %v3906, %v3907
      %v3909 = vrot.slane %v3908, 1
      %v3910 = vmax.f32 %v3908, %v3909
      %v3911 = vsel %vm868, %v3807, -inf
      %v3912 = vrot.slane %v3911, 4
      %v3913 = vmax.f32 %v3911, %v3912
      %v3914 = vrot.slane %v3913, 2
      %v3915 = vmax.f32 %v3913, %v3914
      %v3916 = vrot.slane %v3915, 1
      %v3917 = vmax.f32 %v3915, %v3916
      %v3918 = vsel %vm868, %v3811, -inf
      %v3919 = vrot.slane %v3918, 4
      %v3920 = vmax.f32 %v3918, %v3919
      %v3921 = vrot.slane %v3920, 2
      %v3922 = vmax.f32 %v3920, %v3921
      %v3923 = vrot.slane %v3922, 1
      %v3924 = vmax.f32 %v3922, %v3923
      %v3925 = vsel %vm868, %v3812, -inf
      %v3926 = vrot.slane %v3925, 4
      %v3927 = vmax.f32 %v3925, %v3926
      %v3928 = vrot.slane %v3927, 2
      %v3929 = vmax.f32 %v3927, %v3928
      %v3930 = vrot.slane %v3929, 1
      %v3931 = vmax.f32 %v3929, %v3930
      %v3932 = vsel %vm868, %v3816, -inf
      %v3933 = vrot.slane %v3932, 4
      %v3934 = vmax.f32 %v3932, %v3933
      %v3935 = vrot.slane %v3934, 2
      %v3936 = vmax.f32 %v3934, %v3935
      %v3937 = vrot.slane %v3936, 1
      %v3938 = vmax.f32 %v3936, %v3937
      %v3939 = vsel %vm868, %v3817, -inf
      %v3940 = vrot.slane %v3939, 4
      %v3941 = vmax.f32 %v3939, %v3940
      %v3942 = vrot.slane %v3941, 2
      %v3943 = vmax.f32 %v3941, %v3942
      %v3944 = vrot.slane %v3943, 1
      %v3945 = vmax.f32 %v3943, %v3944
      %v3962 = vsel %vm482, %v3854, %v3840
      %v3963 = vsel %vm485, %v3868, %v3962
      %v3964 = vsel %vm488, %v3882, %v3963
      %v3965 = vsel %vm491, %v3896, %v3964
      %v3966 = vsel %vm494, %v3910, %v3965
      %v3967 = vsel %vm497, %v3924, %v3966
      %v3968 = vsel %vm1506, %v3938, %v3967
      %v3969 = vsel %vm482, %v3861, %v3847
      %v3970 = vsel %vm485, %v3875, %v3969
      %v3971 = vsel %vm488, %v3889, %v3970
      %v3972 = vsel %vm491, %v3903, %v3971
      %v3973 = vsel %vm494, %v3917, %v3972
      %v3974 = vsel %vm497, %v3931, %v3973
      %v3975 = vsel %vm1506, %v3945, %v3974
      %3978 = vxpose.xlu0.b32.start [1/16] %v3968, 128
      %3979 = vxpose.xlu0.b32.cont [2/16] 0.0, 128
      %3980 = vxpose.xlu0.b32.cont [3/16] 0.0, 128
      %3981 = vxpose.xlu0.b32.cont [4/16] 0.0, 128
      %3982 = vxpose.xlu0.b32.cont [5/16] 0.0, 128
      %3983 = vxpose.xlu0.b32.cont [6/16] 0.0, 128
      %3984 = vxpose.xlu0.b32.cont [7/16] 0.0, 128
      %3985 = vxpose.xlu0.b32.cont [8/16] 0.0, 128
      %3986 = vxpose.xlu0.b32.cont [9/16] 0.0, 128
      %3987 = vxpose.xlu0.b32.cont [10/16] 0.0, 128
      %3988 = vxpose.xlu0.b32.cont [11/16] 0.0, 128
      %3989 = vxpose.xlu0.b32.cont [12/16] 0.0, 128
      %3990 = vxpose.xlu0.b32.cont [13/16] 0.0, 128
      %3991 = vxpose.xlu0.b32.cont [14/16] 0.0, 128
      %3992 = vxpose.xlu0.b32.cont [15/16] 0.0, 128
      %3993 = vxpose.xlu0.b32.end [16/16] 0.0, 128
      %v3994 = vpop.trf.xlu0
      %v3995 = vpop.trf.xlu0
      %v3996 = vpop.trf.xlu0
      %v3997 = vpop.trf.xlu0
      %v3998 = vpop.trf.xlu0
      %v3999 = vpop.trf.xlu0
      %v4000 = vpop.trf.xlu0
      %v4001 = vpop.trf.xlu0
      %v4002 = vpop.trf.xlu0
      %v4003 = vpop.trf.xlu0
      %v4004 = vpop.trf.xlu0
      %v4005 = vpop.trf.xlu0
      %v4006 = vpop.trf.xlu0
      %v4007 = vpop.trf.xlu0
      %v4008 = vpop.trf.xlu0
      %v4009 = vpop.trf.xlu0
      %4010 = vxpose.xlu0.b32.start [1/16] %v3975, 128
      %4011 = vxpose.xlu0.b32.cont [2/16] 0.0, 128
      %4012 = vxpose.xlu0.b32.cont [3/16] 0.0, 128
      %4013 = vxpose.xlu0.b32.cont [4/16] 0.0, 128
      %4014 = vxpose.xlu0.b32.cont [5/16] 0.0, 128
      %4015 = vxpose.xlu0.b32.cont [6/16] 0.0, 128
      %4016 = vxpose.xlu0.b32.cont [7/16] 0.0, 128
      %4017 = vxpose.xlu0.b32.cont [8/16] 0.0, 128
      %4018 = vxpose.xlu0.b32.cont [9/16] 0.0, 128
      %4019 = vxpose.xlu0.b32.cont [10/16] 0.0, 128
      %4020 = vxpose.xlu0.b32.cont [11/16] 0.0, 128
      %4021 = vxpose.xlu0.b32.cont [12/16] 0.0, 128
      %4022 = vxpose.xlu0.b32.cont [13/16] 0.0, 128
      %4023 = vxpose.xlu0.b32.cont [14/16] 0.0, 128
      %4024 = vxpose.xlu0.b32.cont [15/16] 0.0, 128
      %4025 = vxpose.xlu0.b32.end [16/16] 0.0, 128
      %v4026 = vpop.trf.xlu0
      %v4027 = vpop.trf.xlu0
      %v4028 = vpop.trf.xlu0
      %v4029 = vpop.trf.xlu0
      %v4030 = vpop.trf.xlu0
      %v4031 = vpop.trf.xlu0
      %v4032 = vpop.trf.xlu0
      %v4033 = vpop.trf.xlu0
      %v4034 = vpop.trf.xlu0
      %v4035 = vpop.trf.xlu0
      %v4036 = vpop.trf.xlu0
      %v4037 = vpop.trf.xlu0
      %v4038 = vpop.trf.xlu0
      %v4039 = vpop.trf.xlu0
      %v4040 = vpop.trf.xlu0
      %v4041 = vpop.trf.xlu0
      %vm4042 = vcmask 64512
      %4043 = vst.msk [vmem:[%s224] sm:$0xff] %vm4042, %v3994
      %4044 = vst.msk [vmem:[%s224 + $0x8] sm:$0xff] %vm4042, %v3995
      %4045 = vst.msk [vmem:[%s224 + $0x10] sm:$0xff] %vm4042, %v3996
      %4046 = vst.msk [vmem:[%s224 + $0x18] sm:$0xff] %vm4042, %v3997
      %4047 = vst.msk [vmem:[%s224 + $0x20] sm:$0xff] %vm4042, %v3998
      %4048 = vst.msk [vmem:[%s224 + $0x28] sm:$0xff] %vm4042, %v3999
      %4049 = vst.msk [vmem:[%s224 + $0x30] sm:$0xff] %vm4042, %v4000
      %4050 = vst.msk [vmem:[%s224 + $0x38] sm:$0xff] %vm4042, %v4001
      %4051 = vst.msk [vmem:[%s224 + $0x40] sm:$0xff] %vm4042, %v4002
      %4052 = vst.msk [vmem:[%s224 + $0x48] sm:$0xff] %vm4042, %v4003
      %4053 = vst.msk [vmem:[%s224 + $0x50] sm:$0xff] %vm4042, %v4004
      %4054 = vst.msk [vmem:[%s224 + $0x58] sm:$0xff] %vm4042, %v4005
      %4055 = vst.msk [vmem:[%s224 + $0x60] sm:$0xff] %vm4042, %v4006
      %4056 = vst.msk [vmem:[%s224 + $0x68] sm:$0xff] %vm4042, %v4007
      %4057 = vst.msk [vmem:[%s224 + $0x70] sm:$0xff] %vm4042, %v4008
      %4058 = vst.msk [vmem:[%s224 + $0x78] sm:$0xff] %vm4042, %v4009
      %4059 = vst.msk [vmem:[%s224 + $0x80] sm:$0xff] %vm4042, %v4026
      %4060 = vst.msk [vmem:[%s224 + $0x88] sm:$0xff] %vm4042, %v4027
      %4061 = vst.msk [vmem:[%s224 + $0x90] sm:$0xff] %vm4042, %v4028
      %4062 = vst.msk [vmem:[%s224 + $0x98] sm:$0xff] %vm4042, %v4029
      %4063 = vst.msk [vmem:[%s224 + $0xa0] sm:$0xff] %vm4042, %v4030
      %4064 = vst.msk [vmem:[%s224 + $0xa8] sm:$0xff] %vm4042, %v4031
      %4065 = vst.msk [vmem:[%s224 + $0xb0] sm:$0xff] %vm4042, %v4032
      %4066 = vst.msk [vmem:[%s224 + $0xb8] sm:$0xff] %vm4042, %v4033
      %4067 = vst.msk [vmem:[%s224 + $0xc0] sm:$0xff] %vm4042, %v4034
      %4068 = vst.msk [vmem:[%s224 + $0xc8] sm:$0xff] %vm4042, %v4035
      %4069 = vst.msk [vmem:[%s224 + $0xd0] sm:$0xff] %vm4042, %v4036
      %4070 = vst.msk [vmem:[%s224 + $0xd8] sm:$0xff] %vm4042, %v4037
      %4071 = vst.msk [vmem:[%s224 + $0xe0] sm:$0xff] %vm4042, %v4038
      %4072 = vst.msk [vmem:[%s224 + $0xe8] sm:$0xff] %vm4042, %v4039
      %4073 = vst.msk [vmem:[%s224 + $0xf0] sm:$0xff] %vm4042, %v4040
      %4074 = vst.msk [vmem:[%s224 + $0xf8] sm:$0xff] %vm4042, %v4041
      %p4075 = scmp.lt.s32.totalorder %s16, 1
      %s4076 = scalar_select %p4075, %s16, 1
      %s4077 = smul.addr %s4076, 32
      %s4078 = smul.addr %s4077, 8
      %s4079 = scalar_lea.vmem %s5, %s4078
      // Predicated region
      $region41: #{char_cnn_forward.1} parent=39 // pred_check
        %p4080 = pneg %p144
      $region42: #{char_cnn_forward.1} parent=39 // pred_check_branch
        %4082 = sbr.rel (%p4080) target = $region44
      $region43: #{char_cnn_forward.1} parent=39 // pred_region
        _
      $region44: #{char_cnn_forward.1} parent=39 // pred_fallthru
        _
    $region40: #{char_cnn_forward.1} parent=5 // pred_fallthru
      _
    %p4083 = scmp.le.s32.totalorder 2, %s11
    // Predicated region
    $region45: #{char_cnn_forward.1} parent=5 // pred_check
      %p4084 = pneg %p4083
    $region46: #{char_cnn_forward.1} parent=5 // pred_check_branch
      %4086 = sbr.rel (%p4084) target = $region48
    $region47: #{char_cnn_forward.1} parent=5 // pred_region
      %s4087 = ssub.s32 %s11, 2
      // Predicated region
      $region49: #{char_cnn_forward.1} parent=47 // pred_check
        %p4088 = pneg %p150
      $region50: #{char_cnn_forward.1} parent=47 // pred_check_branch
        %4090 = sbr.rel (%p4088) target = $region52
      $region51: #{char_cnn_forward.1} parent=47 // pred_region
        %p4091 = scmp.lt.s32.totalorder %s17, 1
        %s4092 = scalar_select %p4091, %s17, 1
        %s4093 = smul.addr %s4092, 32
        %s4094 = smul.addr %s4093, 8
        %s4095 = scalar_lea.vmem %s5, %s4094
      $region52: #{char_cnn_forward.1} parent=47 // pred_fallthru
        _
    $region48: #{char_cnn_forward.1} parent=5 // pred_fallthru
      _
  $region6: #{char_cnn_forward.1} parent=0 // loop_footer
    %s15 = sadd.s32 1, %s11
  $region7: #{char_cnn_forward.1} parent=0 // loop_footer_branch
    %10 = sbr.rel target = $region3
  $region8: #{char_cnn_forward.1} parent=0 // loop_exit
    _

</llo_original>
